<compile_context>
chip_gen: v7x
topology: tpu7x:2x2x1
jax: 0.10.0
libtpu: 0.0.40
codegen_flags: <defaults>
</compile_context>

<pallas_src>
import functools
import math

import numpy as np
import jax
import jax.numpy as jnp
from jax.experimental import pallas as pl
from jax.experimental import pallas  # noqa: F401
from jax.experimental.pallas import tpu as pltpu  # noqa: F401  (not needed; kept for reference)

# ---- small BERT config implied by the module ---------------------------------
HIDDEN = 32
NUM_HEADS = 4
HEAD_DIM = HIDDEN // NUM_HEADS
INTERMEDIATE = 64
NUM_LAYERS = 2
MAX_POS = 16
SENSOR_DIMS = 3
LN_EPS = 1e-12

_LANES = 128          # slab lane width (lane-dense DMA)
_X_PAD = 8            # sensor dims zero-padded to 8 so the embed matmul is aligned

# ---- row layout of the single packed weight slab (rows, 128) -----------------
_OFF_EMB_W = 0        # 8 rows, first SENSOR_DIMS used: embeddings Linear weight (in, out)
_R_EMB_B = 8          # embeddings Linear bias                (cols 0:32)
_R_EMB_LN_G = 9       # embeddings LayerNorm gamma
_R_EMB_LN_B = 10      # embeddings LayerNorm beta
_R_OUT_B = 11         # output head bias                      (cols 0:3)
_OFF_PE = 16          # n_tok rows: (position + token_type 0) embeddings, pre-broadcast
# per layer block (after out_w):
_L_QKV_W = 0          # 32 rows, cols 0:96  = [Q | K | V] weights (in, out)
_L_AO_W = 32          # 32 rows, cols 0:32  = attention output dense (in, out)
_L_I_W = 64           # 32 rows, cols 0:64  = intermediate dense (in, out)
_L_O_W = 96           # 64 rows, cols 0:32  = ffn output dense (in, out)
_L_VEC = 160          # 8 rows: qkv_b(96), ao_b, attn_ln_g, attn_ln_b, i_b(64), o_b, out_ln_g, out_ln_b
_ROWS_PER_LAYER = 168


def _slab_layout(n_tok):
    pe_rows = ((n_tok + 7) // 8) * 8
    off_out_w = _OFF_PE + pe_rows          # 32 rows: output head weight (in, out), cols 0:3
    off_layer0 = off_out_w + HIDDEN
    total = off_layer0 + NUM_LAYERS * _ROWS_PER_LAYER
    return off_out_w, off_layer0, total


# ------------------------------ fused kernel ----------------------------------
def _bert_fused_kernel(x_ref, slab_ref, o_ref, *, batch, seq, off_out_w, off_layer0):
    f32 = jnp.float32
    n_tok = batch * seq
    H, NH, HD, I = HIDDEN, NUM_HEADS, HEAD_DIM, INTERMEDIATE
    scale = 1.0 / math.sqrt(HEAD_DIM)

    def vec(r, width=H):                      # one stacked parameter row -> (1, width)
        return slab_ref[r:r + 1, :width]

    def matmul(a, w, b=None):
        y = jnp.dot(a, w, preferred_element_type=f32)
        return y if b is None else y + b

    def layernorm(xv, g_row, b_row):
        # E[x] and E[x^2] are independent -> the two cross-lane reductions can
        # issue in parallel on the XLUs (var = E[x^2] - mean^2, clamped >= 0).
        mean = jnp.mean(xv, axis=-1, keepdims=True)
        mean2 = jnp.mean(xv * xv, axis=-1, keepdims=True)
        var = jnp.maximum(mean2 - mean * mean, 0.0)
        return (xv - mean) * jax.lax.rsqrt(var + LN_EPS) * vec(g_row) + vec(b_row)

    def gelu(y):
        # HF BERT "gelu" = exact erf form; erf via Abramowitz-Stegun 7.1.26
        # polynomial (max abs err 1.5e-7) using only exp/where/polynomials.
        z = y * (1.0 / math.sqrt(2.0))
        a = jnp.where(z >= 0.0, z, -z)
        t = 1.0 / (1.0 + 0.3275911 * a)
        poly = t * (0.254829592 + t * (-0.284496736 + t * (1.421413741 +
               t * (-1.453152027 + t * 1.061405429))))
        erf_abs = 1.0 - poly * jnp.exp(-a * a)
        erf_z = jnp.where(z >= 0.0, erf_abs, -erf_abs)
        return 0.5 * y * (1.0 + erf_z)

    def split_heads(x):
        # (n_tok, H) -> (NH*batch, seq, HD); leading batch order is (head, b).
        # Built from lane-slices + leading-axis concat + contiguous reshape only.
        heads = [x[:, hh * HD:(hh + 1) * HD].reshape(1, n_tok, HD) for hh in range(NH)]
        return jnp.concatenate(heads, axis=0).reshape(NH * batch, seq, HD)

    def merge_heads(c):
        # (NH*batch, seq, HD) -> (n_tok, H) with lanes ordered [head0 | head1 | ...].
        c = c.reshape(NH, n_tok, HD)
        return jnp.concatenate([c[hh] for hh in range(NH)], axis=-1)

    # --- embeddings: Linear word-embedding + (position + token_type 0) + LN ---
    x = x_ref[...].astype(f32)                                           # (n_tok, 8)
    h = matmul(x, slab_ref[_OFF_EMB_W:_OFF_EMB_W + _X_PAD, :H], vec(_R_EMB_B))
    h = h + slab_ref[_OFF_PE:_OFF_PE + n_tok, :H]                        # pre-broadcast pe
    h = layernorm(h, _R_EMB_LN_G, _R_EMB_LN_B)

    for l in range(NUM_LAYERS):
        base = off_layer0 + l * _ROWS_PER_LAYER
        lv = base + _L_VEC

        # ---- self-attention: one fused QKV matmul, heads batched ----
        # TODO(synk): attention mask omitted — correct for the default all-ones
        # mask (extended mask of zeros); padded sequences would need it.
        qkv = matmul(h, slab_ref[base + _L_QKV_W:base + _L_QKV_W + H, :3 * H],
                     vec(lv + 0, 3 * H))                                  # (n_tok, 96)
        q = split_heads(qkv[:, 0:H])
        k = split_heads(qkv[:, H:2 * H])
        v = split_heads(qkv[:, 2 * H:3 * H])
        s = jnp.einsum("bqd,bkd->bqk", q, k, preferred_element_type=f32) * scale
        m = jnp.max(s, axis=-1, keepdims=True)
        p = jnp.exp(s - m)
        p = p / jnp.sum(p, axis=-1, keepdims=True)
        ctx = merge_heads(jnp.einsum("bqk,bkd->bqd", p, v, preferred_element_type=f32))
        attn = matmul(ctx, slab_ref[base + _L_AO_W:base + _L_AO_W + H, :H], vec(lv + 1))
        h = layernorm(attn + h, lv + 2, lv + 3)

        # ---- feed-forward ----
        inter = gelu(matmul(h, slab_ref[base + _L_I_W:base + _L_I_W + H, :I],
                            vec(lv + 4, I)))
        ffn = matmul(inter, slab_ref[base + _L_O_W:base + _L_O_W + I, :H], vec(lv + 5))
        h = layernorm(ffn + h, lv + 6, lv + 7)

    # --- output head (written exactly once, fused) ---
    y = matmul(h, slab_ref[off_out_w:off_out_w + H, :SENSOR_DIMS],
               vec(_R_OUT_B, SENSOR_DIMS))
    o_ref[...] = y.astype(o_ref.dtype)


# ------------------------------ wrapper ----------------------------------------
def bert_model_custom2(slab, input_ids):
    """input_ids: (B, S, SENSOR_DIMS) continuous sensor values."""
    B, S, D = input_ids.shape
    assert D == SENSOR_DIMS
    n_tok = B * S
    off_out_w, off_layer0, total = _slab_layout(n_tok)
    # slab must have been packed for this (batch, seq)
    assert slab.shape == (total, _LANES), "slab was packed for a different batch/seq"

    # pad sensor dim 3 -> 8 (zero cols) so the embedding contraction is aligned
    x2d = jnp.zeros((n_tok, _X_PAD), jnp.float32).at[:, :SENSOR_DIMS].set(
        input_ids.reshape(n_tok, SENSOR_DIMS).astype(jnp.float32))

    kernel = functools.partial(_bert_fused_kernel, batch=B, seq=S,
                               off_out_w=off_out_w, off_layer0=off_layer0)
    # Single invocation (no grid): both inputs are whole-array VMEM blocks,
    # so there are exactly 2 input DMAs and 1 output DMA.
    out = pl.pallas_call(
        kernel,
        out_shape=jax.ShapeDtypeStruct((n_tok, SENSOR_DIMS), jnp.float32),
    )(x2d, slab)
    return out.reshape(B, S, SENSOR_DIMS)


# ------------------------------ parameters -------------------------------------
def init_params(key):
    """Human-readable params mirroring the PyTorch module.  nn.Linear weights
    (out, in) are stored pre-transposed as (in, out)."""
    keys = iter(jax.random.split(key, 8 + 16 * NUM_LAYERS))

    def w(shape):
        return 0.02 * jax.random.normal(next(keys), shape, jnp.float32)

    def zeros(n):
        return jnp.zeros((n,), jnp.float32)

    def ones(n):
        return jnp.ones((n,), jnp.float32)

    params = {
        "emb_w": w((SENSOR_DIMS, HIDDEN)),   # word_embeddings replaced by Linear
        "emb_b": zeros(HIDDEN),
        "pos_emb": w((MAX_POS, HIDDEN)),
        "tok_emb": w((2, HIDDEN)),           # only token_type 0 is used
        "emb_ln_g": ones(HIDDEN), "emb_ln_b": zeros(HIDDEN),
        "out_w": w((HIDDEN, SENSOR_DIMS)),   # output_layer
        "out_b": zeros(SENSOR_DIMS),
        "layers": [],
    }
    for _ in range(NUM_LAYERS):
        params["layers"].append({
            "q_w": w((HIDDEN, HIDDEN)), "q_b": zeros(HIDDEN),
            "k_w": w((HIDDEN, HIDDEN)), "k_b": zeros(HIDDEN),
            "v_w": w((HIDDEN, HIDDEN)), "v_b": zeros(HIDDEN),
            "ao_w": w((HIDDEN, HIDDEN)), "ao_b": zeros(HIDDEN),
            "attn_ln_g": ones(HIDDEN), "attn_ln_b": zeros(HIDDEN),
            "i_w": w((HIDDEN, INTERMEDIATE)), "i_b": zeros(INTERMEDIATE),
            "o_w": w((INTERMEDIATE, HIDDEN)), "o_b": zeros(HIDDEN),
            "out_ln_g": ones(HIDDEN), "out_ln_b": zeros(HIDDEN),
        })
    return params


def pack_params(params, batch, seq):
    """One-time host-side repack of ALL weights into a single lane-dense
    (rows, 128) f32 slab at 8-row-aligned offsets (one contiguous DMA)."""
    assert seq <= MAX_POS
    n_tok = batch * seq
    off_out_w, off_layer0, total = _slab_layout(n_tok)
    slab = np.zeros((total, _LANES), np.float32)

    def put(r0, arr):
        a = np.asarray(arr, np.float32)
        if a.ndim == 1:
            a = a[None, :]
        slab[r0:r0 + a.shape[0], :a.shape[1]] = a

    put(_OFF_EMB_W, params["emb_w"])                       # (3, 32) in an 8-row block
    put(_R_EMB_B, params["emb_b"])
    put(_R_EMB_LN_G, params["emb_ln_g"])
    put(_R_EMB_LN_B, params["emb_ln_b"])
    put(_R_OUT_B, params["out_b"])
    # position + token_type(0) embeddings: pre-summed and pre-broadcast per token
    pe = np.asarray(params["pos_emb"])[:seq] + np.asarray(params["tok_emb"])[0][None, :]
    put(_OFF_PE, np.tile(pe, (batch, 1)))                  # (n_tok, 32)
    put(off_out_w, params["out_w"])                        # (32, 3)

    for l, lyr in enumerate(params["layers"]):
        base = off_layer0 + l * _ROWS_PER_LAYER
        put(base + _L_QKV_W, np.concatenate(
            [np.asarray(lyr["q_w"]), np.asarray(lyr["k_w"]), np.asarray(lyr["v_w"])],
            axis=1))                                        # (32, 96) fused QKV weight
        put(base + _L_AO_W, lyr["ao_w"])
        put(base + _L_I_W, lyr["i_w"])
        put(base + _L_O_W, lyr["o_w"])
        lv = base + _L_VEC
        put(lv + 0, np.concatenate([np.asarray(lyr["q_b"]),
                                    np.asarray(lyr["k_b"]),
                                    np.asarray(lyr["v_b"])]))   # (96,) fused QKV bias
        put(lv + 1, lyr["ao_b"])
        put(lv + 2, lyr["attn_ln_g"])
        put(lv + 3, lyr["attn_ln_b"])
        put(lv + 4, lyr["i_b"])
        put(lv + 5, lyr["o_b"])
        put(lv + 6, lyr["out_ln_g"])
        put(lv + 7, lyr["out_ln_b"])

    return jnp.asarray(slab)


# ---------------------------------- main ----------------------------------------
if __name__ == "__main__":
    key = jax.random.PRNGKey(0)
    pkey, xkey = jax.random.split(key)
    params = init_params(pkey)

    B, S = 2, 8
    x = jax.random.normal(xkey, (B, S, SENSOR_DIMS), jnp.float32)

    slab = pack_params(params, batch=B, seq=S)   # one-time host-side weight repack
    fwd = jax.jit(bert_model_custom2)
    out = fwd(slab, x)
    jax.block_until_ready(out)

    assert out.shape == (B, S, SENSOR_DIMS) and out.dtype == jnp.float32
    assert bool(jnp.all(jnp.isfinite(out)))
    print("KERNEL_OK")
</pallas_src>

<mosaic_0001>
module attributes {stable_mosaic.version = 11 : i64} {
  func.func @_bert_fused_kernel(%arg0: memref<16x8xf32, #tpu.memory_space<vmem>>, %arg1: memref<400x128xf32, #tpu.memory_space<vmem>>, %arg2: memref<16x3xf32, #tpu.memory_space<vmem>>) attributes {dimension_semantics = [], scalar_prefetch = 0 : i64, scratch_operands = 0 : i64, tpu.core_type = #tpu.core_type<tc>} {
    %c0 = arith.constant 0 : index
    %c0_0 = arith.constant 0 : index
    %0 = vector.load %arg0[%c0, %c0_0] : memref<16x8xf32, #tpu.memory_space<vmem>>, vector<16x8xf32>
    %c0_1 = arith.constant 0 : index
    %c0_2 = arith.constant 0 : index
    %1 = vector.load %arg1[%c0_1, %c0_2] : memref<400x128xf32, #tpu.memory_space<vmem>>, vector<8x32xf32>
    %c8 = arith.constant 8 : index
    %c0_3 = arith.constant 0 : index
    %2 = vector.load %arg1[%c8, %c0_3] : memref<400x128xf32, #tpu.memory_space<vmem>>, vector<1x32xf32>
    %cst = arith.constant dense<0.000000e+00> : vector<16x32xf32>
    %3 = tpu.matmul %0, %1, %cst {dimension_numbers = #tpu.dot_dimension_numbers<[1], [0], [0], [1], [0, 0, 1, 1], [], []>} : vector<16x8xf32>, vector<8x32xf32>, vector<16x32xf32> -> vector<16x32xf32>
    %4 = vector.broadcast %2 : vector<1x32xf32> to vector<16x32xf32>
    %5 = arith.addf %3, %4 : vector<16x32xf32>
    %c16 = arith.constant 16 : index
    %c0_4 = arith.constant 0 : index
    %6 = vector.load %arg1[%c16, %c0_4] : memref<400x128xf32, #tpu.memory_space<vmem>>, vector<16x32xf32>
    %7 = arith.addf %5, %6 : vector<16x32xf32>
    %cst_5 = arith.constant dense<0.000000e+00> : vector<16xf32>
    %8 = vector.multi_reduction <add>, %7, %cst_5 [1] : vector<16x32xf32> to vector<16xf32>
    %9 = vector.shape_cast %8 : vector<16xf32> to vector<16x1xf32>
    %cst_6 = arith.constant 3.200000e+01 : f32
    %10 = vector.broadcast %cst_6 : f32 to vector<16x1xf32>
    %11 = arith.divf %9, %10 : vector<16x1xf32>
    %12 = arith.mulf %7, %7 : vector<16x32xf32>
    %cst_7 = arith.constant dense<0.000000e+00> : vector<16xf32>
    %13 = vector.multi_reduction <add>, %12, %cst_7 [1] : vector<16x32xf32> to vector<16xf32>
    %14 = vector.shape_cast %13 : vector<16xf32> to vector<16x1xf32>
    %cst_8 = arith.constant 3.200000e+01 : f32
    %15 = vector.broadcast %cst_8 : f32 to vector<16x1xf32>
    %16 = arith.divf %14, %15 : vector<16x1xf32>
    %17 = arith.mulf %11, %11 : vector<16x1xf32>
    %18 = arith.subf %16, %17 : vector<16x1xf32>
    %cst_9 = arith.constant 0.000000e+00 : f32
    %19 = vector.broadcast %cst_9 : f32 to vector<16x1xf32>
    %20 = arith.maximumf %18, %19 : vector<16x1xf32>
    %21 = vector.broadcast %11 : vector<16x1xf32> to vector<16x32xf32>
    %22 = arith.subf %7, %21 : vector<16x32xf32>
    %cst_10 = arith.constant 9.99999996E-13 : f32
    %23 = vector.broadcast %cst_10 : f32 to vector<16x1xf32>
    %24 = arith.addf %20, %23 : vector<16x1xf32>
    %25 = math.rsqrt %24 : vector<16x1xf32>
    %26 = vector.broadcast %25 : vector<16x1xf32> to vector<16x32xf32>
    %27 = arith.mulf %22, %26 : vector<16x32xf32>
    %c9 = arith.constant 9 : index
    %c0_11 = arith.constant 0 : index
    %28 = vector.load %arg1[%c9, %c0_11] : memref<400x128xf32, #tpu.memory_space<vmem>>, vector<1x32xf32>
    %29 = vector.broadcast %28 : vector<1x32xf32> to vector<16x32xf32>
    %30 = arith.mulf %27, %29 : vector<16x32xf32>
    %c10 = arith.constant 10 : index
    %c0_12 = arith.constant 0 : index
    %31 = vector.load %arg1[%c10, %c0_12] : memref<400x128xf32, #tpu.memory_space<vmem>>, vector<1x32xf32>
    %32 = vector.broadcast %31 : vector<1x32xf32> to vector<16x32xf32>
    %33 = arith.addf %30, %32 : vector<16x32xf32>
    %c64 = arith.constant 64 : index
    %c0_13 = arith.constant 0 : index
    %34 = vector.load %arg1[%c64, %c0_13] : memref<400x128xf32, #tpu.memory_space<vmem>>, vector<32x96xf32>
    %c224 = arith.constant 224 : index
    %c0_14 = arith.constant 0 : index
    %35 = vector.load %arg1[%c224, %c0_14] : memref<400x128xf32, #tpu.memory_space<vmem>>, vector<1x96xf32>
    %cst_15 = arith.constant dense<0.000000e+00> : vector<16x96xf32>
    %36 = tpu.matmul %33, %34, %cst_15 {dimension_numbers = #tpu.dot_dimension_numbers<[1], [0], [0], [1], [0, 0, 1, 1], [], []>} : vector<16x32xf32>, vector<32x96xf32>, vector<16x96xf32> -> vector<16x96xf32>
    %37 = vector.broadcast %35 : vector<1x96xf32> to vector<16x96xf32>
    %38 = arith.addf %36, %37 : vector<16x96xf32>
    %39 = vector.extract_strided_slice %38 {offsets = [0, 0], sizes = [16, 32], strides = [1, 1]} : vector<16x96xf32> to vector<16x32xf32>
    %40 = vector.extract_strided_slice %39 {offsets = [0, 0], sizes = [16, 8], strides = [1, 1]} : vector<16x32xf32> to vector<16x8xf32>
    %41 = vector.shape_cast %40 : vector<16x8xf32> to vector<1x16x8xf32>
    %42 = vector.extract_strided_slice %39 {offsets = [0, 8], sizes = [16, 8], strides = [1, 1]} : vector<16x32xf32> to vector<16x8xf32>
    %43 = vector.shape_cast %42 : vector<16x8xf32> to vector<1x16x8xf32>
    %44 = vector.extract_strided_slice %39 {offsets = [0, 16], sizes = [16, 8], strides = [1, 1]} : vector<16x32xf32> to vector<16x8xf32>
    %45 = vector.shape_cast %44 : vector<16x8xf32> to vector<1x16x8xf32>
    %46 = vector.extract_strided_slice %39 {offsets = [0, 24], sizes = [16, 8], strides = [1, 1]} : vector<16x32xf32> to vector<16x8xf32>
    %47 = vector.shape_cast %46 : vector<16x8xf32> to vector<1x16x8xf32>
    %48 = tpu.concatenate %41, %43, %45, %47 in 0 : vector<1x16x8xf32>, vector<1x16x8xf32>, vector<1x16x8xf32>, vector<1x16x8xf32> -> vector<4x16x8xf32>
    %49 = vector.shape_cast %48 : vector<4x16x8xf32> to vector<8x8x8xf32>
    %50 = vector.extract_strided_slice %38 {offsets = [0, 32], sizes = [16, 32], strides = [1, 1]} : vector<16x96xf32> to vector<16x32xf32>
    %51 = vector.extract_strided_slice %50 {offsets = [0, 0], sizes = [16, 8], strides = [1, 1]} : vector<16x32xf32> to vector<16x8xf32>
    %52 = vector.shape_cast %51 : vector<16x8xf32> to vector<1x16x8xf32>
    %53 = vector.extract_strided_slice %50 {offsets = [0, 8], sizes = [16, 8], strides = [1, 1]} : vector<16x32xf32> to vector<16x8xf32>
    %54 = vector.shape_cast %53 : vector<16x8xf32> to vector<1x16x8xf32>
    %55 = vector.extract_strided_slice %50 {offsets = [0, 16], sizes = [16, 8], strides = [1, 1]} : vector<16x32xf32> to vector<16x8xf32>
    %56 = vector.shape_cast %55 : vector<16x8xf32> to vector<1x16x8xf32>
    %57 = vector.extract_strided_slice %50 {offsets = [0, 24], sizes = [16, 8], strides = [1, 1]} : vector<16x32xf32> to vector<16x8xf32>
    %58 = vector.shape_cast %57 : vector<16x8xf32> to vector<1x16x8xf32>
    %59 = tpu.concatenate %52, %54, %56, %58 in 0 : vector<1x16x8xf32>, vector<1x16x8xf32>, vector<1x16x8xf32>, vector<1x16x8xf32> -> vector<4x16x8xf32>
    %60 = vector.shape_cast %59 : vector<4x16x8xf32> to vector<8x8x8xf32>
    %61 = vector.extract_strided_slice %38 {offsets = [0, 64], sizes = [16, 32], strides = [1, 1]} : vector<16x96xf32> to vector<16x32xf32>
    %62 = vector.extract_strided_slice %61 {offsets = [0, 0], sizes = [16, 8], strides = [1, 1]} : vector<16x32xf32> to vector<16x8xf32>
    %63 = vector.shape_cast %62 : vector<16x8xf32> to vector<1x16x8xf32>
    %64 = vector.extract_strided_slice %61 {offsets = [0, 8], sizes = [16, 8], strides = [1, 1]} : vector<16x32xf32> to vector<16x8xf32>
    %65 = vector.shape_cast %64 : vector<16x8xf32> to vector<1x16x8xf32>
    %66 = vector.extract_strided_slice %61 {offsets = [0, 16], sizes = [16, 8], strides = [1, 1]} : vector<16x32xf32> to vector<16x8xf32>
    %67 = vector.shape_cast %66 : vector<16x8xf32> to vector<1x16x8xf32>
    %68 = vector.extract_strided_slice %61 {offsets = [0, 24], sizes = [16, 8], strides = [1, 1]} : vector<16x32xf32> to vector<16x8xf32>
    %69 = vector.shape_cast %68 : vector<16x8xf32> to vector<1x16x8xf32>
    %70 = tpu.concatenate %63, %65, %67, %69 in 0 : vector<1x16x8xf32>, vector<1x16x8xf32>, vector<1x16x8xf32>, vector<1x16x8xf32> -> vector<4x16x8xf32>
    %71 = vector.shape_cast %70 : vector<4x16x8xf32> to vector<8x8x8xf32>
    "tpu.trace_start"() <{level = 10 : i32, message = "bqd,bkd->bqk"}> : () -> ()
    %cst_16 = arith.constant dense<0.000000e+00> : vector<8x8x8xf32>
    %72 = tpu.matmul %49, %60, %cst_16 {dimension_numbers = #tpu.dot_dimension_numbers<[2], [2], [1], [1], [0, 0, 0, 1, 1, 1], [0], [0]>} : vector<8x8x8xf32>, vector<8x8x8xf32>, vector<8x8x8xf32> -> vector<8x8x8xf32>
    "tpu.trace_stop"() : () -> ()
    %cst_17 = arith.constant 0.353553385 : f32
    %73 = vector.broadcast %cst_17 : f32 to vector<8x8x8xf32>
    %74 = arith.mulf %72, %73 : vector<8x8x8xf32>
    %cst_18 = arith.constant dense<0xFF800000> : vector<8x8xf32>
    %75 = vector.multi_reduction <maximumf>, %74, %cst_18 [2] : vector<8x8x8xf32> to vector<8x8xf32>
    %76 = vector.shape_cast %75 : vector<8x8xf32> to vector<8x8x1xf32>
    %77 = vector.broadcast %76 : vector<8x8x1xf32> to vector<8x8x8xf32>
    %78 = arith.subf %74, %77 : vector<8x8x8xf32>
    %79 = math.exp %78 : vector<8x8x8xf32>
    %cst_19 = arith.constant dense<0.000000e+00> : vector<8x8xf32>
    %80 = vector.multi_reduction <add>, %79, %cst_19 [2] : vector<8x8x8xf32> to vector<8x8xf32>
    %81 = vector.shape_cast %80 : vector<8x8xf32> to vector<8x8x1xf32>
    %82 = vector.broadcast %81 : vector<8x8x1xf32> to vector<8x8x8xf32>
    %83 = arith.divf %79, %82 : vector<8x8x8xf32>
    "tpu.trace_start"() <{level = 10 : i32, message = "bqk,bkd->bqd"}> : () -> ()
    %cst_20 = arith.constant dense<0.000000e+00> : vector<8x8x8xf32>
    %84 = tpu.matmul %83, %71, %cst_20 {dimension_numbers = #tpu.dot_dimension_numbers<[2], [1], [1], [2], [0, 0, 0, 1, 1, 2], [0], [0]>} : vector<8x8x8xf32>, vector<8x8x8xf32>, vector<8x8x8xf32> -> vector<8x8x8xf32>
    "tpu.trace_stop"() : () -> ()
    %85 = vector.shape_cast %84 : vector<8x8x8xf32> to vector<4x16x8xf32>
    %86 = vector.extract_strided_slice %85 {offsets = [0, 0, 0], sizes = [1, 16, 8], strides = [1, 1, 1]} : vector<4x16x8xf32> to vector<1x16x8xf32>
    %87 = vector.shape_cast %86 : vector<1x16x8xf32> to vector<16x8xf32>
    %88 = vector.extract_strided_slice %85 {offsets = [1, 0, 0], sizes = [1, 16, 8], strides = [1, 1, 1]} : vector<4x16x8xf32> to vector<1x16x8xf32>
    %89 = vector.shape_cast %88 : vector<1x16x8xf32> to vector<16x8xf32>
    %90 = vector.extract_strided_slice %85 {offsets = [2, 0, 0], sizes = [1, 16, 8], strides = [1, 1, 1]} : vector<4x16x8xf32> to vector<1x16x8xf32>
    %91 = vector.shape_cast %90 : vector<1x16x8xf32> to vector<16x8xf32>
    %92 = vector.extract_strided_slice %85 {offsets = [3, 0, 0], sizes = [1, 16, 8], strides = [1, 1, 1]} : vector<4x16x8xf32> to vector<1x16x8xf32>
    %93 = vector.shape_cast %92 : vector<1x16x8xf32> to vector<16x8xf32>
    %94 = tpu.concatenate %87, %89, %91, %93 in 1 : vector<16x8xf32>, vector<16x8xf32>, vector<16x8xf32>, vector<16x8xf32> -> vector<16x32xf32>
    %c96 = arith.constant 96 : index
    %c0_21 = arith.constant 0 : index
    %95 = vector.load %arg1[%c96, %c0_21] : memref<400x128xf32, #tpu.memory_space<vmem>>, vector<32x32xf32>
    %c225 = arith.constant 225 : index
    %c0_22 = arith.constant 0 : index
    %96 = vector.load %arg1[%c225, %c0_22] : memref<400x128xf32, #tpu.memory_space<vmem>>, vector<1x32xf32>
    %cst_23 = arith.constant dense<0.000000e+00> : vector<16x32xf32>
    %97 = tpu.matmul %94, %95, %cst_23 {dimension_numbers = #tpu.dot_dimension_numbers<[1], [0], [0], [1], [0, 0, 1, 1], [], []>} : vector<16x32xf32>, vector<32x32xf32>, vector<16x32xf32> -> vector<16x32xf32>
    %98 = vector.broadcast %96 : vector<1x32xf32> to vector<16x32xf32>
    %99 = arith.addf %97, %98 : vector<16x32xf32>
    %100 = arith.addf %99, %33 : vector<16x32xf32>
    %cst_24 = arith.constant dense<0.000000e+00> : vector<16xf32>
    %101 = vector.multi_reduction <add>, %100, %cst_24 [1] : vector<16x32xf32> to vector<16xf32>
    %102 = vector.shape_cast %101 : vector<16xf32> to vector<16x1xf32>
    %cst_25 = arith.constant 3.200000e+01 : f32
    %103 = vector.broadcast %cst_25 : f32 to vector<16x1xf32>
    %104 = arith.divf %102, %103 : vector<16x1xf32>
    %105 = arith.mulf %100, %100 : vector<16x32xf32>
    %cst_26 = arith.constant dense<0.000000e+00> : vector<16xf32>
    %106 = vector.multi_reduction <add>, %105, %cst_26 [1] : vector<16x32xf32> to vector<16xf32>
    %107 = vector.shape_cast %106 : vector<16xf32> to vector<16x1xf32>
    %cst_27 = arith.constant 3.200000e+01 : f32
    %108 = vector.broadcast %cst_27 : f32 to vector<16x1xf32>
    %109 = arith.divf %107, %108 : vector<16x1xf32>
    %110 = arith.mulf %104, %104 : vector<16x1xf32>
    %111 = arith.subf %109, %110 : vector<16x1xf32>
    %cst_28 = arith.constant 0.000000e+00 : f32
    %112 = vector.broadcast %cst_28 : f32 to vector<16x1xf32>
    %113 = arith.maximumf %111, %112 : vector<16x1xf32>
    %114 = vector.broadcast %104 : vector<16x1xf32> to vector<16x32xf32>
    %115 = arith.subf %100, %114 : vector<16x32xf32>
    %cst_29 = arith.constant 9.99999996E-13 : f32
    %116 = vector.broadcast %cst_29 : f32 to vector<16x1xf32>
    %117 = arith.addf %113, %116 : vector<16x1xf32>
    %118 = math.rsqrt %117 : vector<16x1xf32>
    %119 = vector.broadcast %118 : vector<16x1xf32> to vector<16x32xf32>
    %120 = arith.mulf %115, %119 : vector<16x32xf32>
    %c226 = arith.constant 226 : index
    %c0_30 = arith.constant 0 : index
    %121 = vector.load %arg1[%c226, %c0_30] : memref<400x128xf32, #tpu.memory_space<vmem>>, vector<1x32xf32>
    %122 = vector.broadcast %121 : vector<1x32xf32> to vector<16x32xf32>
    %123 = arith.mulf %120, %122 : vector<16x32xf32>
    %c227 = arith.constant 227 : index
    %c0_31 = arith.constant 0 : index
    %124 = vector.load %arg1[%c227, %c0_31] : memref<400x128xf32, #tpu.memory_space<vmem>>, vector<1x32xf32>
    %125 = vector.broadcast %124 : vector<1x32xf32> to vector<16x32xf32>
    %126 = arith.addf %123, %125 : vector<16x32xf32>
    %c128 = arith.constant 128 : index
    %c0_32 = arith.constant 0 : index
    %127 = vector.load %arg1[%c128, %c0_32] : memref<400x128xf32, #tpu.memory_space<vmem>>, vector<32x64xf32>
    %c228 = arith.constant 228 : index
    %c0_33 = arith.constant 0 : index
    %128 = vector.load %arg1[%c228, %c0_33] : memref<400x128xf32, #tpu.memory_space<vmem>>, vector<1x64xf32>
    %cst_34 = arith.constant dense<0.000000e+00> : vector<16x64xf32>
    %129 = tpu.matmul %126, %127, %cst_34 {dimension_numbers = #tpu.dot_dimension_numbers<[1], [0], [0], [1], [0, 0, 1, 1], [], []>} : vector<16x32xf32>, vector<32x64xf32>, vector<16x64xf32> -> vector<16x64xf32>
    %130 = vector.broadcast %128 : vector<1x64xf32> to vector<16x64xf32>
    %131 = arith.addf %129, %130 : vector<16x64xf32>
    %cst_35 = arith.constant 0.707106769 : f32
    %132 = vector.broadcast %cst_35 : f32 to vector<16x64xf32>
    %133 = arith.mulf %131, %132 : vector<16x64xf32>
    %cst_36 = arith.constant 0.000000e+00 : f32
    %134 = vector.broadcast %cst_36 : f32 to vector<16x64xf32>
    %135 = arith.cmpf oge, %133, %134 : vector<16x64xf32>
    %cst_37 = arith.constant 0.000000e+00 : f32
    %136 = vector.broadcast %cst_37 : f32 to vector<16x64xf32>
    %137 = arith.subf %136, %133 : vector<16x64xf32>
    %138 = arith.select %135, %133, %137 : vector<16x64xi1>, vector<16x64xf32>
    %cst_38 = arith.constant 0.327591091 : f32
    %139 = vector.broadcast %cst_38 : f32 to vector<16x64xf32>
    %140 = arith.mulf %139, %138 : vector<16x64xf32>
    %cst_39 = arith.constant 1.000000e+00 : f32
    %141 = vector.broadcast %cst_39 : f32 to vector<16x64xf32>
    %142 = arith.addf %141, %140 : vector<16x64xf32>
    %cst_40 = arith.constant 1.000000e+00 : f32
    %143 = vector.broadcast %cst_40 : f32 to vector<16x64xf32>
    %144 = arith.divf %143, %142 : vector<16x64xf32>
    %cst_41 = arith.constant 1.06140542 : f32
    %145 = vector.broadcast %cst_41 : f32 to vector<16x64xf32>
    %146 = arith.mulf %144, %145 : vector<16x64xf32>
    %cst_42 = arith.constant -1.45315206 : f32
    %147 = vector.broadcast %cst_42 : f32 to vector<16x64xf32>
    %148 = arith.addf %147, %146 : vector<16x64xf32>
    %149 = arith.mulf %144, %148 : vector<16x64xf32>
    %cst_43 = arith.constant 1.42141378 : f32
    %150 = vector.broadcast %cst_43 : f32 to vector<16x64xf32>
    %151 = arith.addf %150, %149 : vector<16x64xf32>
    %152 = arith.mulf %144, %151 : vector<16x64xf32>
    %cst_44 = arith.constant -0.284496725 : f32
    %153 = vector.broadcast %cst_44 : f32 to vector<16x64xf32>
    %154 = arith.addf %153, %152 : vector<16x64xf32>
    %155 = arith.mulf %144, %154 : vector<16x64xf32>
    %cst_45 = arith.constant 0.254829586 : f32
    %156 = vector.broadcast %cst_45 : f32 to vector<16x64xf32>
    %157 = arith.addf %156, %155 : vector<16x64xf32>
    %158 = arith.mulf %144, %157 : vector<16x64xf32>
    %cst_46 = arith.constant 0.000000e+00 : f32
    %159 = vector.broadcast %cst_46 : f32 to vector<16x64xf32>
    %160 = arith.subf %159, %138 : vector<16x64xf32>
    %161 = arith.mulf %160, %138 : vector<16x64xf32>
    %162 = math.exp %161 : vector<16x64xf32>
    %163 = arith.mulf %158, %162 : vector<16x64xf32>
    %cst_47 = arith.constant 1.000000e+00 : f32
    %164 = vector.broadcast %cst_47 : f32 to vector<16x64xf32>
    %165 = arith.subf %164, %163 : vector<16x64xf32>
    %cst_48 = arith.constant 0.000000e+00 : f32
    %166 = vector.broadcast %cst_48 : f32 to vector<16x64xf32>
    %167 = arith.cmpf oge, %133, %166 : vector<16x64xf32>
    %cst_49 = arith.constant 0.000000e+00 : f32
    %168 = vector.broadcast %cst_49 : f32 to vector<16x64xf32>
    %169 = arith.subf %168, %165 : vector<16x64xf32>
    %170 = arith.select %167, %165, %169 : vector<16x64xi1>, vector<16x64xf32>
    %cst_50 = arith.constant 5.000000e-01 : f32
    %171 = vector.broadcast %cst_50 : f32 to vector<16x64xf32>
    %172 = arith.mulf %171, %131 : vector<16x64xf32>
    %cst_51 = arith.constant 1.000000e+00 : f32
    %173 = vector.broadcast %cst_51 : f32 to vector<16x64xf32>
    %174 = arith.addf %173, %170 : vector<16x64xf32>
    %175 = arith.mulf %172, %174 : vector<16x64xf32>
    %c160 = arith.constant 160 : index
    %c0_52 = arith.constant 0 : index
    %176 = vector.load %arg1[%c160, %c0_52] : memref<400x128xf32, #tpu.memory_space<vmem>>, vector<64x32xf32>
    %c229 = arith.constant 229 : index
    %c0_53 = arith.constant 0 : index
    %177 = vector.load %arg1[%c229, %c0_53] : memref<400x128xf32, #tpu.memory_space<vmem>>, vector<1x32xf32>
    %cst_54 = arith.constant dense<0.000000e+00> : vector<16x32xf32>
    %178 = tpu.matmul %175, %176, %cst_54 {dimension_numbers = #tpu.dot_dimension_numbers<[1], [0], [0], [1], [0, 0, 1, 1], [], []>} : vector<16x64xf32>, vector<64x32xf32>, vector<16x32xf32> -> vector<16x32xf32>
    %179 = vector.broadcast %177 : vector<1x32xf32> to vector<16x32xf32>
    %180 = arith.addf %178, %179 : vector<16x32xf32>
    %181 = arith.addf %180, %126 : vector<16x32xf32>
    %cst_55 = arith.constant dense<0.000000e+00> : vector<16xf32>
    %182 = vector.multi_reduction <add>, %181, %cst_55 [1] : vector<16x32xf32> to vector<16xf32>
    %183 = vector.shape_cast %182 : vector<16xf32> to vector<16x1xf32>
    %cst_56 = arith.constant 3.200000e+01 : f32
    %184 = vector.broadcast %cst_56 : f32 to vector<16x1xf32>
    %185 = arith.divf %183, %184 : vector<16x1xf32>
    %186 = arith.mulf %181, %181 : vector<16x32xf32>
    %cst_57 = arith.constant dense<0.000000e+00> : vector<16xf32>
    %187 = vector.multi_reduction <add>, %186, %cst_57 [1] : vector<16x32xf32> to vector<16xf32>
    %188 = vector.shape_cast %187 : vector<16xf32> to vector<16x1xf32>
    %cst_58 = arith.constant 3.200000e+01 : f32
    %189 = vector.broadcast %cst_58 : f32 to vector<16x1xf32>
    %190 = arith.divf %188, %189 : vector<16x1xf32>
    %191 = arith.mulf %185, %185 : vector<16x1xf32>
    %192 = arith.subf %190, %191 : vector<16x1xf32>
    %cst_59 = arith.constant 0.000000e+00 : f32
    %193 = vector.broadcast %cst_59 : f32 to vector<16x1xf32>
    %194 = arith.maximumf %192, %193 : vector<16x1xf32>
    %195 = vector.broadcast %185 : vector<16x1xf32> to vector<16x32xf32>
    %196 = arith.subf %181, %195 : vector<16x32xf32>
    %cst_60 = arith.constant 9.99999996E-13 : f32
    %197 = vector.broadcast %cst_60 : f32 to vector<16x1xf32>
    %198 = arith.addf %194, %197 : vector<16x1xf32>
    %199 = math.rsqrt %198 : vector<16x1xf32>
    %200 = vector.broadcast %199 : vector<16x1xf32> to vector<16x32xf32>
    %201 = arith.mulf %196, %200 : vector<16x32xf32>
    %c230 = arith.constant 230 : index
    %c0_61 = arith.constant 0 : index
    %202 = vector.load %arg1[%c230, %c0_61] : memref<400x128xf32, #tpu.memory_space<vmem>>, vector<1x32xf32>
    %203 = vector.broadcast %202 : vector<1x32xf32> to vector<16x32xf32>
    %204 = arith.mulf %201, %203 : vector<16x32xf32>
    %c231 = arith.constant 231 : index
    %c0_62 = arith.constant 0 : index
    %205 = vector.load %arg1[%c231, %c0_62] : memref<400x128xf32, #tpu.memory_space<vmem>>, vector<1x32xf32>
    %206 = vector.broadcast %205 : vector<1x32xf32> to vector<16x32xf32>
    %207 = arith.addf %204, %206 : vector<16x32xf32>
    %c232 = arith.constant 232 : index
    %c0_63 = arith.constant 0 : index
    %208 = vector.load %arg1[%c232, %c0_63] : memref<400x128xf32, #tpu.memory_space<vmem>>, vector<32x96xf32>
    %c392 = arith.constant 392 : index
    %c0_64 = arith.constant 0 : index
    %209 = vector.load %arg1[%c392, %c0_64] : memref<400x128xf32, #tpu.memory_space<vmem>>, vector<1x96xf32>
    %cst_65 = arith.constant dense<0.000000e+00> : vector<16x96xf32>
    %210 = tpu.matmul %207, %208, %cst_65 {dimension_numbers = #tpu.dot_dimension_numbers<[1], [0], [0], [1], [0, 0, 1, 1], [], []>} : vector<16x32xf32>, vector<32x96xf32>, vector<16x96xf32> -> vector<16x96xf32>
    %211 = vector.broadcast %209 : vector<1x96xf32> to vector<16x96xf32>
    %212 = arith.addf %210, %211 : vector<16x96xf32>
    %213 = vector.extract_strided_slice %212 {offsets = [0, 0], sizes = [16, 32], strides = [1, 1]} : vector<16x96xf32> to vector<16x32xf32>
    %214 = vector.extract_strided_slice %213 {offsets = [0, 0], sizes = [16, 8], strides = [1, 1]} : vector<16x32xf32> to vector<16x8xf32>
    %215 = vector.shape_cast %214 : vector<16x8xf32> to vector<1x16x8xf32>
    %216 = vector.extract_strided_slice %213 {offsets = [0, 8], sizes = [16, 8], strides = [1, 1]} : vector<16x32xf32> to vector<16x8xf32>
    %217 = vector.shape_cast %216 : vector<16x8xf32> to vector<1x16x8xf32>
    %218 = vector.extract_strided_slice %213 {offsets = [0, 16], sizes = [16, 8], strides = [1, 1]} : vector<16x32xf32> to vector<16x8xf32>
    %219 = vector.shape_cast %218 : vector<16x8xf32> to vector<1x16x8xf32>
    %220 = vector.extract_strided_slice %213 {offsets = [0, 24], sizes = [16, 8], strides = [1, 1]} : vector<16x32xf32> to vector<16x8xf32>
    %221 = vector.shape_cast %220 : vector<16x8xf32> to vector<1x16x8xf32>
    %222 = tpu.concatenate %215, %217, %219, %221 in 0 : vector<1x16x8xf32>, vector<1x16x8xf32>, vector<1x16x8xf32>, vector<1x16x8xf32> -> vector<4x16x8xf32>
    %223 = vector.shape_cast %222 : vector<4x16x8xf32> to vector<8x8x8xf32>
    %224 = vector.extract_strided_slice %212 {offsets = [0, 32], sizes = [16, 32], strides = [1, 1]} : vector<16x96xf32> to vector<16x32xf32>
    %225 = vector.extract_strided_slice %224 {offsets = [0, 0], sizes = [16, 8], strides = [1, 1]} : vector<16x32xf32> to vector<16x8xf32>
    %226 = vector.shape_cast %225 : vector<16x8xf32> to vector<1x16x8xf32>
    %227 = vector.extract_strided_slice %224 {offsets = [0, 8], sizes = [16, 8], strides = [1, 1]} : vector<16x32xf32> to vector<16x8xf32>
    %228 = vector.shape_cast %227 : vector<16x8xf32> to vector<1x16x8xf32>
    %229 = vector.extract_strided_slice %224 {offsets = [0, 16], sizes = [16, 8], strides = [1, 1]} : vector<16x32xf32> to vector<16x8xf32>
    %230 = vector.shape_cast %229 : vector<16x8xf32> to vector<1x16x8xf32>
    %231 = vector.extract_strided_slice %224 {offsets = [0, 24], sizes = [16, 8], strides = [1, 1]} : vector<16x32xf32> to vector<16x8xf32>
    %232 = vector.shape_cast %231 : vector<16x8xf32> to vector<1x16x8xf32>
    %233 = tpu.concatenate %226, %228, %230, %232 in 0 : vector<1x16x8xf32>, vector<1x16x8xf32>, vector<1x16x8xf32>, vector<1x16x8xf32> -> vector<4x16x8xf32>
    %234 = vector.shape_cast %233 : vector<4x16x8xf32> to vector<8x8x8xf32>
    %235 = vector.extract_strided_slice %212 {offsets = [0, 64], sizes = [16, 32], strides = [1, 1]} : vector<16x96xf32> to vector<16x32xf32>
    %236 = vector.extract_strided_slice %235 {offsets = [0, 0], sizes = [16, 8], strides = [1, 1]} : vector<16x32xf32> to vector<16x8xf32>
    %237 = vector.shape_cast %236 : vector<16x8xf32> to vector<1x16x8xf32>
    %238 = vector.extract_strided_slice %235 {offsets = [0, 8], sizes = [16, 8], strides = [1, 1]} : vector<16x32xf32> to vector<16x8xf32>
    %239 = vector.shape_cast %238 : vector<16x8xf32> to vector<1x16x8xf32>
    %240 = vector.extract_strided_slice %235 {offsets = [0, 16], sizes = [16, 8], strides = [1, 1]} : vector<16x32xf32> to vector<16x8xf32>
    %241 = vector.shape_cast %240 : vector<16x8xf32> to vector<1x16x8xf32>
    %242 = vector.extract_strided_slice %235 {offsets = [0, 24], sizes = [16, 8], strides = [1, 1]} : vector<16x32xf32> to vector<16x8xf32>
    %243 = vector.shape_cast %242 : vector<16x8xf32> to vector<1x16x8xf32>
    %244 = tpu.concatenate %237, %239, %241, %243 in 0 : vector<1x16x8xf32>, vector<1x16x8xf32>, vector<1x16x8xf32>, vector<1x16x8xf32> -> vector<4x16x8xf32>
    %245 = vector.shape_cast %244 : vector<4x16x8xf32> to vector<8x8x8xf32>
    "tpu.trace_start"() <{level = 10 : i32, message = "bqd,bkd->bqk"}> : () -> ()
    %cst_66 = arith.constant dense<0.000000e+00> : vector<8x8x8xf32>
    %246 = tpu.matmul %223, %234, %cst_66 {dimension_numbers = #tpu.dot_dimension_numbers<[2], [2], [1], [1], [0, 0, 0, 1, 1, 1], [0], [0]>} : vector<8x8x8xf32>, vector<8x8x8xf32>, vector<8x8x8xf32> -> vector<8x8x8xf32>
    "tpu.trace_stop"() : () -> ()
    %cst_67 = arith.constant 0.353553385 : f32
    %247 = vector.broadcast %cst_67 : f32 to vector<8x8x8xf32>
    %248 = arith.mulf %246, %247 : vector<8x8x8xf32>
    %cst_68 = arith.constant dense<0xFF800000> : vector<8x8xf32>
    %249 = vector.multi_reduction <maximumf>, %248, %cst_68 [2] : vector<8x8x8xf32> to vector<8x8xf32>
    %250 = vector.shape_cast %249 : vector<8x8xf32> to vector<8x8x1xf32>
    %251 = vector.broadcast %250 : vector<8x8x1xf32> to vector<8x8x8xf32>
    %252 = arith.subf %248, %251 : vector<8x8x8xf32>
    %253 = math.exp %252 : vector<8x8x8xf32>
    %cst_69 = arith.constant dense<0.000000e+00> : vector<8x8xf32>
    %254 = vector.multi_reduction <add>, %253, %cst_69 [2] : vector<8x8x8xf32> to vector<8x8xf32>
    %255 = vector.shape_cast %254 : vector<8x8xf32> to vector<8x8x1xf32>
    %256 = vector.broadcast %255 : vector<8x8x1xf32> to vector<8x8x8xf32>
    %257 = arith.divf %253, %256 : vector<8x8x8xf32>
    "tpu.trace_start"() <{level = 10 : i32, message = "bqk,bkd->bqd"}> : () -> ()
    %cst_70 = arith.constant dense<0.000000e+00> : vector<8x8x8xf32>
    %258 = tpu.matmul %257, %245, %cst_70 {dimension_numbers = #tpu.dot_dimension_numbers<[2], [1], [1], [2], [0, 0, 0, 1, 1, 2], [0], [0]>} : vector<8x8x8xf32>, vector<8x8x8xf32>, vector<8x8x8xf32> -> vector<8x8x8xf32>
    "tpu.trace_stop"() : () -> ()
    %259 = vector.shape_cast %258 : vector<8x8x8xf32> to vector<4x16x8xf32>
    %260 = vector.extract_strided_slice %259 {offsets = [0, 0, 0], sizes = [1, 16, 8], strides = [1, 1, 1]} : vector<4x16x8xf32> to vector<1x16x8xf32>
    %261 = vector.shape_cast %260 : vector<1x16x8xf32> to vector<16x8xf32>
    %262 = vector.extract_strided_slice %259 {offsets = [1, 0, 0], sizes = [1, 16, 8], strides = [1, 1, 1]} : vector<4x16x8xf32> to vector<1x16x8xf32>
    %263 = vector.shape_cast %262 : vector<1x16x8xf32> to vector<16x8xf32>
    %264 = vector.extract_strided_slice %259 {offsets = [2, 0, 0], sizes = [1, 16, 8], strides = [1, 1, 1]} : vector<4x16x8xf32> to vector<1x16x8xf32>
    %265 = vector.shape_cast %264 : vector<1x16x8xf32> to vector<16x8xf32>
    %266 = vector.extract_strided_slice %259 {offsets = [3, 0, 0], sizes = [1, 16, 8], strides = [1, 1, 1]} : vector<4x16x8xf32> to vector<1x16x8xf32>
    %267 = vector.shape_cast %266 : vector<1x16x8xf32> to vector<16x8xf32>
    %268 = tpu.concatenate %261, %263, %265, %267 in 1 : vector<16x8xf32>, vector<16x8xf32>, vector<16x8xf32>, vector<16x8xf32> -> vector<16x32xf32>
    %c264 = arith.constant 264 : index
    %c0_71 = arith.constant 0 : index
    %269 = vector.load %arg1[%c264, %c0_71] : memref<400x128xf32, #tpu.memory_space<vmem>>, vector<32x32xf32>
    %c393 = arith.constant 393 : index
    %c0_72 = arith.constant 0 : index
    %270 = vector.load %arg1[%c393, %c0_72] : memref<400x128xf32, #tpu.memory_space<vmem>>, vector<1x32xf32>
    %cst_73 = arith.constant dense<0.000000e+00> : vector<16x32xf32>
    %271 = tpu.matmul %268, %269, %cst_73 {dimension_numbers = #tpu.dot_dimension_numbers<[1], [0], [0], [1], [0, 0, 1, 1], [], []>} : vector<16x32xf32>, vector<32x32xf32>, vector<16x32xf32> -> vector<16x32xf32>
    %272 = vector.broadcast %270 : vector<1x32xf32> to vector<16x32xf32>
    %273 = arith.addf %271, %272 : vector<16x32xf32>
    %274 = arith.addf %273, %207 : vector<16x32xf32>
    %cst_74 = arith.constant dense<0.000000e+00> : vector<16xf32>
    %275 = vector.multi_reduction <add>, %274, %cst_74 [1] : vector<16x32xf32> to vector<16xf32>
    %276 = vector.shape_cast %275 : vector<16xf32> to vector<16x1xf32>
    %cst_75 = arith.constant 3.200000e+01 : f32
    %277 = vector.broadcast %cst_75 : f32 to vector<16x1xf32>
    %278 = arith.divf %276, %277 : vector<16x1xf32>
    %279 = arith.mulf %274, %274 : vector<16x32xf32>
    %cst_76 = arith.constant dense<0.000000e+00> : vector<16xf32>
    %280 = vector.multi_reduction <add>, %279, %cst_76 [1] : vector<16x32xf32> to vector<16xf32>
    %281 = vector.shape_cast %280 : vector<16xf32> to vector<16x1xf32>
    %cst_77 = arith.constant 3.200000e+01 : f32
    %282 = vector.broadcast %cst_77 : f32 to vector<16x1xf32>
    %283 = arith.divf %281, %282 : vector<16x1xf32>
    %284 = arith.mulf %278, %278 : vector<16x1xf32>
    %285 = arith.subf %283, %284 : vector<16x1xf32>
    %cst_78 = arith.constant 0.000000e+00 : f32
    %286 = vector.broadcast %cst_78 : f32 to vector<16x1xf32>
    %287 = arith.maximumf %285, %286 : vector<16x1xf32>
    %288 = vector.broadcast %278 : vector<16x1xf32> to vector<16x32xf32>
    %289 = arith.subf %274, %288 : vector<16x32xf32>
    %cst_79 = arith.constant 9.99999996E-13 : f32
    %290 = vector.broadcast %cst_79 : f32 to vector<16x1xf32>
    %291 = arith.addf %287, %290 : vector<16x1xf32>
    %292 = math.rsqrt %291 : vector<16x1xf32>
    %293 = vector.broadcast %292 : vector<16x1xf32> to vector<16x32xf32>
    %294 = arith.mulf %289, %293 : vector<16x32xf32>
    %c394 = arith.constant 394 : index
    %c0_80 = arith.constant 0 : index
    %295 = vector.load %arg1[%c394, %c0_80] : memref<400x128xf32, #tpu.memory_space<vmem>>, vector<1x32xf32>
    %296 = vector.broadcast %295 : vector<1x32xf32> to vector<16x32xf32>
    %297 = arith.mulf %294, %296 : vector<16x32xf32>
    %c395 = arith.constant 395 : index
    %c0_81 = arith.constant 0 : index
    %298 = vector.load %arg1[%c395, %c0_81] : memref<400x128xf32, #tpu.memory_space<vmem>>, vector<1x32xf32>
    %299 = vector.broadcast %298 : vector<1x32xf32> to vector<16x32xf32>
    %300 = arith.addf %297, %299 : vector<16x32xf32>
    %c296 = arith.constant 296 : index
    %c0_82 = arith.constant 0 : index
    %301 = vector.load %arg1[%c296, %c0_82] : memref<400x128xf32, #tpu.memory_space<vmem>>, vector<32x64xf32>
    %c396 = arith.constant 396 : index
    %c0_83 = arith.constant 0 : index
    %302 = vector.load %arg1[%c396, %c0_83] : memref<400x128xf32, #tpu.memory_space<vmem>>, vector<1x64xf32>
    %cst_84 = arith.constant dense<0.000000e+00> : vector<16x64xf32>
    %303 = tpu.matmul %300, %301, %cst_84 {dimension_numbers = #tpu.dot_dimension_numbers<[1], [0], [0], [1], [0, 0, 1, 1], [], []>} : vector<16x32xf32>, vector<32x64xf32>, vector<16x64xf32> -> vector<16x64xf32>
    %304 = vector.broadcast %302 : vector<1x64xf32> to vector<16x64xf32>
    %305 = arith.addf %303, %304 : vector<16x64xf32>
    %cst_85 = arith.constant 0.707106769 : f32
    %306 = vector.broadcast %cst_85 : f32 to vector<16x64xf32>
    %307 = arith.mulf %305, %306 : vector<16x64xf32>
    %cst_86 = arith.constant 0.000000e+00 : f32
    %308 = vector.broadcast %cst_86 : f32 to vector<16x64xf32>
    %309 = arith.cmpf oge, %307, %308 : vector<16x64xf32>
    %cst_87 = arith.constant 0.000000e+00 : f32
    %310 = vector.broadcast %cst_87 : f32 to vector<16x64xf32>
    %311 = arith.subf %310, %307 : vector<16x64xf32>
    %312 = arith.select %309, %307, %311 : vector<16x64xi1>, vector<16x64xf32>
    %cst_88 = arith.constant 0.327591091 : f32
    %313 = vector.broadcast %cst_88 : f32 to vector<16x64xf32>
    %314 = arith.mulf %313, %312 : vector<16x64xf32>
    %cst_89 = arith.constant 1.000000e+00 : f32
    %315 = vector.broadcast %cst_89 : f32 to vector<16x64xf32>
    %316 = arith.addf %315, %314 : vector<16x64xf32>
    %cst_90 = arith.constant 1.000000e+00 : f32
    %317 = vector.broadcast %cst_90 : f32 to vector<16x64xf32>
    %318 = arith.divf %317, %316 : vector<16x64xf32>
    %cst_91 = arith.constant 1.06140542 : f32
    %319 = vector.broadcast %cst_91 : f32 to vector<16x64xf32>
    %320 = arith.mulf %318, %319 : vector<16x64xf32>
    %cst_92 = arith.constant -1.45315206 : f32
    %321 = vector.broadcast %cst_92 : f32 to vector<16x64xf32>
    %322 = arith.addf %321, %320 : vector<16x64xf32>
    %323 = arith.mulf %318, %322 : vector<16x64xf32>
    %cst_93 = arith.constant 1.42141378 : f32
    %324 = vector.broadcast %cst_93 : f32 to vector<16x64xf32>
    %325 = arith.addf %324, %323 : vector<16x64xf32>
    %326 = arith.mulf %318, %325 : vector<16x64xf32>
    %cst_94 = arith.constant -0.284496725 : f32
    %327 = vector.broadcast %cst_94 : f32 to vector<16x64xf32>
    %328 = arith.addf %327, %326 : vector<16x64xf32>
    %329 = arith.mulf %318, %328 : vector<16x64xf32>
    %cst_95 = arith.constant 0.254829586 : f32
    %330 = vector.broadcast %cst_95 : f32 to vector<16x64xf32>
    %331 = arith.addf %330, %329 : vector<16x64xf32>
    %332 = arith.mulf %318, %331 : vector<16x64xf32>
    %cst_96 = arith.constant 0.000000e+00 : f32
    %333 = vector.broadcast %cst_96 : f32 to vector<16x64xf32>
    %334 = arith.subf %333, %312 : vector<16x64xf32>
    %335 = arith.mulf %334, %312 : vector<16x64xf32>
    %336 = math.exp %335 : vector<16x64xf32>
    %337 = arith.mulf %332, %336 : vector<16x64xf32>
    %cst_97 = arith.constant 1.000000e+00 : f32
    %338 = vector.broadcast %cst_97 : f32 to vector<16x64xf32>
    %339 = arith.subf %338, %337 : vector<16x64xf32>
    %cst_98 = arith.constant 0.000000e+00 : f32
    %340 = vector.broadcast %cst_98 : f32 to vector<16x64xf32>
    %341 = arith.cmpf oge, %307, %340 : vector<16x64xf32>
    %cst_99 = arith.constant 0.000000e+00 : f32
    %342 = vector.broadcast %cst_99 : f32 to vector<16x64xf32>
    %343 = arith.subf %342, %339 : vector<16x64xf32>
    %344 = arith.select %341, %339, %343 : vector<16x64xi1>, vector<16x64xf32>
    %cst_100 = arith.constant 5.000000e-01 : f32
    %345 = vector.broadcast %cst_100 : f32 to vector<16x64xf32>
    %346 = arith.mulf %345, %305 : vector<16x64xf32>
    %cst_101 = arith.constant 1.000000e+00 : f32
    %347 = vector.broadcast %cst_101 : f32 to vector<16x64xf32>
    %348 = arith.addf %347, %344 : vector<16x64xf32>
    %349 = arith.mulf %346, %348 : vector<16x64xf32>
    %c328 = arith.constant 328 : index
    %c0_102 = arith.constant 0 : index
    %350 = vector.load %arg1[%c328, %c0_102] : memref<400x128xf32, #tpu.memory_space<vmem>>, vector<64x32xf32>
    %c397 = arith.constant 397 : index
    %c0_103 = arith.constant 0 : index
    %351 = vector.load %arg1[%c397, %c0_103] : memref<400x128xf32, #tpu.memory_space<vmem>>, vector<1x32xf32>
    %cst_104 = arith.constant dense<0.000000e+00> : vector<16x32xf32>
    %352 = tpu.matmul %349, %350, %cst_104 {dimension_numbers = #tpu.dot_dimension_numbers<[1], [0], [0], [1], [0, 0, 1, 1], [], []>} : vector<16x64xf32>, vector<64x32xf32>, vector<16x32xf32> -> vector<16x32xf32>
    %353 = vector.broadcast %351 : vector<1x32xf32> to vector<16x32xf32>
    %354 = arith.addf %352, %353 : vector<16x32xf32>
    %355 = arith.addf %354, %300 : vector<16x32xf32>
    %cst_105 = arith.constant dense<0.000000e+00> : vector<16xf32>
    %356 = vector.multi_reduction <add>, %355, %cst_105 [1] : vector<16x32xf32> to vector<16xf32>
    %357 = vector.shape_cast %356 : vector<16xf32> to vector<16x1xf32>
    %cst_106 = arith.constant 3.200000e+01 : f32
    %358 = vector.broadcast %cst_106 : f32 to vector<16x1xf32>
    %359 = arith.divf %357, %358 : vector<16x1xf32>
    %360 = arith.mulf %355, %355 : vector<16x32xf32>
    %cst_107 = arith.constant dense<0.000000e+00> : vector<16xf32>
    %361 = vector.multi_reduction <add>, %360, %cst_107 [1] : vector<16x32xf32> to vector<16xf32>
    %362 = vector.shape_cast %361 : vector<16xf32> to vector<16x1xf32>
    %cst_108 = arith.constant 3.200000e+01 : f32
    %363 = vector.broadcast %cst_108 : f32 to vector<16x1xf32>
    %364 = arith.divf %362, %363 : vector<16x1xf32>
    %365 = arith.mulf %359, %359 : vector<16x1xf32>
    %366 = arith.subf %364, %365 : vector<16x1xf32>
    %cst_109 = arith.constant 0.000000e+00 : f32
    %367 = vector.broadcast %cst_109 : f32 to vector<16x1xf32>
    %368 = arith.maximumf %366, %367 : vector<16x1xf32>
    %369 = vector.broadcast %359 : vector<16x1xf32> to vector<16x32xf32>
    %370 = arith.subf %355, %369 : vector<16x32xf32>
    %cst_110 = arith.constant 9.99999996E-13 : f32
    %371 = vector.broadcast %cst_110 : f32 to vector<16x1xf32>
    %372 = arith.addf %368, %371 : vector<16x1xf32>
    %373 = math.rsqrt %372 : vector<16x1xf32>
    %374 = vector.broadcast %373 : vector<16x1xf32> to vector<16x32xf32>
    %375 = arith.mulf %370, %374 : vector<16x32xf32>
    %c398 = arith.constant 398 : index
    %c0_111 = arith.constant 0 : index
    %376 = vector.load %arg1[%c398, %c0_111] : memref<400x128xf32, #tpu.memory_space<vmem>>, vector<1x32xf32>
    %377 = vector.broadcast %376 : vector<1x32xf32> to vector<16x32xf32>
    %378 = arith.mulf %375, %377 : vector<16x32xf32>
    %c399 = arith.constant 399 : index
    %c0_112 = arith.constant 0 : index
    %379 = vector.load %arg1[%c399, %c0_112] : memref<400x128xf32, #tpu.memory_space<vmem>>, vector<1x32xf32>
    %380 = vector.broadcast %379 : vector<1x32xf32> to vector<16x32xf32>
    %381 = arith.addf %378, %380 : vector<16x32xf32>
    %c32 = arith.constant 32 : index
    %c0_113 = arith.constant 0 : index
    %382 = vector.load %arg1[%c32, %c0_113] : memref<400x128xf32, #tpu.memory_space<vmem>>, vector<32x3xf32>
    %c11 = arith.constant 11 : index
    %c0_114 = arith.constant 0 : index
    %383 = vector.load %arg1[%c11, %c0_114] : memref<400x128xf32, #tpu.memory_space<vmem>>, vector<1x3xf32>
    %cst_115 = arith.constant dense<0.000000e+00> : vector<16x3xf32>
    %384 = tpu.matmul %381, %382, %cst_115 {dimension_numbers = #tpu.dot_dimension_numbers<[1], [0], [0], [1], [0, 0, 1, 1], [], []>} : vector<16x32xf32>, vector<32x3xf32>, vector<16x3xf32> -> vector<16x3xf32>
    %385 = vector.broadcast %383 : vector<1x3xf32> to vector<16x3xf32>
    %386 = arith.addf %384, %385 : vector<16x3xf32>
    %c0_116 = arith.constant 0 : index
    %c0_117 = arith.constant 0 : index
    %387 = vector.load %arg2[%c0_116, %c0_117] : memref<16x3xf32, #tpu.memory_space<vmem>>, vector<16x3xf32>
    tpu.vector_store %arg2[%c0_116, %c0_117], %386 {strides = array<i32>} : memref<16x3xf32, #tpu.memory_space<vmem>>, vector<16x3xf32>,
    return
  }
}

</mosaic_0001>

<llo_original>
// kernel: bert_model_custom2.1
$region0: #{bert_model_custom2.1}
  #allocation0 [shape = 'u32[]', space=smem, size = 0x4, offset = 0x4, fixed_abs, tag = 'smem constant byte address 0x4 - core index']
  #allocation1 [shape = 'u32[144,128]{1,0:T(1,128)}', space=vmem, size = 0x12000, scoped, tag = 'internal scratch']
  %s0 = inlined_call_operand.vmem [shape: f32[16,8], index: 0, kind: input, shape index: {}]
  %s1 = inlined_call_operand.hbm [shape: f32[400,128], index: 1, kind: input, shape index: {}]
  %s2 = inlined_call_operand.vmem [shape: f32[16,3], index: 2, kind: output, shape index: {}]
  %s3 = sld [smem:[#allocation0]]
  $region22: #{bert_model_custom2.1} parent=0
    _
  %s5 = ssub.s32 1, %s3
  %s6 = scalar_select 0, %s5, %s3
  $region1: #{bert_model_custom2.1} parent=0
    #allocation2 [shape = 'u8[204800]{0}', space=vmem, size = 0x32000, scoped, tag = 'input window, operand 1, single buffered']
    #allocation3 [shape = 's32[1]{0}', space=sflag, size = 0x4, scoped, tag = 'scoped memory for bert_model_custom2.1']
    %7 = vsyncpa [#allocation3], 0
    // Predicated region
    $region2: #{bert_model_custom2.1} parent=1 // pred_check
      _
    $region3: #{bert_model_custom2.1} parent=1 // pred_check_branch
      %9 = sbr.rel (0) target = $region5
    $region4: #{bert_model_custom2.1} parent=1 // pred_region
      _
    $region5: #{bert_model_custom2.1} parent=1 // pred_fallthru
      _
    // Predicated region
    $region6: #{bert_model_custom2.1} parent=1 // pred_check
      _
    $region7: #{bert_model_custom2.1} parent=1 // pred_check_branch
      %11 = sbr.rel (0) target = $region9
    $region8: #{bert_model_custom2.1} parent=1 // pred_region
      %s13 = ssub.s32 6400, 6400
      %14 = vsyncadd [#allocation3], %s13
      %s15 = sshll.u32 [#allocation2], 4
      %s16 = int_to_ptr.vmem [resolvable:$true] %s15
      %21 = dma.hbm_to_vmem [thread:$0]  %s1, 6400, %s16, [#allocation3], 128, 128, 8
    $region9: #{bert_model_custom2.1} parent=1 // pred_fallthru
      _
    // Predicated region
    $region10: #{bert_model_custom2.1} parent=1 // pred_check
      _
    $region11: #{bert_model_custom2.1} parent=1 // pred_check_branch
      %23 = sbr.rel (0) target = $region13
    $region12: #{bert_model_custom2.1} parent=1 // pred_region
      %24 = dma.done [#allocation3], 6400
    $region13: #{bert_model_custom2.1} parent=1 // pred_fallthru
      _
    %v25 = vld [vmem:[%s0] sm:$0xff]
    %v26 = vld [vmem:[%s0 + $0x8] sm:$0xff]
    %v27 = vld [vmem:[#allocation2] sm:$0xff]
    %v28 = vld [vmem:[#allocation2 + $0x8] sm:$0x1]
    %v29 = vlaneseq
    %v30 = vshrl.u32 %v29, 7
    %v31 = vsub.s32 0, %v30
    %v32 = vrot.slane %v28, %v31
    %vm33 = vcmask 64512
    %v35 = vsel %vm33, %v25, 0
    %v38 = vsel %vm33, %v26, 0
    %40 = vmatprep.subr.mxu0 0.0
    %41 = vmatpush1.msra.mxu0 %v27
    %42 = vmatprep.subr.mxu0 0.0
    %43 = vmatpush1.msra.mxu0 0.0
    %44 = vmatprep.subr.mxu0 0.0
    %45 = vmatpush1.msra.mxu0 0.0
    %46 = vmatprep.subr.mxu0 0.0
    %47 = vmatpush1.msra.mxu0 0.0
    %48 = vmatprep.subr.mxu0 0.0
    %49 = vmatpush1.msra.mxu0 0.0
    %50 = vmatprep.subr.mxu0 0.0
    %51 = vmatpush1.msra.mxu0 0.0
    %52 = vmatprep.subr.mxu0 0.0
    %53 = vmatpush1.msra.mxu0 0.0
    %54 = vmatprep.subr.mxu0 0.0
    %55 = vmatpush1.msra.mxu0 0.0
    %56 = vmatprep.subr.mxu0 0.0
    %57 = vmatpush1.msra.mxu0 0.0
    %58 = vmatprep.subr.mxu0 0.0
    %59 = vmatpush1.msra.mxu0 0.0
    %60 = vmatprep.subr.mxu0 0.0
    %61 = vmatpush1.msra.mxu0 0.0
    %62 = vmatprep.subr.mxu0 0.0
    %63 = vmatpush1.msra.mxu0 0.0
    %64 = vmatprep.subr.mxu0 0.0
    %65 = vmatpush1.msra.mxu0 0.0
    %66 = vmatprep.subr.mxu0 0.0
    %67 = vmatpush1.msra.mxu0 0.0
    %68 = vmatprep.subr.mxu0 0.0
    %69 = vmatpush1.msra.mxu0 0.0
    %70 = vmatprep.subr.mxu0 0.0
    %71 = vmatpush1.msra.mxu0 0.0
    %72 = vmatprep.subr.mxu0 0.0
    %73 = vmatpush1.msra.mxu0 0.0
    %74 = vmatprep.subr.mxu0 0.0
    %75 = vmatpush1.msra.mxu0 0.0
    %76 = vmatprep.subr.mxu0 0.0
    %77 = vmatpush1.msra.mxu0 0.0
    %78 = vmatprep.subr.mxu0 0.0
    %79 = vmatpush1.msra.mxu0 0.0
    %80 = vmatprep.subr.mxu0 0.0
    %81 = vmatpush1.msra.mxu0 0.0
    %82 = vmatprep.subr.mxu0 0.0
    %83 = vmatpush1.msra.mxu0 0.0
    %84 = vmatprep.subr.mxu0 0.0
    %85 = vmatpush1.msra.mxu0 0.0
    %86 = vmatprep.subr.mxu0 0.0
    %87 = vmatpush1.msra.mxu0 0.0
    %88 = vmatprep.subr.mxu0 0.0
    %89 = vmatpush1.msra.mxu0 0.0
    %90 = vmatprep.subr.mxu0 0.0
    %91 = vmatpush1.msra.mxu0 0.0
    %92 = vmatprep.subr.mxu0 0.0
    %93 = vmatpush1.msra.mxu0 0.0
    %94 = vmatprep.subr.mxu0 0.0
    %95 = vmatpush1.msra.mxu0 0.0
    %96 = vmatprep.subr.mxu0 0.0
    %97 = vmatpush1.msra.mxu0 0.0
    %98 = vmatprep.subr.mxu0 0.0
    %99 = vmatpush1.msra.mxu0 0.0
    %100 = vmatprep.subr.mxu0 0.0
    %101 = vmatpush1.msra.mxu0 0.0
    %102 = vmatprep.subr.mxu0 0.0
    %103 = vmatpush1.msra.mxu0 0.0
    %104 = vmatprep.mubr.f32.mxu0 0.0
    %105 = vmatmul.mubr.f32.gmra.mrb[0].mxu0 %v35
    %v106 = vpop.f32.mrb[0].mxu0
    %v107 = vadd.f32 %v32, %v106
    %v108 = vpop.f32.mrb[0].mxu0
    %109 = vmatprep.mubr.f32.mxu0 0.0
    %110 = vmatmul.mubr.f32.gmra.mrb[0].mxu0 %v38
    %v111 = vpop.f32.mrb[0].mxu0
    %v112 = vadd.f32 %v32, %v111
    %v113 = vpop.f32.mrb[0].mxu0
    %114 = vdwg.mxu0
    %v115 = vld [vmem:[#allocation2 + $0x10] sm:$0xff]
    %v116 = vld [vmem:[#allocation2 + $0x18] sm:$0xff]
    %v117 = vadd.f32 %v107, %v115
    %v118 = vadd.f32 %v112, %v116
    %vm119 = vcmask 261120
    %v120 = vsel %vm119, %v117, 0.0
    %121 = vadd.xlane.f32.xlu0 %v120
    %v122 = vpop.xlane.xlu0 %121
    %v123 = vsel %vm119, %v118, 0.0
    %124 = vadd.xlane.f32.xlu0 %v123
    %v125 = vpop.xlane.xlu0 %124
    %v126 = vrcp.pop 32.0
    %v127 = vmul.f32 %v122, %v126
    %v128 = vmul.f32 %v125, %v126
    %v129 = vmul.f32 %v117, %v117
    %v130 = vmul.f32 %v118, %v118
    %v131 = vsel %vm119, %v129, 0.0
    %132 = vadd.xlane.f32.xlu0 %v131
    %v133 = vpop.xlane.xlu0 %132
    %v134 = vsel %vm119, %v130, 0.0
    %135 = vadd.xlane.f32.xlu0 %v134
    %v136 = vpop.xlane.xlu0 %135
    %v137 = vmul.f32 %v133, %v126
    %v138 = vmul.f32 %v136, %v126
    %v139 = vmul.f32 %v127, %v127
    %v140 = vmul.f32 %v128, %v128
    %v141 = vsub.f32 %v137, %v139
    %v142 = vsub.f32 %v138, %v140
    %v143 = vmax.f32 %v141, 0.0
    %v144 = vmax.f32 %v142, 0.0
    %v145 = vsub.f32 %v117, %v127
    %v146 = vsub.f32 %v118, %v128
    %v147 = vadd.f32 %v143, 1e-12
    %v148 = vadd.f32 %v144, 1e-12
    %v149 = vrsqrt.pop %v147
    %v150 = vrsqrt.pop %v148
    %v151 = vmul.f32 %v145, %v149
    %v152 = vmul.f32 %v146, %v150
    %v153 = vld [vmem:[#allocation2 + $0x9] sm:$0x1]
    %v154 = vlaneseq
    %v155 = vshrl.u32 %v154, 7
    %v156 = vsub.s32 0, %v155
    %v157 = vrot.slane %v153, %v156
    %v158 = vmul.f32 %v151, %v157
    %v159 = vmul.f32 %v152, %v157
    %v160 = vld [vmem:[#allocation2 + $0xa] sm:$0x1]
    %v161 = vlaneseq
    %v162 = vshrl.u32 %v161, 7
    %v163 = vsub.s32 0, %v162
    %v164 = vrot.slane %v160, %v163
    %v165 = vadd.f32 %v158, %v164
    %v166 = vadd.f32 %v159, %v164
    %v167 = vld [vmem:[#allocation2 + $0x40] sm:$0xff]
    %v168 = vld [vmem:[#allocation2 + $0x48] sm:$0xff]
    %v169 = vld [vmem:[#allocation2 + $0x50] sm:$0xff]
    %v170 = vld [vmem:[#allocation2 + $0x58] sm:$0xff]
    %v171 = vld [vmem:[#allocation2 + $0xe0] sm:$0x1]
    %v172 = vlaneseq
    %v173 = vshrl.u32 %v172, 7
    %v174 = vsub.s32 0, %v173
    %v175 = vrot.slane %v171, %v174
    %v177 = vsel %vm119, %v165, 0
    %v180 = vsel %vm119, %v166, 0
    %182 = vmatprep.subr.mxu0 0.0
    %183 = vmatpush1.msra.mxu0 %v167
    %184 = vmatprep.subr.mxu0 0.0
    %185 = vmatpush1.msra.mxu0 %v168
    %186 = vmatprep.subr.mxu0 0.0
    %187 = vmatpush1.msra.mxu0 %v169
    %188 = vmatprep.subr.mxu0 0.0
    %189 = vmatpush1.msra.mxu0 %v170
    %190 = vmatprep.subr.mxu0 0.0
    %191 = vmatpush1.msra.mxu0 0.0
    %192 = vmatprep.subr.mxu0 0.0
    %193 = vmatpush1.msra.mxu0 0.0
    %194 = vmatprep.subr.mxu0 0.0
    %195 = vmatpush1.msra.mxu0 0.0
    %196 = vmatprep.subr.mxu0 0.0
    %197 = vmatpush1.msra.mxu0 0.0
    %198 = vmatprep.subr.mxu0 0.0
    %199 = vmatpush1.msra.mxu0 0.0
    %200 = vmatprep.subr.mxu0 0.0
    %201 = vmatpush1.msra.mxu0 0.0
    %202 = vmatprep.subr.mxu0 0.0
    %203 = vmatpush1.msra.mxu0 0.0
    %204 = vmatprep.subr.mxu0 0.0
    %205 = vmatpush1.msra.mxu0 0.0
    %206 = vmatprep.subr.mxu0 0.0
    %207 = vmatpush1.msra.mxu0 0.0
    %208 = vmatprep.subr.mxu0 0.0
    %209 = vmatpush1.msra.mxu0 0.0
    %210 = vmatprep.subr.mxu0 0.0
    %211 = vmatpush1.msra.mxu0 0.0
    %212 = vmatprep.subr.mxu0 0.0
    %213 = vmatpush1.msra.mxu0 0.0
    %214 = vmatprep.subr.mxu0 0.0
    %215 = vmatpush1.msra.mxu0 0.0
    %216 = vmatprep.subr.mxu0 0.0
    %217 = vmatpush1.msra.mxu0 0.0
    %218 = vmatprep.subr.mxu0 0.0
    %219 = vmatpush1.msra.mxu0 0.0
    %220 = vmatprep.subr.mxu0 0.0
    %221 = vmatpush1.msra.mxu0 0.0
    %222 = vmatprep.subr.mxu0 0.0
    %223 = vmatpush1.msra.mxu0 0.0
    %224 = vmatprep.subr.mxu0 0.0
    %225 = vmatpush1.msra.mxu0 0.0
    %226 = vmatprep.subr.mxu0 0.0
    %227 = vmatpush1.msra.mxu0 0.0
    %228 = vmatprep.subr.mxu0 0.0
    %229 = vmatpush1.msra.mxu0 0.0
    %230 = vmatprep.subr.mxu0 0.0
    %231 = vmatpush1.msra.mxu0 0.0
    %232 = vmatprep.subr.mxu0 0.0
    %233 = vmatpush1.msra.mxu0 0.0
    %234 = vmatprep.subr.mxu0 0.0
    %235 = vmatpush1.msra.mxu0 0.0
    %236 = vmatprep.subr.mxu0 0.0
    %237 = vmatpush1.msra.mxu0 0.0
    %238 = vmatprep.subr.mxu0 0.0
    %239 = vmatpush1.msra.mxu0 0.0
    %240 = vmatprep.subr.mxu0 0.0
    %241 = vmatpush1.msra.mxu0 0.0
    %242 = vmatprep.subr.mxu0 0.0
    %243 = vmatpush1.msra.mxu0 0.0
    %244 = vmatprep.subr.mxu0 0.0
    %245 = vmatpush1.msra.mxu0 0.0
    %246 = vmatprep.mubr.f32.mxu0 0.0
    %247 = vmatmul.mubr.f32.gmra.mrb[0].mxu0 %v177
    %v248 = vpop.f32.mrb[0].mxu0
    %v249 = vadd.f32 %v175, %v248
    %v250 = vpop.f32.mrb[0].mxu0
    %251 = vmatprep.mubr.f32.mxu0 0.0
    %252 = vmatmul.mubr.f32.gmra.mrb[0].mxu0 %v180
    %v253 = vpop.f32.mrb[0].mxu0
    %v254 = vadd.f32 %v175, %v253
    %v255 = vpop.f32.mrb[0].mxu0
    %256 = vdwg.mxu0
    %259 = vrot.lane.b32.xlu0 %v249, 120
    %v260 = vpop.permute.xlu0 %259
    %261 = vrot.lane.b32.xlu0 %v254, 120
    %v262 = vpop.permute.xlu0 %261
    %263 = vrot.lane.b32.xlu0 %v249, 112
    %v264 = vpop.permute.xlu0 %263
    %265 = vrot.lane.b32.xlu0 %v254, 112
    %v266 = vpop.permute.xlu0 %265
    %267 = vrot.lane.b32.xlu0 %v249, 104
    %v268 = vpop.permute.xlu0 %267
    %269 = vrot.lane.b32.xlu0 %v254, 104
    %v270 = vpop.permute.xlu0 %269
    %271 = vrot.lane.b32.xlu0 %v249, 96
    %v272 = vpop.permute.xlu0 %271
    %v273 = vsel %vm33, %v249, 0
    %v275 = vsel %vm33, %v272, 0
    %277 = vmatprep.subr.mxu0 0.0
    %278 = vmatpush1.xpose.msra.mxu0 %v275
    %279 = vmatprep.subr.mxu0 0.0
    %280 = vmatpush1.xpose.msra.mxu0 0.0
    %281 = vmatprep.subr.mxu0 0.0
    %282 = vmatpush1.xpose.msra.mxu0 0.0
    %283 = vmatprep.subr.mxu0 0.0
    %284 = vmatpush1.xpose.msra.mxu0 0.0
    %285 = vmatprep.subr.mxu0 0.0
    %286 = vmatpush1.xpose.msra.mxu0 0.0
    %287 = vmatprep.subr.mxu0 0.0
    %288 = vmatpush1.xpose.msra.mxu0 0.0
    %289 = vmatprep.subr.mxu0 0.0
    %290 = vmatpush1.xpose.msra.mxu0 0.0
    %291 = vmatprep.subr.mxu0 0.0
    %292 = vmatpush1.xpose.msra.mxu0 0.0
    %293 = vmatprep.subr.mxu0 0.0
    %294 = vmatpush1.xpose.msra.mxu0 0.0
    %295 = vmatprep.subr.mxu0 0.0
    %296 = vmatpush1.xpose.msra.mxu0 0.0
    %297 = vmatprep.subr.mxu0 0.0
    %298 = vmatpush1.xpose.msra.mxu0 0.0
    %299 = vmatprep.subr.mxu0 0.0
    %300 = vmatpush1.xpose.msra.mxu0 0.0
    %301 = vmatprep.subr.mxu0 0.0
    %302 = vmatpush1.xpose.msra.mxu0 0.0
    %303 = vmatprep.subr.mxu0 0.0
    %304 = vmatpush1.xpose.msra.mxu0 0.0
    %305 = vmatprep.subr.mxu0 0.0
    %306 = vmatpush1.xpose.msra.mxu0 0.0
    %307 = vmatprep.subr.mxu0 0.0
    %308 = vmatpush1.xpose.msra.mxu0 0.0
    %309 = vmatprep.subr.mxu0 0.0
    %310 = vmatpush1.xpose.msra.mxu0 0.0
    %311 = vmatprep.subr.mxu0 0.0
    %312 = vmatpush1.xpose.msra.mxu0 0.0
    %313 = vmatprep.subr.mxu0 0.0
    %314 = vmatpush1.xpose.msra.mxu0 0.0
    %315 = vmatprep.subr.mxu0 0.0
    %316 = vmatpush1.xpose.msra.mxu0 0.0
    %317 = vmatprep.subr.mxu0 0.0
    %318 = vmatpush1.xpose.msra.mxu0 0.0
    %319 = vmatprep.subr.mxu0 0.0
    %320 = vmatpush1.xpose.msra.mxu0 0.0
    %321 = vmatprep.subr.mxu0 0.0
    %322 = vmatpush1.xpose.msra.mxu0 0.0
    %323 = vmatprep.subr.mxu0 0.0
    %324 = vmatpush1.xpose.msra.mxu0 0.0
    %325 = vmatprep.subr.mxu0 0.0
    %326 = vmatpush1.xpose.msra.mxu0 0.0
    %327 = vmatprep.subr.mxu0 0.0
    %328 = vmatpush1.xpose.msra.mxu0 0.0
    %329 = vmatprep.subr.mxu0 0.0
    %330 = vmatpush1.xpose.msra.mxu0 0.0
    %331 = vmatprep.subr.mxu0 0.0
    %332 = vmatpush1.xpose.msra.mxu0 0.0
    %333 = vmatprep.subr.mxu0 0.0
    %334 = vmatpush1.xpose.msra.mxu0 0.0
    %335 = vmatprep.subr.mxu0 0.0
    %336 = vmatpush1.xpose.msra.mxu0 0.0
    %337 = vmatprep.subr.mxu0 0.0
    %338 = vmatpush1.xpose.msra.mxu0 0.0
    %339 = vmatprep.subr.mxu0 0.0
    %340 = vmatpush1.xpose.msra.mxu0 0.0
    %341 = vmatprep.mubr.f32.mxu0 0.0
    %342 = vmatmul.mubr.f32.gmra.mrb[0].mxu0 %v273
    %v343 = vpop.f32.mrb[0].mxu0
    %v344 = vadd.f32 0.0, %v343
    %v345 = vpop.f32.mrb[0].mxu0
    %346 = vdwg.mxu0
    %347 = vrot.lane.b32.xlu0 %v254, 96
    %v348 = vpop.permute.xlu0 %347
    %v349 = vsel %vm33, %v254, 0
    %v351 = vsel %vm33, %v348, 0
    %353 = vmatprep.subr.mxu0 0.0
    %354 = vmatpush1.xpose.msra.mxu0 %v351
    %355 = vmatprep.subr.mxu0 0.0
    %356 = vmatpush1.xpose.msra.mxu0 0.0
    %357 = vmatprep.subr.mxu0 0.0
    %358 = vmatpush1.xpose.msra.mxu0 0.0
    %359 = vmatprep.subr.mxu0 0.0
    %360 = vmatpush1.xpose.msra.mxu0 0.0
    %361 = vmatprep.subr.mxu0 0.0
    %362 = vmatpush1.xpose.msra.mxu0 0.0
    %363 = vmatprep.subr.mxu0 0.0
    %364 = vmatpush1.xpose.msra.mxu0 0.0
    %365 = vmatprep.subr.mxu0 0.0
    %366 = vmatpush1.xpose.msra.mxu0 0.0
    %367 = vmatprep.subr.mxu0 0.0
    %368 = vmatpush1.xpose.msra.mxu0 0.0
    %369 = vmatprep.subr.mxu0 0.0
    %370 = vmatpush1.xpose.msra.mxu0 0.0
    %371 = vmatprep.subr.mxu0 0.0
    %372 = vmatpush1.xpose.msra.mxu0 0.0
    %373 = vmatprep.subr.mxu0 0.0
    %374 = vmatpush1.xpose.msra.mxu0 0.0
    %375 = vmatprep.subr.mxu0 0.0
    %376 = vmatpush1.xpose.msra.mxu0 0.0
    %377 = vmatprep.subr.mxu0 0.0
    %378 = vmatpush1.xpose.msra.mxu0 0.0
    %379 = vmatprep.subr.mxu0 0.0
    %380 = vmatpush1.xpose.msra.mxu0 0.0
    %381 = vmatprep.subr.mxu0 0.0
    %382 = vmatpush1.xpose.msra.mxu0 0.0
    %383 = vmatprep.subr.mxu0 0.0
    %384 = vmatpush1.xpose.msra.mxu0 0.0
    %385 = vmatprep.subr.mxu0 0.0
    %386 = vmatpush1.xpose.msra.mxu0 0.0
    %387 = vmatprep.subr.mxu0 0.0
    %388 = vmatpush1.xpose.msra.mxu0 0.0
    %389 = vmatprep.subr.mxu0 0.0
    %390 = vmatpush1.xpose.msra.mxu0 0.0
    %391 = vmatprep.subr.mxu0 0.0
    %392 = vmatpush1.xpose.msra.mxu0 0.0
    %393 = vmatprep.subr.mxu0 0.0
    %394 = vmatpush1.xpose.msra.mxu0 0.0
    %395 = vmatprep.subr.mxu0 0.0
    %396 = vmatpush1.xpose.msra.mxu0 0.0
    %397 = vmatprep.subr.mxu0 0.0
    %398 = vmatpush1.xpose.msra.mxu0 0.0
    %399 = vmatprep.subr.mxu0 0.0
    %400 = vmatpush1.xpose.msra.mxu0 0.0
    %401 = vmatprep.subr.mxu0 0.0
    %402 = vmatpush1.xpose.msra.mxu0 0.0
    %403 = vmatprep.subr.mxu0 0.0
    %404 = vmatpush1.xpose.msra.mxu0 0.0
    %405 = vmatprep.subr.mxu0 0.0
    %406 = vmatpush1.xpose.msra.mxu0 0.0
    %407 = vmatprep.subr.mxu0 0.0
    %408 = vmatpush1.xpose.msra.mxu0 0.0
    %409 = vmatprep.subr.mxu0 0.0
    %410 = vmatpush1.xpose.msra.mxu0 0.0
    %411 = vmatprep.subr.mxu0 0.0
    %412 = vmatpush1.xpose.msra.mxu0 0.0
    %413 = vmatprep.subr.mxu0 0.0
    %414 = vmatpush1.xpose.msra.mxu0 0.0
    %415 = vmatprep.subr.mxu0 0.0
    %416 = vmatpush1.xpose.msra.mxu0 0.0
    %417 = vmatprep.mubr.f32.mxu0 0.0
    %418 = vmatmul.mubr.f32.gmra.mrb[0].mxu0 %v349
    %v419 = vpop.f32.mrb[0].mxu0
    %v420 = vadd.f32 0.0, %v419
    %v421 = vpop.f32.mrb[0].mxu0
    %422 = vdwg.mxu0
    %423 = vrot.lane.b32.xlu0 %v260, 96
    %v424 = vpop.permute.xlu0 %423
    %v425 = vsel %vm33, %v260, 0
    %v427 = vsel %vm33, %v424, 0
    %429 = vmatprep.subr.mxu0 0.0
    %430 = vmatpush1.xpose.msra.mxu0 %v427
    %431 = vmatprep.subr.mxu0 0.0
    %432 = vmatpush1.xpose.msra.mxu0 0.0
    %433 = vmatprep.subr.mxu0 0.0
    %434 = vmatpush1.xpose.msra.mxu0 0.0
    %435 = vmatprep.subr.mxu0 0.0
    %436 = vmatpush1.xpose.msra.mxu0 0.0
    %437 = vmatprep.subr.mxu0 0.0
    %438 = vmatpush1.xpose.msra.mxu0 0.0
    %439 = vmatprep.subr.mxu0 0.0
    %440 = vmatpush1.xpose.msra.mxu0 0.0
    %441 = vmatprep.subr.mxu0 0.0
    %442 = vmatpush1.xpose.msra.mxu0 0.0
    %443 = vmatprep.subr.mxu0 0.0
    %444 = vmatpush1.xpose.msra.mxu0 0.0
    %445 = vmatprep.subr.mxu0 0.0
    %446 = vmatpush1.xpose.msra.mxu0 0.0
    %447 = vmatprep.subr.mxu0 0.0
    %448 = vmatpush1.xpose.msra.mxu0 0.0
    %449 = vmatprep.subr.mxu0 0.0
    %450 = vmatpush1.xpose.msra.mxu0 0.0
    %451 = vmatprep.subr.mxu0 0.0
    %452 = vmatpush1.xpose.msra.mxu0 0.0
    %453 = vmatprep.subr.mxu0 0.0
    %454 = vmatpush1.xpose.msra.mxu0 0.0
    %455 = vmatprep.subr.mxu0 0.0
    %456 = vmatpush1.xpose.msra.mxu0 0.0
    %457 = vmatprep.subr.mxu0 0.0
    %458 = vmatpush1.xpose.msra.mxu0 0.0
    %459 = vmatprep.subr.mxu0 0.0
    %460 = vmatpush1.xpose.msra.mxu0 0.0
    %461 = vmatprep.subr.mxu0 0.0
    %462 = vmatpush1.xpose.msra.mxu0 0.0
    %463 = vmatprep.subr.mxu0 0.0
    %464 = vmatpush1.xpose.msra.mxu0 0.0
    %465 = vmatprep.subr.mxu0 0.0
    %466 = vmatpush1.xpose.msra.mxu0 0.0
    %467 = vmatprep.subr.mxu0 0.0
    %468 = vmatpush1.xpose.msra.mxu0 0.0
    %469 = vmatprep.subr.mxu0 0.0
    %470 = vmatpush1.xpose.msra.mxu0 0.0
    %471 = vmatprep.subr.mxu0 0.0
    %472 = vmatpush1.xpose.msra.mxu0 0.0
    %473 = vmatprep.subr.mxu0 0.0
    %474 = vmatpush1.xpose.msra.mxu0 0.0
    %475 = vmatprep.subr.mxu0 0.0
    %476 = vmatpush1.xpose.msra.mxu0 0.0
    %477 = vmatprep.subr.mxu0 0.0
    %478 = vmatpush1.xpose.msra.mxu0 0.0
    %479 = vmatprep.subr.mxu0 0.0
    %480 = vmatpush1.xpose.msra.mxu0 0.0
    %481 = vmatprep.subr.mxu0 0.0
    %482 = vmatpush1.xpose.msra.mxu0 0.0
    %483 = vmatprep.subr.mxu0 0.0
    %484 = vmatpush1.xpose.msra.mxu0 0.0
    %485 = vmatprep.subr.mxu0 0.0
    %486 = vmatpush1.xpose.msra.mxu0 0.0
    %487 = vmatprep.subr.mxu0 0.0
    %488 = vmatpush1.xpose.msra.mxu0 0.0
    %489 = vmatprep.subr.mxu0 0.0
    %490 = vmatpush1.xpose.msra.mxu0 0.0
    %491 = vmatprep.subr.mxu0 0.0
    %492 = vmatpush1.xpose.msra.mxu0 0.0
    %493 = vmatprep.mubr.f32.mxu0 0.0
    %494 = vmatmul.mubr.f32.gmra.mrb[0].mxu0 %v425
    %v495 = vpop.f32.mrb[0].mxu0
    %v496 = vadd.f32 0.0, %v495
    %v497 = vpop.f32.mrb[0].mxu0
    %498 = vdwg.mxu0
    %499 = vrot.lane.b32.xlu0 %v262, 96
    %v500 = vpop.permute.xlu0 %499
    %v501 = vsel %vm33, %v262, 0
    %v503 = vsel %vm33, %v500, 0
    %505 = vmatprep.subr.mxu0 0.0
    %506 = vmatpush1.xpose.msra.mxu0 %v503
    %507 = vmatprep.subr.mxu0 0.0
    %508 = vmatpush1.xpose.msra.mxu0 0.0
    %509 = vmatprep.subr.mxu0 0.0
    %510 = vmatpush1.xpose.msra.mxu0 0.0
    %511 = vmatprep.subr.mxu0 0.0
    %512 = vmatpush1.xpose.msra.mxu0 0.0
    %513 = vmatprep.subr.mxu0 0.0
    %514 = vmatpush1.xpose.msra.mxu0 0.0
    %515 = vmatprep.subr.mxu0 0.0
    %516 = vmatpush1.xpose.msra.mxu0 0.0
    %517 = vmatprep.subr.mxu0 0.0
    %518 = vmatpush1.xpose.msra.mxu0 0.0
    %519 = vmatprep.subr.mxu0 0.0
    %520 = vmatpush1.xpose.msra.mxu0 0.0
    %521 = vmatprep.subr.mxu0 0.0
    %522 = vmatpush1.xpose.msra.mxu0 0.0
    %523 = vmatprep.subr.mxu0 0.0
    %524 = vmatpush1.xpose.msra.mxu0 0.0
    %525 = vmatprep.subr.mxu0 0.0
    %526 = vmatpush1.xpose.msra.mxu0 0.0
    %527 = vmatprep.subr.mxu0 0.0
    %528 = vmatpush1.xpose.msra.mxu0 0.0
    %529 = vmatprep.subr.mxu0 0.0
    %530 = vmatpush1.xpose.msra.mxu0 0.0
    %531 = vmatprep.subr.mxu0 0.0
    %532 = vmatpush1.xpose.msra.mxu0 0.0
    %533 = vmatprep.subr.mxu0 0.0
    %534 = vmatpush1.xpose.msra.mxu0 0.0
    %535 = vmatprep.subr.mxu0 0.0
    %536 = vmatpush1.xpose.msra.mxu0 0.0
    %537 = vmatprep.subr.mxu0 0.0
    %538 = vmatpush1.xpose.msra.mxu0 0.0
    %539 = vmatprep.subr.mxu0 0.0
    %540 = vmatpush1.xpose.msra.mxu0 0.0
    %541 = vmatprep.subr.mxu0 0.0
    %542 = vmatpush1.xpose.msra.mxu0 0.0
    %543 = vmatprep.subr.mxu0 0.0
    %544 = vmatpush1.xpose.msra.mxu0 0.0
    %545 = vmatprep.subr.mxu0 0.0
    %546 = vmatpush1.xpose.msra.mxu0 0.0
    %547 = vmatprep.subr.mxu0 0.0
    %548 = vmatpush1.xpose.msra.mxu0 0.0
    %549 = vmatprep.subr.mxu0 0.0
    %550 = vmatpush1.xpose.msra.mxu0 0.0
    %551 = vmatprep.subr.mxu0 0.0
    %552 = vmatpush1.xpose.msra.mxu0 0.0
    %553 = vmatprep.subr.mxu0 0.0
    %554 = vmatpush1.xpose.msra.mxu0 0.0
    %555 = vmatprep.subr.mxu0 0.0
    %556 = vmatpush1.xpose.msra.mxu0 0.0
    %557 = vmatprep.subr.mxu0 0.0
    %558 = vmatpush1.xpose.msra.mxu0 0.0
    %559 = vmatprep.subr.mxu0 0.0
    %560 = vmatpush1.xpose.msra.mxu0 0.0
    %561 = vmatprep.subr.mxu0 0.0
    %562 = vmatpush1.xpose.msra.mxu0 0.0
    %563 = vmatprep.subr.mxu0 0.0
    %564 = vmatpush1.xpose.msra.mxu0 0.0
    %565 = vmatprep.subr.mxu0 0.0
    %566 = vmatpush1.xpose.msra.mxu0 0.0
    %567 = vmatprep.subr.mxu0 0.0
    %568 = vmatpush1.xpose.msra.mxu0 0.0
    %569 = vmatprep.mubr.f32.mxu0 0.0
    %570 = vmatmul.mubr.f32.gmra.mrb[0].mxu0 %v501
    %v571 = vpop.f32.mrb[0].mxu0
    %v572 = vadd.f32 0.0, %v571
    %v573 = vpop.f32.mrb[0].mxu0
    %574 = vdwg.mxu0
    %575 = vrot.lane.b32.xlu0 %v264, 96
    %v576 = vpop.permute.xlu0 %575
    %v577 = vsel %vm33, %v264, 0
    %v579 = vsel %vm33, %v576, 0
    %581 = vmatprep.subr.mxu0 0.0
    %582 = vmatpush1.xpose.msra.mxu0 %v579
    %583 = vmatprep.subr.mxu0 0.0
    %584 = vmatpush1.xpose.msra.mxu0 0.0
    %585 = vmatprep.subr.mxu0 0.0
    %586 = vmatpush1.xpose.msra.mxu0 0.0
    %587 = vmatprep.subr.mxu0 0.0
    %588 = vmatpush1.xpose.msra.mxu0 0.0
    %589 = vmatprep.subr.mxu0 0.0
    %590 = vmatpush1.xpose.msra.mxu0 0.0
    %591 = vmatprep.subr.mxu0 0.0
    %592 = vmatpush1.xpose.msra.mxu0 0.0
    %593 = vmatprep.subr.mxu0 0.0
    %594 = vmatpush1.xpose.msra.mxu0 0.0
    %595 = vmatprep.subr.mxu0 0.0
    %596 = vmatpush1.xpose.msra.mxu0 0.0
    %597 = vmatprep.subr.mxu0 0.0
    %598 = vmatpush1.xpose.msra.mxu0 0.0
    %599 = vmatprep.subr.mxu0 0.0
    %600 = vmatpush1.xpose.msra.mxu0 0.0
    %601 = vmatprep.subr.mxu0 0.0
    %602 = vmatpush1.xpose.msra.mxu0 0.0
    %603 = vmatprep.subr.mxu0 0.0
    %604 = vmatpush1.xpose.msra.mxu0 0.0
    %605 = vmatprep.subr.mxu0 0.0
    %606 = vmatpush1.xpose.msra.mxu0 0.0
    %607 = vmatprep.subr.mxu0 0.0
    %608 = vmatpush1.xpose.msra.mxu0 0.0
    %609 = vmatprep.subr.mxu0 0.0
    %610 = vmatpush1.xpose.msra.mxu0 0.0
    %611 = vmatprep.subr.mxu0 0.0
    %612 = vmatpush1.xpose.msra.mxu0 0.0
    %613 = vmatprep.subr.mxu0 0.0
    %614 = vmatpush1.xpose.msra.mxu0 0.0
    %615 = vmatprep.subr.mxu0 0.0
    %616 = vmatpush1.xpose.msra.mxu0 0.0
    %617 = vmatprep.subr.mxu0 0.0
    %618 = vmatpush1.xpose.msra.mxu0 0.0
    %619 = vmatprep.subr.mxu0 0.0
    %620 = vmatpush1.xpose.msra.mxu0 0.0
    %621 = vmatprep.subr.mxu0 0.0
    %622 = vmatpush1.xpose.msra.mxu0 0.0
    %623 = vmatprep.subr.mxu0 0.0
    %624 = vmatpush1.xpose.msra.mxu0 0.0
    %625 = vmatprep.subr.mxu0 0.0
    %626 = vmatpush1.xpose.msra.mxu0 0.0
    %627 = vmatprep.subr.mxu0 0.0
    %628 = vmatpush1.xpose.msra.mxu0 0.0
    %629 = vmatprep.subr.mxu0 0.0
    %630 = vmatpush1.xpose.msra.mxu0 0.0
    %631 = vmatprep.subr.mxu0 0.0
    %632 = vmatpush1.xpose.msra.mxu0 0.0
    %633 = vmatprep.subr.mxu0 0.0
    %634 = vmatpush1.xpose.msra.mxu0 0.0
    %635 = vmatprep.subr.mxu0 0.0
    %636 = vmatpush1.xpose.msra.mxu0 0.0
    %637 = vmatprep.subr.mxu0 0.0
    %638 = vmatpush1.xpose.msra.mxu0 0.0
    %639 = vmatprep.subr.mxu0 0.0
    %640 = vmatpush1.xpose.msra.mxu0 0.0
    %641 = vmatprep.subr.mxu0 0.0
    %642 = vmatpush1.xpose.msra.mxu0 0.0
    %643 = vmatprep.subr.mxu0 0.0
    %644 = vmatpush1.xpose.msra.mxu0 0.0
    %645 = vmatprep.mubr.f32.mxu0 0.0
    %646 = vmatmul.mubr.f32.gmra.mrb[0].mxu0 %v577
    %v647 = vpop.f32.mrb[0].mxu0
    %v648 = vadd.f32 0.0, %v647
    %v649 = vpop.f32.mrb[0].mxu0
    %650 = vdwg.mxu0
    %651 = vrot.lane.b32.xlu0 %v266, 96
    %v652 = vpop.permute.xlu0 %651
    %v653 = vsel %vm33, %v266, 0
    %v655 = vsel %vm33, %v652, 0
    %657 = vmatprep.subr.mxu0 0.0
    %658 = vmatpush1.xpose.msra.mxu0 %v655
    %659 = vmatprep.subr.mxu0 0.0
    %660 = vmatpush1.xpose.msra.mxu0 0.0
    %661 = vmatprep.subr.mxu0 0.0
    %662 = vmatpush1.xpose.msra.mxu0 0.0
    %663 = vmatprep.subr.mxu0 0.0
    %664 = vmatpush1.xpose.msra.mxu0 0.0
    %665 = vmatprep.subr.mxu0 0.0
    %666 = vmatpush1.xpose.msra.mxu0 0.0
    %667 = vmatprep.subr.mxu0 0.0
    %668 = vmatpush1.xpose.msra.mxu0 0.0
    %669 = vmatprep.subr.mxu0 0.0
    %670 = vmatpush1.xpose.msra.mxu0 0.0
    %671 = vmatprep.subr.mxu0 0.0
    %672 = vmatpush1.xpose.msra.mxu0 0.0
    %673 = vmatprep.subr.mxu0 0.0
    %674 = vmatpush1.xpose.msra.mxu0 0.0
    %675 = vmatprep.subr.mxu0 0.0
    %676 = vmatpush1.xpose.msra.mxu0 0.0
    %677 = vmatprep.subr.mxu0 0.0
    %678 = vmatpush1.xpose.msra.mxu0 0.0
    %679 = vmatprep.subr.mxu0 0.0
    %680 = vmatpush1.xpose.msra.mxu0 0.0
    %681 = vmatprep.subr.mxu0 0.0
    %682 = vmatpush1.xpose.msra.mxu0 0.0
    %683 = vmatprep.subr.mxu0 0.0
    %684 = vmatpush1.xpose.msra.mxu0 0.0
    %685 = vmatprep.subr.mxu0 0.0
    %686 = vmatpush1.xpose.msra.mxu0 0.0
    %687 = vmatprep.subr.mxu0 0.0
    %688 = vmatpush1.xpose.msra.mxu0 0.0
    %689 = vmatprep.subr.mxu0 0.0
    %690 = vmatpush1.xpose.msra.mxu0 0.0
    %691 = vmatprep.subr.mxu0 0.0
    %692 = vmatpush1.xpose.msra.mxu0 0.0
    %693 = vmatprep.subr.mxu0 0.0
    %694 = vmatpush1.xpose.msra.mxu0 0.0
    %695 = vmatprep.subr.mxu0 0.0
    %696 = vmatpush1.xpose.msra.mxu0 0.0
    %697 = vmatprep.subr.mxu0 0.0
    %698 = vmatpush1.xpose.msra.mxu0 0.0
    %699 = vmatprep.subr.mxu0 0.0
    %700 = vmatpush1.xpose.msra.mxu0 0.0
    %701 = vmatprep.subr.mxu0 0.0
    %702 = vmatpush1.xpose.msra.mxu0 0.0
    %703 = vmatprep.subr.mxu0 0.0
    %704 = vmatpush1.xpose.msra.mxu0 0.0
    %705 = vmatprep.subr.mxu0 0.0
    %706 = vmatpush1.xpose.msra.mxu0 0.0
    %707 = vmatprep.subr.mxu0 0.0
    %708 = vmatpush1.xpose.msra.mxu0 0.0
    %709 = vmatprep.subr.mxu0 0.0
    %710 = vmatpush1.xpose.msra.mxu0 0.0
    %711 = vmatprep.subr.mxu0 0.0
    %712 = vmatpush1.xpose.msra.mxu0 0.0
    %713 = vmatprep.subr.mxu0 0.0
    %714 = vmatpush1.xpose.msra.mxu0 0.0
    %715 = vmatprep.subr.mxu0 0.0
    %716 = vmatpush1.xpose.msra.mxu0 0.0
    %717 = vmatprep.subr.mxu0 0.0
    %718 = vmatpush1.xpose.msra.mxu0 0.0
    %719 = vmatprep.subr.mxu0 0.0
    %720 = vmatpush1.xpose.msra.mxu0 0.0
    %721 = vmatprep.mubr.f32.mxu0 0.0
    %722 = vmatmul.mubr.f32.gmra.mrb[0].mxu0 %v653
    %v723 = vpop.f32.mrb[0].mxu0
    %v724 = vadd.f32 0.0, %v723
    %v725 = vpop.f32.mrb[0].mxu0
    %726 = vdwg.mxu0
    %727 = vrot.lane.b32.xlu0 %v268, 96
    %v728 = vpop.permute.xlu0 %727
    %v729 = vsel %vm33, %v268, 0
    %v731 = vsel %vm33, %v728, 0
    %733 = vmatprep.subr.mxu0 0.0
    %734 = vmatpush1.xpose.msra.mxu0 %v731
    %735 = vmatprep.subr.mxu0 0.0
    %736 = vmatpush1.xpose.msra.mxu0 0.0
    %737 = vmatprep.subr.mxu0 0.0
    %738 = vmatpush1.xpose.msra.mxu0 0.0
    %739 = vmatprep.subr.mxu0 0.0
    %740 = vmatpush1.xpose.msra.mxu0 0.0
    %741 = vmatprep.subr.mxu0 0.0
    %742 = vmatpush1.xpose.msra.mxu0 0.0
    %743 = vmatprep.subr.mxu0 0.0
    %744 = vmatpush1.xpose.msra.mxu0 0.0
    %745 = vmatprep.subr.mxu0 0.0
    %746 = vmatpush1.xpose.msra.mxu0 0.0
    %747 = vmatprep.subr.mxu0 0.0
    %748 = vmatpush1.xpose.msra.mxu0 0.0
    %749 = vmatprep.subr.mxu0 0.0
    %750 = vmatpush1.xpose.msra.mxu0 0.0
    %751 = vmatprep.subr.mxu0 0.0
    %752 = vmatpush1.xpose.msra.mxu0 0.0
    %753 = vmatprep.subr.mxu0 0.0
    %754 = vmatpush1.xpose.msra.mxu0 0.0
    %755 = vmatprep.subr.mxu0 0.0
    %756 = vmatpush1.xpose.msra.mxu0 0.0
    %757 = vmatprep.subr.mxu0 0.0
    %758 = vmatpush1.xpose.msra.mxu0 0.0
    %759 = vmatprep.subr.mxu0 0.0
    %760 = vmatpush1.xpose.msra.mxu0 0.0
    %761 = vmatprep.subr.mxu0 0.0
    %762 = vmatpush1.xpose.msra.mxu0 0.0
    %763 = vmatprep.subr.mxu0 0.0
    %764 = vmatpush1.xpose.msra.mxu0 0.0
    %765 = vmatprep.subr.mxu0 0.0
    %766 = vmatpush1.xpose.msra.mxu0 0.0
    %767 = vmatprep.subr.mxu0 0.0
    %768 = vmatpush1.xpose.msra.mxu0 0.0
    %769 = vmatprep.subr.mxu0 0.0
    %770 = vmatpush1.xpose.msra.mxu0 0.0
    %771 = vmatprep.subr.mxu0 0.0
    %772 = vmatpush1.xpose.msra.mxu0 0.0
    %773 = vmatprep.subr.mxu0 0.0
    %774 = vmatpush1.xpose.msra.mxu0 0.0
    %775 = vmatprep.subr.mxu0 0.0
    %776 = vmatpush1.xpose.msra.mxu0 0.0
    %777 = vmatprep.subr.mxu0 0.0
    %778 = vmatpush1.xpose.msra.mxu0 0.0
    %779 = vmatprep.subr.mxu0 0.0
    %780 = vmatpush1.xpose.msra.mxu0 0.0
    %781 = vmatprep.subr.mxu0 0.0
    %782 = vmatpush1.xpose.msra.mxu0 0.0
    %783 = vmatprep.subr.mxu0 0.0
    %784 = vmatpush1.xpose.msra.mxu0 0.0
    %785 = vmatprep.subr.mxu0 0.0
    %786 = vmatpush1.xpose.msra.mxu0 0.0
    %787 = vmatprep.subr.mxu0 0.0
    %788 = vmatpush1.xpose.msra.mxu0 0.0
    %789 = vmatprep.subr.mxu0 0.0
    %790 = vmatpush1.xpose.msra.mxu0 0.0
    %791 = vmatprep.subr.mxu0 0.0
    %792 = vmatpush1.xpose.msra.mxu0 0.0
    %793 = vmatprep.subr.mxu0 0.0
    %794 = vmatpush1.xpose.msra.mxu0 0.0
    %795 = vmatprep.subr.mxu0 0.0
    %796 = vmatpush1.xpose.msra.mxu0 0.0
    %797 = vmatprep.mubr.f32.mxu0 0.0
    %798 = vmatmul.mubr.f32.gmra.mrb[0].mxu0 %v729
    %v799 = vpop.f32.mrb[0].mxu0
    %v800 = vadd.f32 0.0, %v799
    %v801 = vpop.f32.mrb[0].mxu0
    %802 = vdwg.mxu0
    %803 = vrot.lane.b32.xlu0 %v270, 96
    %v804 = vpop.permute.xlu0 %803
    %v805 = vsel %vm33, %v270, 0
    %v807 = vsel %vm33, %v804, 0
    %809 = vmatprep.subr.mxu0 0.0
    %810 = vmatpush1.xpose.msra.mxu0 %v807
    %811 = vmatprep.subr.mxu0 0.0
    %812 = vmatpush1.xpose.msra.mxu0 0.0
    %813 = vmatprep.subr.mxu0 0.0
    %814 = vmatpush1.xpose.msra.mxu0 0.0
    %815 = vmatprep.subr.mxu0 0.0
    %816 = vmatpush1.xpose.msra.mxu0 0.0
    %817 = vmatprep.subr.mxu0 0.0
    %818 = vmatpush1.xpose.msra.mxu0 0.0
    %819 = vmatprep.subr.mxu0 0.0
    %820 = vmatpush1.xpose.msra.mxu0 0.0
    %821 = vmatprep.subr.mxu0 0.0
    %822 = vmatpush1.xpose.msra.mxu0 0.0
    %823 = vmatprep.subr.mxu0 0.0
    %824 = vmatpush1.xpose.msra.mxu0 0.0
    %825 = vmatprep.subr.mxu0 0.0
    %826 = vmatpush1.xpose.msra.mxu0 0.0
    %827 = vmatprep.subr.mxu0 0.0
    %828 = vmatpush1.xpose.msra.mxu0 0.0
    %829 = vmatprep.subr.mxu0 0.0
    %830 = vmatpush1.xpose.msra.mxu0 0.0
    %831 = vmatprep.subr.mxu0 0.0
    %832 = vmatpush1.xpose.msra.mxu0 0.0
    %833 = vmatprep.subr.mxu0 0.0
    %834 = vmatpush1.xpose.msra.mxu0 0.0
    %835 = vmatprep.subr.mxu0 0.0
    %836 = vmatpush1.xpose.msra.mxu0 0.0
    %837 = vmatprep.subr.mxu0 0.0
    %838 = vmatpush1.xpose.msra.mxu0 0.0
    %839 = vmatprep.subr.mxu0 0.0
    %840 = vmatpush1.xpose.msra.mxu0 0.0
    %841 = vmatprep.subr.mxu0 0.0
    %842 = vmatpush1.xpose.msra.mxu0 0.0
    %843 = vmatprep.subr.mxu0 0.0
    %844 = vmatpush1.xpose.msra.mxu0 0.0
    %845 = vmatprep.subr.mxu0 0.0
    %846 = vmatpush1.xpose.msra.mxu0 0.0
    %847 = vmatprep.subr.mxu0 0.0
    %848 = vmatpush1.xpose.msra.mxu0 0.0
    %849 = vmatprep.subr.mxu0 0.0
    %850 = vmatpush1.xpose.msra.mxu0 0.0
    %851 = vmatprep.subr.mxu0 0.0
    %852 = vmatpush1.xpose.msra.mxu0 0.0
    %853 = vmatprep.subr.mxu0 0.0
    %854 = vmatpush1.xpose.msra.mxu0 0.0
    %855 = vmatprep.subr.mxu0 0.0
    %856 = vmatpush1.xpose.msra.mxu0 0.0
    %857 = vmatprep.subr.mxu0 0.0
    %858 = vmatpush1.xpose.msra.mxu0 0.0
    %859 = vmatprep.subr.mxu0 0.0
    %860 = vmatpush1.xpose.msra.mxu0 0.0
    %861 = vmatprep.subr.mxu0 0.0
    %862 = vmatpush1.xpose.msra.mxu0 0.0
    %863 = vmatprep.subr.mxu0 0.0
    %864 = vmatpush1.xpose.msra.mxu0 0.0
    %865 = vmatprep.subr.mxu0 0.0
    %866 = vmatpush1.xpose.msra.mxu0 0.0
    %867 = vmatprep.subr.mxu0 0.0
    %868 = vmatpush1.xpose.msra.mxu0 0.0
    %869 = vmatprep.subr.mxu0 0.0
    %870 = vmatpush1.xpose.msra.mxu0 0.0
    %871 = vmatprep.subr.mxu0 0.0
    %872 = vmatpush1.xpose.msra.mxu0 0.0
    %873 = vmatprep.mubr.f32.mxu0 0.0
    %874 = vmatmul.mubr.f32.gmra.mrb[0].mxu0 %v805
    %v875 = vpop.f32.mrb[0].mxu0
    %v876 = vadd.f32 0.0, %v875
    %v877 = vpop.f32.mrb[0].mxu0
    %878 = vdwg.mxu0
    %v879 = vmul.f32 %v344, 0.35355338
    %v880 = vmul.f32 %v420, 0.35355338
    %v881 = vmul.f32 %v496, 0.35355338
    %v882 = vmul.f32 %v572, 0.35355338
    %v883 = vmul.f32 %v648, 0.35355338
    %v884 = vmul.f32 %v724, 0.35355338
    %v885 = vmul.f32 %v800, 0.35355338
    %v886 = vmul.f32 %v876, 0.35355338
    %v887 = vsel %vm33, %v879, -inf
    %888 = vmax.xlane.f32.xlu0 %v887
    %v889 = vpop.xlane.xlu0 %888
    %v890 = vsel %vm33, %v880, -inf
    %891 = vmax.xlane.f32.xlu0 %v890
    %v892 = vpop.xlane.xlu0 %891
    %v893 = vsel %vm33, %v881, -inf
    %894 = vmax.xlane.f32.xlu0 %v893
    %v895 = vpop.xlane.xlu0 %894
    %v896 = vsel %vm33, %v882, -inf
    %897 = vmax.xlane.f32.xlu0 %v896
    %v898 = vpop.xlane.xlu0 %897
    %v899 = vsel %vm33, %v883, -inf
    %900 = vmax.xlane.f32.xlu0 %v899
    %v901 = vpop.xlane.xlu0 %900
    %v902 = vsel %vm33, %v884, -inf
    %903 = vmax.xlane.f32.xlu0 %v902
    %v904 = vpop.xlane.xlu0 %903
    %v905 = vsel %vm33, %v885, -inf
    %906 = vmax.xlane.f32.xlu0 %v905
    %v907 = vpop.xlane.xlu0 %906
    %v908 = vsel %vm33, %v886, -inf
    %909 = vmax.xlane.f32.xlu0 %v908
    %v910 = vpop.xlane.xlu0 %909
    %v911 = vsub.f32 %v879, %v889
    %v912 = vsub.f32 %v880, %v892
    %v913 = vsub.f32 %v881, %v895
    %v914 = vsub.f32 %v882, %v898
    %v915 = vsub.f32 %v883, %v901
    %v916 = vsub.f32 %v884, %v904
    %v917 = vsub.f32 %v885, %v907
    %v918 = vsub.f32 %v886, %v910
    %v919 = vmul.f32 %v911, 1.442695
    %v920 = vpow.pop %v919
    %v921 = vmul.f32 %v912, 1.442695
    %v922 = vpow.pop %v921
    %v923 = vmul.f32 %v913, 1.442695
    %v924 = vpow.pop %v923
    %v925 = vmul.f32 %v914, 1.442695
    %v926 = vpow.pop %v925
    %v927 = vmul.f32 %v915, 1.442695
    %v928 = vpow.pop %v927
    %v929 = vmul.f32 %v916, 1.442695
    %v930 = vpow.pop %v929
    %v931 = vmul.f32 %v917, 1.442695
    %v932 = vpow.pop %v931
    %v933 = vmul.f32 %v918, 1.442695
    %v934 = vpow.pop %v933
    %v935 = vsel %vm33, %v920, 0.0
    %936 = vadd.xlane.f32.xlu0 %v935
    %v937 = vpop.xlane.xlu0 %936
    %v938 = vsel %vm33, %v922, 0.0
    %939 = vadd.xlane.f32.xlu0 %v938
    %v940 = vpop.xlane.xlu0 %939
    %v941 = vsel %vm33, %v924, 0.0
    %942 = vadd.xlane.f32.xlu0 %v941
    %v943 = vpop.xlane.xlu0 %942
    %v944 = vsel %vm33, %v926, 0.0
    %945 = vadd.xlane.f32.xlu0 %v944
    %v946 = vpop.xlane.xlu0 %945
    %v947 = vsel %vm33, %v928, 0.0
    %948 = vadd.xlane.f32.xlu0 %v947
    %v949 = vpop.xlane.xlu0 %948
    %v950 = vsel %vm33, %v930, 0.0
    %951 = vadd.xlane.f32.xlu0 %v950
    %v952 = vpop.xlane.xlu0 %951
    %v953 = vsel %vm33, %v932, 0.0
    %954 = vadd.xlane.f32.xlu0 %v953
    %v955 = vpop.xlane.xlu0 %954
    %v956 = vsel %vm33, %v934, 0.0
    %957 = vadd.xlane.f32.xlu0 %v956
    %v958 = vpop.xlane.xlu0 %957
    %v959 = vrcp.pop %v937
    %v960 = vmul.f32 %v920, %v959
    %v961 = vrcp.pop %v940
    %v962 = vmul.f32 %v922, %v961
    %v963 = vrcp.pop %v943
    %v964 = vmul.f32 %v924, %v963
    %v965 = vrcp.pop %v946
    %v966 = vmul.f32 %v926, %v965
    %v967 = vrcp.pop %v949
    %v968 = vmul.f32 %v928, %v967
    %v969 = vrcp.pop %v952
    %v970 = vmul.f32 %v930, %v969
    %v971 = vrcp.pop %v955
    %v972 = vmul.f32 %v932, %v971
    %v973 = vrcp.pop %v958
    %v974 = vmul.f32 %v934, %v973
    %975 = vrot.lane.b32.xlu0 %v249, 64
    %v976 = vpop.permute.xlu0 %975
    %v979 = vsel %vm33, %v960, 0
    %981 = vmatprep.subr.mxu0 0.0
    %982 = vmatpush1.msra.mxu0 %v976
    %983 = vmatprep.subr.mxu0 0.0
    %984 = vmatpush1.msra.mxu0 0.0
    %985 = vmatprep.subr.mxu0 0.0
    %986 = vmatpush1.msra.mxu0 0.0
    %987 = vmatprep.subr.mxu0 0.0
    %988 = vmatpush1.msra.mxu0 0.0
    %989 = vmatprep.subr.mxu0 0.0
    %990 = vmatpush1.msra.mxu0 0.0
    %991 = vmatprep.subr.mxu0 0.0
    %992 = vmatpush1.msra.mxu0 0.0
    %993 = vmatprep.subr.mxu0 0.0
    %994 = vmatpush1.msra.mxu0 0.0
    %995 = vmatprep.subr.mxu0 0.0
    %996 = vmatpush1.msra.mxu0 0.0
    %997 = vmatprep.subr.mxu0 0.0
    %998 = vmatpush1.msra.mxu0 0.0
    %999 = vmatprep.subr.mxu0 0.0
    %1000 = vmatpush1.msra.mxu0 0.0
    %1001 = vmatprep.subr.mxu0 0.0
    %1002 = vmatpush1.msra.mxu0 0.0
    %1003 = vmatprep.subr.mxu0 0.0
    %1004 = vmatpush1.msra.mxu0 0.0
    %1005 = vmatprep.subr.mxu0 0.0
    %1006 = vmatpush1.msra.mxu0 0.0
    %1007 = vmatprep.subr.mxu0 0.0
    %1008 = vmatpush1.msra.mxu0 0.0
    %1009 = vmatprep.subr.mxu0 0.0
    %1010 = vmatpush1.msra.mxu0 0.0
    %1011 = vmatprep.subr.mxu0 0.0
    %1012 = vmatpush1.msra.mxu0 0.0
    %1013 = vmatprep.subr.mxu0 0.0
    %1014 = vmatpush1.msra.mxu0 0.0
    %1015 = vmatprep.subr.mxu0 0.0
    %1016 = vmatpush1.msra.mxu0 0.0
    %1017 = vmatprep.subr.mxu0 0.0
    %1018 = vmatpush1.msra.mxu0 0.0
    %1019 = vmatprep.subr.mxu0 0.0
    %1020 = vmatpush1.msra.mxu0 0.0
    %1021 = vmatprep.subr.mxu0 0.0
    %1022 = vmatpush1.msra.mxu0 0.0
    %1023 = vmatprep.subr.mxu0 0.0
    %1024 = vmatpush1.msra.mxu0 0.0
    %1025 = vmatprep.subr.mxu0 0.0
    %1026 = vmatpush1.msra.mxu0 0.0
    %1027 = vmatprep.subr.mxu0 0.0
    %1028 = vmatpush1.msra.mxu0 0.0
    %1029 = vmatprep.subr.mxu0 0.0
    %1030 = vmatpush1.msra.mxu0 0.0
    %1031 = vmatprep.subr.mxu0 0.0
    %1032 = vmatpush1.msra.mxu0 0.0
    %1033 = vmatprep.subr.mxu0 0.0
    %1034 = vmatpush1.msra.mxu0 0.0
    %1035 = vmatprep.subr.mxu0 0.0
    %1036 = vmatpush1.msra.mxu0 0.0
    %1037 = vmatprep.subr.mxu0 0.0
    %1038 = vmatpush1.msra.mxu0 0.0
    %1039 = vmatprep.subr.mxu0 0.0
    %1040 = vmatpush1.msra.mxu0 0.0
    %1041 = vmatprep.subr.mxu0 0.0
    %1042 = vmatpush1.msra.mxu0 0.0
    %1043 = vmatprep.subr.mxu0 0.0
    %1044 = vmatpush1.msra.mxu0 0.0
    %1045 = vmatprep.mubr.f32.mxu0 0.0
    %1046 = vmatmul.mubr.f32.gmra.mrb[0].mxu0 %v979
    %v1047 = vpop.f32.mrb[0].mxu0
    %v1048 = vadd.f32 0.0, %v1047
    %v1049 = vpop.f32.mrb[0].mxu0
    %1050 = vdwg.mxu0
    %1051 = vrot.lane.b32.xlu0 %v254, 64
    %v1052 = vpop.permute.xlu0 %1051
    %v1055 = vsel %vm33, %v962, 0
    %1057 = vmatprep.subr.mxu0 0.0
    %1058 = vmatpush1.msra.mxu0 %v1052
    %1059 = vmatprep.subr.mxu0 0.0
    %1060 = vmatpush1.msra.mxu0 0.0
    %1061 = vmatprep.subr.mxu0 0.0
    %1062 = vmatpush1.msra.mxu0 0.0
    %1063 = vmatprep.subr.mxu0 0.0
    %1064 = vmatpush1.msra.mxu0 0.0
    %1065 = vmatprep.subr.mxu0 0.0
    %1066 = vmatpush1.msra.mxu0 0.0
    %1067 = vmatprep.subr.mxu0 0.0
    %1068 = vmatpush1.msra.mxu0 0.0
    %1069 = vmatprep.subr.mxu0 0.0
    %1070 = vmatpush1.msra.mxu0 0.0
    %1071 = vmatprep.subr.mxu0 0.0
    %1072 = vmatpush1.msra.mxu0 0.0
    %1073 = vmatprep.subr.mxu0 0.0
    %1074 = vmatpush1.msra.mxu0 0.0
    %1075 = vmatprep.subr.mxu0 0.0
    %1076 = vmatpush1.msra.mxu0 0.0
    %1077 = vmatprep.subr.mxu0 0.0
    %1078 = vmatpush1.msra.mxu0 0.0
    %1079 = vmatprep.subr.mxu0 0.0
    %1080 = vmatpush1.msra.mxu0 0.0
    %1081 = vmatprep.subr.mxu0 0.0
    %1082 = vmatpush1.msra.mxu0 0.0
    %1083 = vmatprep.subr.mxu0 0.0
    %1084 = vmatpush1.msra.mxu0 0.0
    %1085 = vmatprep.subr.mxu0 0.0
    %1086 = vmatpush1.msra.mxu0 0.0
    %1087 = vmatprep.subr.mxu0 0.0
    %1088 = vmatpush1.msra.mxu0 0.0
    %1089 = vmatprep.subr.mxu0 0.0
    %1090 = vmatpush1.msra.mxu0 0.0
    %1091 = vmatprep.subr.mxu0 0.0
    %1092 = vmatpush1.msra.mxu0 0.0
    %1093 = vmatprep.subr.mxu0 0.0
    %1094 = vmatpush1.msra.mxu0 0.0
    %1095 = vmatprep.subr.mxu0 0.0
    %1096 = vmatpush1.msra.mxu0 0.0
    %1097 = vmatprep.subr.mxu0 0.0
    %1098 = vmatpush1.msra.mxu0 0.0
    %1099 = vmatprep.subr.mxu0 0.0
    %1100 = vmatpush1.msra.mxu0 0.0
    %1101 = vmatprep.subr.mxu0 0.0
    %1102 = vmatpush1.msra.mxu0 0.0
    %1103 = vmatprep.subr.mxu0 0.0
    %1104 = vmatpush1.msra.mxu0 0.0
    %1105 = vmatprep.subr.mxu0 0.0
    %1106 = vmatpush1.msra.mxu0 0.0
    %1107 = vmatprep.subr.mxu0 0.0
    %1108 = vmatpush1.msra.mxu0 0.0
    %1109 = vmatprep.subr.mxu0 0.0
    %1110 = vmatpush1.msra.mxu0 0.0
    %1111 = vmatprep.subr.mxu0 0.0
    %1112 = vmatpush1.msra.mxu0 0.0
    %1113 = vmatprep.subr.mxu0 0.0
    %1114 = vmatpush1.msra.mxu0 0.0
    %1115 = vmatprep.subr.mxu0 0.0
    %1116 = vmatpush1.msra.mxu0 0.0
    %1117 = vmatprep.subr.mxu0 0.0
    %1118 = vmatpush1.msra.mxu0 0.0
    %1119 = vmatprep.subr.mxu0 0.0
    %1120 = vmatpush1.msra.mxu0 0.0
    %1121 = vmatprep.mubr.f32.mxu0 0.0
    %1122 = vmatmul.mubr.f32.gmra.mrb[0].mxu0 %v1055
    %v1123 = vpop.f32.mrb[0].mxu0
    %v1124 = vadd.f32 0.0, %v1123
    %v1125 = vpop.f32.mrb[0].mxu0
    %1126 = vdwg.mxu0
    %1127 = vrot.lane.b32.xlu0 %v260, 64
    %v1128 = vpop.permute.xlu0 %1127
    %v1131 = vsel %vm33, %v964, 0
    %1133 = vmatprep.subr.mxu0 0.0
    %1134 = vmatpush1.msra.mxu0 %v1128
    %1135 = vmatprep.subr.mxu0 0.0
    %1136 = vmatpush1.msra.mxu0 0.0
    %1137 = vmatprep.subr.mxu0 0.0
    %1138 = vmatpush1.msra.mxu0 0.0
    %1139 = vmatprep.subr.mxu0 0.0
    %1140 = vmatpush1.msra.mxu0 0.0
    %1141 = vmatprep.subr.mxu0 0.0
    %1142 = vmatpush1.msra.mxu0 0.0
    %1143 = vmatprep.subr.mxu0 0.0
    %1144 = vmatpush1.msra.mxu0 0.0
    %1145 = vmatprep.subr.mxu0 0.0
    %1146 = vmatpush1.msra.mxu0 0.0
    %1147 = vmatprep.subr.mxu0 0.0
    %1148 = vmatpush1.msra.mxu0 0.0
    %1149 = vmatprep.subr.mxu0 0.0
    %1150 = vmatpush1.msra.mxu0 0.0
    %1151 = vmatprep.subr.mxu0 0.0
    %1152 = vmatpush1.msra.mxu0 0.0
    %1153 = vmatprep.subr.mxu0 0.0
    %1154 = vmatpush1.msra.mxu0 0.0
    %1155 = vmatprep.subr.mxu0 0.0
    %1156 = vmatpush1.msra.mxu0 0.0
    %1157 = vmatprep.subr.mxu0 0.0
    %1158 = vmatpush1.msra.mxu0 0.0
    %1159 = vmatprep.subr.mxu0 0.0
    %1160 = vmatpush1.msra.mxu0 0.0
    %1161 = vmatprep.subr.mxu0 0.0
    %1162 = vmatpush1.msra.mxu0 0.0
    %1163 = vmatprep.subr.mxu0 0.0
    %1164 = vmatpush1.msra.mxu0 0.0
    %1165 = vmatprep.subr.mxu0 0.0
    %1166 = vmatpush1.msra.mxu0 0.0
    %1167 = vmatprep.subr.mxu0 0.0
    %1168 = vmatpush1.msra.mxu0 0.0
    %1169 = vmatprep.subr.mxu0 0.0
    %1170 = vmatpush1.msra.mxu0 0.0
    %1171 = vmatprep.subr.mxu0 0.0
    %1172 = vmatpush1.msra.mxu0 0.0
    %1173 = vmatprep.subr.mxu0 0.0
    %1174 = vmatpush1.msra.mxu0 0.0
    %1175 = vmatprep.subr.mxu0 0.0
    %1176 = vmatpush1.msra.mxu0 0.0
    %1177 = vmatprep.subr.mxu0 0.0
    %1178 = vmatpush1.msra.mxu0 0.0
    %1179 = vmatprep.subr.mxu0 0.0
    %1180 = vmatpush1.msra.mxu0 0.0
    %1181 = vmatprep.subr.mxu0 0.0
    %1182 = vmatpush1.msra.mxu0 0.0
    %1183 = vmatprep.subr.mxu0 0.0
    %1184 = vmatpush1.msra.mxu0 0.0
    %1185 = vmatprep.subr.mxu0 0.0
    %1186 = vmatpush1.msra.mxu0 0.0
    %1187 = vmatprep.subr.mxu0 0.0
    %1188 = vmatpush1.msra.mxu0 0.0
    %1189 = vmatprep.subr.mxu0 0.0
    %1190 = vmatpush1.msra.mxu0 0.0
    %1191 = vmatprep.subr.mxu0 0.0
    %1192 = vmatpush1.msra.mxu0 0.0
    %1193 = vmatprep.subr.mxu0 0.0
    %1194 = vmatpush1.msra.mxu0 0.0
    %1195 = vmatprep.subr.mxu0 0.0
    %1196 = vmatpush1.msra.mxu0 0.0
    %1197 = vmatprep.mubr.f32.mxu0 0.0
    %1198 = vmatmul.mubr.f32.gmra.mrb[0].mxu0 %v1131
    %v1199 = vpop.f32.mrb[0].mxu0
    %v1200 = vadd.f32 0.0, %v1199
    %v1201 = vpop.f32.mrb[0].mxu0
    %1202 = vdwg.mxu0
    %1203 = vrot.lane.b32.xlu0 %v262, 64
    %v1204 = vpop.permute.xlu0 %1203
    %v1207 = vsel %vm33, %v966, 0
    %1209 = vmatprep.subr.mxu0 0.0
    %1210 = vmatpush1.msra.mxu0 %v1204
    %1211 = vmatprep.subr.mxu0 0.0
    %1212 = vmatpush1.msra.mxu0 0.0
    %1213 = vmatprep.subr.mxu0 0.0
    %1214 = vmatpush1.msra.mxu0 0.0
    %1215 = vmatprep.subr.mxu0 0.0
    %1216 = vmatpush1.msra.mxu0 0.0
    %1217 = vmatprep.subr.mxu0 0.0
    %1218 = vmatpush1.msra.mxu0 0.0
    %1219 = vmatprep.subr.mxu0 0.0
    %1220 = vmatpush1.msra.mxu0 0.0
    %1221 = vmatprep.subr.mxu0 0.0
    %1222 = vmatpush1.msra.mxu0 0.0
    %1223 = vmatprep.subr.mxu0 0.0
    %1224 = vmatpush1.msra.mxu0 0.0
    %1225 = vmatprep.subr.mxu0 0.0
    %1226 = vmatpush1.msra.mxu0 0.0
    %1227 = vmatprep.subr.mxu0 0.0
    %1228 = vmatpush1.msra.mxu0 0.0
    %1229 = vmatprep.subr.mxu0 0.0
    %1230 = vmatpush1.msra.mxu0 0.0
    %1231 = vmatprep.subr.mxu0 0.0
    %1232 = vmatpush1.msra.mxu0 0.0
    %1233 = vmatprep.subr.mxu0 0.0
    %1234 = vmatpush1.msra.mxu0 0.0
    %1235 = vmatprep.subr.mxu0 0.0
    %1236 = vmatpush1.msra.mxu0 0.0
    %1237 = vmatprep.subr.mxu0 0.0
    %1238 = vmatpush1.msra.mxu0 0.0
    %1239 = vmatprep.subr.mxu0 0.0
    %1240 = vmatpush1.msra.mxu0 0.0
    %1241 = vmatprep.subr.mxu0 0.0
    %1242 = vmatpush1.msra.mxu0 0.0
    %1243 = vmatprep.subr.mxu0 0.0
    %1244 = vmatpush1.msra.mxu0 0.0
    %1245 = vmatprep.subr.mxu0 0.0
    %1246 = vmatpush1.msra.mxu0 0.0
    %1247 = vmatprep.subr.mxu0 0.0
    %1248 = vmatpush1.msra.mxu0 0.0
    %1249 = vmatprep.subr.mxu0 0.0
    %1250 = vmatpush1.msra.mxu0 0.0
    %1251 = vmatprep.subr.mxu0 0.0
    %1252 = vmatpush1.msra.mxu0 0.0
    %1253 = vmatprep.subr.mxu0 0.0
    %1254 = vmatpush1.msra.mxu0 0.0
    %1255 = vmatprep.subr.mxu0 0.0
    %1256 = vmatpush1.msra.mxu0 0.0
    %1257 = vmatprep.subr.mxu0 0.0
    %1258 = vmatpush1.msra.mxu0 0.0
    %1259 = vmatprep.subr.mxu0 0.0
    %1260 = vmatpush1.msra.mxu0 0.0
    %1261 = vmatprep.subr.mxu0 0.0
    %1262 = vmatpush1.msra.mxu0 0.0
    %1263 = vmatprep.subr.mxu0 0.0
    %1264 = vmatpush1.msra.mxu0 0.0
    %1265 = vmatprep.subr.mxu0 0.0
    %1266 = vmatpush1.msra.mxu0 0.0
    %1267 = vmatprep.subr.mxu0 0.0
    %1268 = vmatpush1.msra.mxu0 0.0
    %1269 = vmatprep.subr.mxu0 0.0
    %1270 = vmatpush1.msra.mxu0 0.0
    %1271 = vmatprep.subr.mxu0 0.0
    %1272 = vmatpush1.msra.mxu0 0.0
    %1273 = vmatprep.mubr.f32.mxu0 0.0
    %1274 = vmatmul.mubr.f32.gmra.mrb[0].mxu0 %v1207
    %v1275 = vpop.f32.mrb[0].mxu0
    %v1276 = vadd.f32 0.0, %v1275
    %v1277 = vpop.f32.mrb[0].mxu0
    %1278 = vdwg.mxu0
    %1279 = vrot.lane.b32.xlu0 %v264, 64
    %v1280 = vpop.permute.xlu0 %1279
    %v1283 = vsel %vm33, %v968, 0
    %1285 = vmatprep.subr.mxu0 0.0
    %1286 = vmatpush1.msra.mxu0 %v1280
    %1287 = vmatprep.subr.mxu0 0.0
    %1288 = vmatpush1.msra.mxu0 0.0
    %1289 = vmatprep.subr.mxu0 0.0
    %1290 = vmatpush1.msra.mxu0 0.0
    %1291 = vmatprep.subr.mxu0 0.0
    %1292 = vmatpush1.msra.mxu0 0.0
    %1293 = vmatprep.subr.mxu0 0.0
    %1294 = vmatpush1.msra.mxu0 0.0
    %1295 = vmatprep.subr.mxu0 0.0
    %1296 = vmatpush1.msra.mxu0 0.0
    %1297 = vmatprep.subr.mxu0 0.0
    %1298 = vmatpush1.msra.mxu0 0.0
    %1299 = vmatprep.subr.mxu0 0.0
    %1300 = vmatpush1.msra.mxu0 0.0
    %1301 = vmatprep.subr.mxu0 0.0
    %1302 = vmatpush1.msra.mxu0 0.0
    %1303 = vmatprep.subr.mxu0 0.0
    %1304 = vmatpush1.msra.mxu0 0.0
    %1305 = vmatprep.subr.mxu0 0.0
    %1306 = vmatpush1.msra.mxu0 0.0
    %1307 = vmatprep.subr.mxu0 0.0
    %1308 = vmatpush1.msra.mxu0 0.0
    %1309 = vmatprep.subr.mxu0 0.0
    %1310 = vmatpush1.msra.mxu0 0.0
    %1311 = vmatprep.subr.mxu0 0.0
    %1312 = vmatpush1.msra.mxu0 0.0
    %1313 = vmatprep.subr.mxu0 0.0
    %1314 = vmatpush1.msra.mxu0 0.0
    %1315 = vmatprep.subr.mxu0 0.0
    %1316 = vmatpush1.msra.mxu0 0.0
    %1317 = vmatprep.subr.mxu0 0.0
    %1318 = vmatpush1.msra.mxu0 0.0
    %1319 = vmatprep.subr.mxu0 0.0
    %1320 = vmatpush1.msra.mxu0 0.0
    %1321 = vmatprep.subr.mxu0 0.0
    %1322 = vmatpush1.msra.mxu0 0.0
    %1323 = vmatprep.subr.mxu0 0.0
    %1324 = vmatpush1.msra.mxu0 0.0
    %1325 = vmatprep.subr.mxu0 0.0
    %1326 = vmatpush1.msra.mxu0 0.0
    %1327 = vmatprep.subr.mxu0 0.0
    %1328 = vmatpush1.msra.mxu0 0.0
    %1329 = vmatprep.subr.mxu0 0.0
    %1330 = vmatpush1.msra.mxu0 0.0
    %1331 = vmatprep.subr.mxu0 0.0
    %1332 = vmatpush1.msra.mxu0 0.0
    %1333 = vmatprep.subr.mxu0 0.0
    %1334 = vmatpush1.msra.mxu0 0.0
    %1335 = vmatprep.subr.mxu0 0.0
    %1336 = vmatpush1.msra.mxu0 0.0
    %1337 = vmatprep.subr.mxu0 0.0
    %1338 = vmatpush1.msra.mxu0 0.0
    %1339 = vmatprep.subr.mxu0 0.0
    %1340 = vmatpush1.msra.mxu0 0.0
    %1341 = vmatprep.subr.mxu0 0.0
    %1342 = vmatpush1.msra.mxu0 0.0
    %1343 = vmatprep.subr.mxu0 0.0
    %1344 = vmatpush1.msra.mxu0 0.0
    %1345 = vmatprep.subr.mxu0 0.0
    %1346 = vmatpush1.msra.mxu0 0.0
    %1347 = vmatprep.subr.mxu0 0.0
    %1348 = vmatpush1.msra.mxu0 0.0
    %1349 = vmatprep.mubr.f32.mxu0 0.0
    %1350 = vmatmul.mubr.f32.gmra.mrb[0].mxu0 %v1283
    %v1351 = vpop.f32.mrb[0].mxu0
    %v1352 = vadd.f32 0.0, %v1351
    %v1353 = vpop.f32.mrb[0].mxu0
    %1354 = vdwg.mxu0
    %1355 = vrot.lane.b32.xlu0 %v266, 64
    %v1356 = vpop.permute.xlu0 %1355
    %v1359 = vsel %vm33, %v970, 0
    %1361 = vmatprep.subr.mxu0 0.0
    %1362 = vmatpush1.msra.mxu0 %v1356
    %1363 = vmatprep.subr.mxu0 0.0
    %1364 = vmatpush1.msra.mxu0 0.0
    %1365 = vmatprep.subr.mxu0 0.0
    %1366 = vmatpush1.msra.mxu0 0.0
    %1367 = vmatprep.subr.mxu0 0.0
    %1368 = vmatpush1.msra.mxu0 0.0
    %1369 = vmatprep.subr.mxu0 0.0
    %1370 = vmatpush1.msra.mxu0 0.0
    %1371 = vmatprep.subr.mxu0 0.0
    %1372 = vmatpush1.msra.mxu0 0.0
    %1373 = vmatprep.subr.mxu0 0.0
    %1374 = vmatpush1.msra.mxu0 0.0
    %1375 = vmatprep.subr.mxu0 0.0
    %1376 = vmatpush1.msra.mxu0 0.0
    %1377 = vmatprep.subr.mxu0 0.0
    %1378 = vmatpush1.msra.mxu0 0.0
    %1379 = vmatprep.subr.mxu0 0.0
    %1380 = vmatpush1.msra.mxu0 0.0
    %1381 = vmatprep.subr.mxu0 0.0
    %1382 = vmatpush1.msra.mxu0 0.0
    %1383 = vmatprep.subr.mxu0 0.0
    %1384 = vmatpush1.msra.mxu0 0.0
    %1385 = vmatprep.subr.mxu0 0.0
    %1386 = vmatpush1.msra.mxu0 0.0
    %1387 = vmatprep.subr.mxu0 0.0
    %1388 = vmatpush1.msra.mxu0 0.0
    %1389 = vmatprep.subr.mxu0 0.0
    %1390 = vmatpush1.msra.mxu0 0.0
    %1391 = vmatprep.subr.mxu0 0.0
    %1392 = vmatpush1.msra.mxu0 0.0
    %1393 = vmatprep.subr.mxu0 0.0
    %1394 = vmatpush1.msra.mxu0 0.0
    %1395 = vmatprep.subr.mxu0 0.0
    %1396 = vmatpush1.msra.mxu0 0.0
    %1397 = vmatprep.subr.mxu0 0.0
    %1398 = vmatpush1.msra.mxu0 0.0
    %1399 = vmatprep.subr.mxu0 0.0
    %1400 = vmatpush1.msra.mxu0 0.0
    %1401 = vmatprep.subr.mxu0 0.0
    %1402 = vmatpush1.msra.mxu0 0.0
    %1403 = vmatprep.subr.mxu0 0.0
    %1404 = vmatpush1.msra.mxu0 0.0
    %1405 = vmatprep.subr.mxu0 0.0
    %1406 = vmatpush1.msra.mxu0 0.0
    %1407 = vmatprep.subr.mxu0 0.0
    %1408 = vmatpush1.msra.mxu0 0.0
    %1409 = vmatprep.subr.mxu0 0.0
    %1410 = vmatpush1.msra.mxu0 0.0
    %1411 = vmatprep.subr.mxu0 0.0
    %1412 = vmatpush1.msra.mxu0 0.0
    %1413 = vmatprep.subr.mxu0 0.0
    %1414 = vmatpush1.msra.mxu0 0.0
    %1415 = vmatprep.subr.mxu0 0.0
    %1416 = vmatpush1.msra.mxu0 0.0
    %1417 = vmatprep.subr.mxu0 0.0
    %1418 = vmatpush1.msra.mxu0 0.0
    %1419 = vmatprep.subr.mxu0 0.0
    %1420 = vmatpush1.msra.mxu0 0.0
    %1421 = vmatprep.subr.mxu0 0.0
    %1422 = vmatpush1.msra.mxu0 0.0
    %1423 = vmatprep.subr.mxu0 0.0
    %1424 = vmatpush1.msra.mxu0 0.0
    %1425 = vmatprep.mubr.f32.mxu0 0.0
    %1426 = vmatmul.mubr.f32.gmra.mrb[0].mxu0 %v1359
    %v1427 = vpop.f32.mrb[0].mxu0
    %v1428 = vadd.f32 0.0, %v1427
    %v1429 = vpop.f32.mrb[0].mxu0
    %1430 = vdwg.mxu0
    %1431 = vrot.lane.b32.xlu0 %v268, 64
    %v1432 = vpop.permute.xlu0 %1431
    %v1435 = vsel %vm33, %v972, 0
    %1437 = vmatprep.subr.mxu0 0.0
    %1438 = vmatpush1.msra.mxu0 %v1432
    %1439 = vmatprep.subr.mxu0 0.0
    %1440 = vmatpush1.msra.mxu0 0.0
    %1441 = vmatprep.subr.mxu0 0.0
    %1442 = vmatpush1.msra.mxu0 0.0
    %1443 = vmatprep.subr.mxu0 0.0
    %1444 = vmatpush1.msra.mxu0 0.0
    %1445 = vmatprep.subr.mxu0 0.0
    %1446 = vmatpush1.msra.mxu0 0.0
    %1447 = vmatprep.subr.mxu0 0.0
    %1448 = vmatpush1.msra.mxu0 0.0
    %1449 = vmatprep.subr.mxu0 0.0
    %1450 = vmatpush1.msra.mxu0 0.0
    %1451 = vmatprep.subr.mxu0 0.0
    %1452 = vmatpush1.msra.mxu0 0.0
    %1453 = vmatprep.subr.mxu0 0.0
    %1454 = vmatpush1.msra.mxu0 0.0
    %1455 = vmatprep.subr.mxu0 0.0
    %1456 = vmatpush1.msra.mxu0 0.0
    %1457 = vmatprep.subr.mxu0 0.0
    %1458 = vmatpush1.msra.mxu0 0.0
    %1459 = vmatprep.subr.mxu0 0.0
    %1460 = vmatpush1.msra.mxu0 0.0
    %1461 = vmatprep.subr.mxu0 0.0
    %1462 = vmatpush1.msra.mxu0 0.0
    %1463 = vmatprep.subr.mxu0 0.0
    %1464 = vmatpush1.msra.mxu0 0.0
    %1465 = vmatprep.subr.mxu0 0.0
    %1466 = vmatpush1.msra.mxu0 0.0
    %1467 = vmatprep.subr.mxu0 0.0
    %1468 = vmatpush1.msra.mxu0 0.0
    %1469 = vmatprep.subr.mxu0 0.0
    %1470 = vmatpush1.msra.mxu0 0.0
    %1471 = vmatprep.subr.mxu0 0.0
    %1472 = vmatpush1.msra.mxu0 0.0
    %1473 = vmatprep.subr.mxu0 0.0
    %1474 = vmatpush1.msra.mxu0 0.0
    %1475 = vmatprep.subr.mxu0 0.0
    %1476 = vmatpush1.msra.mxu0 0.0
    %1477 = vmatprep.subr.mxu0 0.0
    %1478 = vmatpush1.msra.mxu0 0.0
    %1479 = vmatprep.subr.mxu0 0.0
    %1480 = vmatpush1.msra.mxu0 0.0
    %1481 = vmatprep.subr.mxu0 0.0
    %1482 = vmatpush1.msra.mxu0 0.0
    %1483 = vmatprep.subr.mxu0 0.0
    %1484 = vmatpush1.msra.mxu0 0.0
    %1485 = vmatprep.subr.mxu0 0.0
    %1486 = vmatpush1.msra.mxu0 0.0
    %1487 = vmatprep.subr.mxu0 0.0
    %1488 = vmatpush1.msra.mxu0 0.0
    %1489 = vmatprep.subr.mxu0 0.0
    %1490 = vmatpush1.msra.mxu0 0.0
    %1491 = vmatprep.subr.mxu0 0.0
    %1492 = vmatpush1.msra.mxu0 0.0
    %1493 = vmatprep.subr.mxu0 0.0
    %1494 = vmatpush1.msra.mxu0 0.0
    %1495 = vmatprep.subr.mxu0 0.0
    %1496 = vmatpush1.msra.mxu0 0.0
    %1497 = vmatprep.subr.mxu0 0.0
    %1498 = vmatpush1.msra.mxu0 0.0
    %1499 = vmatprep.subr.mxu0 0.0
    %1500 = vmatpush1.msra.mxu0 0.0
    %1501 = vmatprep.mubr.f32.mxu0 0.0
    %1502 = vmatmul.mubr.f32.gmra.mrb[0].mxu0 %v1435
    %v1503 = vpop.f32.mrb[0].mxu0
    %v1504 = vadd.f32 0.0, %v1503
    %v1505 = vpop.f32.mrb[0].mxu0
    %1506 = vdwg.mxu0
    %1507 = vrot.lane.b32.xlu0 %v270, 64
    %v1508 = vpop.permute.xlu0 %1507
    %v1511 = vsel %vm33, %v974, 0
    %1513 = vmatprep.subr.mxu0 0.0
    %1514 = vmatpush1.msra.mxu0 %v1508
    %1515 = vmatprep.subr.mxu0 0.0
    %1516 = vmatpush1.msra.mxu0 0.0
    %1517 = vmatprep.subr.mxu0 0.0
    %1518 = vmatpush1.msra.mxu0 0.0
    %1519 = vmatprep.subr.mxu0 0.0
    %1520 = vmatpush1.msra.mxu0 0.0
    %1521 = vmatprep.subr.mxu0 0.0
    %1522 = vmatpush1.msra.mxu0 0.0
    %1523 = vmatprep.subr.mxu0 0.0
    %1524 = vmatpush1.msra.mxu0 0.0
    %1525 = vmatprep.subr.mxu0 0.0
    %1526 = vmatpush1.msra.mxu0 0.0
    %1527 = vmatprep.subr.mxu0 0.0
    %1528 = vmatpush1.msra.mxu0 0.0
    %1529 = vmatprep.subr.mxu0 0.0
    %1530 = vmatpush1.msra.mxu0 0.0
    %1531 = vmatprep.subr.mxu0 0.0
    %1532 = vmatpush1.msra.mxu0 0.0
    %1533 = vmatprep.subr.mxu0 0.0
    %1534 = vmatpush1.msra.mxu0 0.0
    %1535 = vmatprep.subr.mxu0 0.0
    %1536 = vmatpush1.msra.mxu0 0.0
    %1537 = vmatprep.subr.mxu0 0.0
    %1538 = vmatpush1.msra.mxu0 0.0
    %1539 = vmatprep.subr.mxu0 0.0
    %1540 = vmatpush1.msra.mxu0 0.0
    %1541 = vmatprep.subr.mxu0 0.0
    %1542 = vmatpush1.msra.mxu0 0.0
    %1543 = vmatprep.subr.mxu0 0.0
    %1544 = vmatpush1.msra.mxu0 0.0
    %1545 = vmatprep.subr.mxu0 0.0
    %1546 = vmatpush1.msra.mxu0 0.0
    %1547 = vmatprep.subr.mxu0 0.0
    %1548 = vmatpush1.msra.mxu0 0.0
    %1549 = vmatprep.subr.mxu0 0.0
    %1550 = vmatpush1.msra.mxu0 0.0
    %1551 = vmatprep.subr.mxu0 0.0
    %1552 = vmatpush1.msra.mxu0 0.0
    %1553 = vmatprep.subr.mxu0 0.0
    %1554 = vmatpush1.msra.mxu0 0.0
    %1555 = vmatprep.subr.mxu0 0.0
    %1556 = vmatpush1.msra.mxu0 0.0
    %1557 = vmatprep.subr.mxu0 0.0
    %1558 = vmatpush1.msra.mxu0 0.0
    %1559 = vmatprep.subr.mxu0 0.0
    %1560 = vmatpush1.msra.mxu0 0.0
    %1561 = vmatprep.subr.mxu0 0.0
    %1562 = vmatpush1.msra.mxu0 0.0
    %1563 = vmatprep.subr.mxu0 0.0
    %1564 = vmatpush1.msra.mxu0 0.0
    %1565 = vmatprep.subr.mxu0 0.0
    %1566 = vmatpush1.msra.mxu0 0.0
    %1567 = vmatprep.subr.mxu0 0.0
    %1568 = vmatpush1.msra.mxu0 0.0
    %1569 = vmatprep.subr.mxu0 0.0
    %1570 = vmatpush1.msra.mxu0 0.0
    %1571 = vmatprep.subr.mxu0 0.0
    %1572 = vmatpush1.msra.mxu0 0.0
    %1573 = vmatprep.subr.mxu0 0.0
    %1574 = vmatpush1.msra.mxu0 0.0
    %1575 = vmatprep.subr.mxu0 0.0
    %1576 = vmatpush1.msra.mxu0 0.0
    %1577 = vmatprep.mubr.f32.mxu0 0.0
    %1578 = vmatmul.mubr.f32.gmra.mrb[0].mxu0 %v1511
    %v1579 = vpop.f32.mrb[0].mxu0
    %v1580 = vadd.f32 0.0, %v1579
    %v1581 = vpop.f32.mrb[0].mxu0
    %1582 = vdwg.mxu0
    %1585 = vrot.lane.b32.xlu0 %v1200, 8
    %v1586 = vpop.permute.xlu0 %1585
    %1587 = vrot.lane.b32.xlu0 %v1276, 8
    %v1588 = vpop.permute.xlu0 %1587
    %1593 = vrot.lane.b32.xlu0 %v1352, 16
    %v1594 = vpop.permute.xlu0 %1593
    %1595 = vrot.lane.b32.xlu0 %v1428, 16
    %v1596 = vpop.permute.xlu0 %1595
    %1601 = vrot.lane.b32.xlu0 %v1504, 24
    %v1602 = vpop.permute.xlu0 %1601
    %1603 = vrot.lane.b32.xlu0 %v1580, 24
    %v1604 = vpop.permute.xlu0 %1603
    %v1607 = vsel %vm33, %v1048, %v1586
    %v1608 = vsel %vm33, %v1124, %v1588
    %vm1609 = vcmask 130048
    %v1610 = vsel %vm1609, %v1607, %v1594
    %v1611 = vsel %vm1609, %v1608, %v1596
    %vm1612 = vcmask 195584
    %v1613 = vsel %vm1612, %v1610, %v1602
    %v1614 = vsel %vm1612, %v1611, %v1604
    %v1615 = vld [vmem:[#allocation2 + $0x60] sm:$0xff]
    %v1616 = vld [vmem:[#allocation2 + $0x68] sm:$0xff]
    %v1617 = vld [vmem:[#allocation2 + $0x70] sm:$0xff]
    %v1618 = vld [vmem:[#allocation2 + $0x78] sm:$0xff]
    %v1619 = vld [vmem:[#allocation2 + $0xe1] sm:$0x1]
    %v1620 = vlaneseq
    %v1621 = vshrl.u32 %v1620, 7
    %v1622 = vsub.s32 0, %v1621
    %v1623 = vrot.slane %v1619, %v1622
    %v1625 = vsel %vm119, %v1613, 0
    %v1628 = vsel %vm119, %v1614, 0
    %1630 = vmatprep.subr.mxu0 0.0
    %1631 = vmatpush1.msra.mxu0 %v1615
    %1632 = vmatprep.subr.mxu0 0.0
    %1633 = vmatpush1.msra.mxu0 %v1616
    %1634 = vmatprep.subr.mxu0 0.0
    %1635 = vmatpush1.msra.mxu0 %v1617
    %1636 = vmatprep.subr.mxu0 0.0
    %1637 = vmatpush1.msra.mxu0 %v1618
    %1638 = vmatprep.subr.mxu0 0.0
    %1639 = vmatpush1.msra.mxu0 0.0
    %1640 = vmatprep.subr.mxu0 0.0
    %1641 = vmatpush1.msra.mxu0 0.0
    %1642 = vmatprep.subr.mxu0 0.0
    %1643 = vmatpush1.msra.mxu0 0.0
    %1644 = vmatprep.subr.mxu0 0.0
    %1645 = vmatpush1.msra.mxu0 0.0
    %1646 = vmatprep.subr.mxu0 0.0
    %1647 = vmatpush1.msra.mxu0 0.0
    %1648 = vmatprep.subr.mxu0 0.0
    %1649 = vmatpush1.msra.mxu0 0.0
    %1650 = vmatprep.subr.mxu0 0.0
    %1651 = vmatpush1.msra.mxu0 0.0
    %1652 = vmatprep.subr.mxu0 0.0
    %1653 = vmatpush1.msra.mxu0 0.0
    %1654 = vmatprep.subr.mxu0 0.0
    %1655 = vmatpush1.msra.mxu0 0.0
    %1656 = vmatprep.subr.mxu0 0.0
    %1657 = vmatpush1.msra.mxu0 0.0
    %1658 = vmatprep.subr.mxu0 0.0
    %1659 = vmatpush1.msra.mxu0 0.0
    %1660 = vmatprep.subr.mxu0 0.0
    %1661 = vmatpush1.msra.mxu0 0.0
    %1662 = vmatprep.subr.mxu0 0.0
    %1663 = vmatpush1.msra.mxu0 0.0
    %1664 = vmatprep.subr.mxu0 0.0
    %1665 = vmatpush1.msra.mxu0 0.0
    %1666 = vmatprep.subr.mxu0 0.0
    %1667 = vmatpush1.msra.mxu0 0.0
    %1668 = vmatprep.subr.mxu0 0.0
    %1669 = vmatpush1.msra.mxu0 0.0
    %1670 = vmatprep.subr.mxu0 0.0
    %1671 = vmatpush1.msra.mxu0 0.0
    %1672 = vmatprep.subr.mxu0 0.0
    %1673 = vmatpush1.msra.mxu0 0.0
    %1674 = vmatprep.subr.mxu0 0.0
    %1675 = vmatpush1.msra.mxu0 0.0
    %1676 = vmatprep.subr.mxu0 0.0
    %1677 = vmatpush1.msra.mxu0 0.0
    %1678 = vmatprep.subr.mxu0 0.0
    %1679 = vmatpush1.msra.mxu0 0.0
    %1680 = vmatprep.subr.mxu0 0.0
    %1681 = vmatpush1.msra.mxu0 0.0
    %1682 = vmatprep.subr.mxu0 0.0
    %1683 = vmatpush1.msra.mxu0 0.0
    %1684 = vmatprep.subr.mxu0 0.0
    %1685 = vmatpush1.msra.mxu0 0.0
    %1686 = vmatprep.subr.mxu0 0.0
    %1687 = vmatpush1.msra.mxu0 0.0
    %1688 = vmatprep.subr.mxu0 0.0
    %1689 = vmatpush1.msra.mxu0 0.0
    %1690 = vmatprep.subr.mxu0 0.0
    %1691 = vmatpush1.msra.mxu0 0.0
    %1692 = vmatprep.subr.mxu0 0.0
    %1693 = vmatpush1.msra.mxu0 0.0
    %1694 = vmatprep.mubr.f32.mxu0 0.0
    %1695 = vmatmul.mubr.f32.gmra.mrb[0].mxu0 %v1625
    %v1696 = vpop.f32.mrb[0].mxu0
    %v1697 = vadd.f32 %v1623, %v1696
    %v1698 = vpop.f32.mrb[0].mxu0
    %1699 = vmatprep.mubr.f32.mxu0 0.0
    %1700 = vmatmul.mubr.f32.gmra.mrb[0].mxu0 %v1628
    %v1701 = vpop.f32.mrb[0].mxu0
    %v1702 = vadd.f32 %v1623, %v1701
    %v1703 = vpop.f32.mrb[0].mxu0
    %1704 = vdwg.mxu0
    %v1705 = vadd.f32 %v1697, %v165
    %v1706 = vadd.f32 %v1702, %v166
    %v1707 = vsel %vm119, %v1705, 0.0
    %1708 = vadd.xlane.f32.xlu0 %v1707
    %v1709 = vpop.xlane.xlu0 %1708
    %v1710 = vsel %vm119, %v1706, 0.0
    %1711 = vadd.xlane.f32.xlu0 %v1710
    %v1712 = vpop.xlane.xlu0 %1711
    %v1713 = vmul.f32 %v1709, %v126
    %v1714 = vmul.f32 %v1712, %v126
    %v1715 = vmul.f32 %v1705, %v1705
    %v1716 = vmul.f32 %v1706, %v1706
    %v1717 = vsel %vm119, %v1715, 0.0
    %1718 = vadd.xlane.f32.xlu0 %v1717
    %v1719 = vpop.xlane.xlu0 %1718
    %v1720 = vsel %vm119, %v1716, 0.0
    %1721 = vadd.xlane.f32.xlu0 %v1720
    %v1722 = vpop.xlane.xlu0 %1721
    %v1723 = vmul.f32 %v1719, %v126
    %v1724 = vmul.f32 %v1722, %v126
    %v1725 = vmul.f32 %v1713, %v1713
    %v1726 = vmul.f32 %v1714, %v1714
    %v1727 = vsub.f32 %v1723, %v1725
    %v1728 = vsub.f32 %v1724, %v1726
    %v1729 = vmax.f32 %v1727, 0.0
    %v1730 = vmax.f32 %v1728, 0.0
    %v1731 = vsub.f32 %v1705, %v1713
    %v1732 = vsub.f32 %v1706, %v1714
    %v1733 = vadd.f32 %v1729, 1e-12
    %v1734 = vadd.f32 %v1730, 1e-12
    %v1735 = vrsqrt.pop %v1733
    %v1736 = vrsqrt.pop %v1734
    %v1737 = vmul.f32 %v1731, %v1735
    %v1738 = vmul.f32 %v1732, %v1736
    %v1739 = vld [vmem:[#allocation2 + $0xe2] sm:$0x1]
    %v1740 = vlaneseq
    %v1741 = vshrl.u32 %v1740, 7
    %v1742 = vsub.s32 0, %v1741
    %v1743 = vrot.slane %v1739, %v1742
    %v1744 = vmul.f32 %v1737, %v1743
    %v1745 = vmul.f32 %v1738, %v1743
    %v1746 = vld [vmem:[#allocation2 + $0xe3] sm:$0x1]
    %v1747 = vlaneseq
    %v1748 = vshrl.u32 %v1747, 7
    %v1749 = vsub.s32 0, %v1748
    %v1750 = vrot.slane %v1746, %v1749
    %v1751 = vadd.f32 %v1744, %v1750
    %v1752 = vadd.f32 %v1745, %v1750
    %v1753 = vld [vmem:[#allocation2 + $0x80] sm:$0xff]
    %v1754 = vld [vmem:[#allocation2 + $0x88] sm:$0xff]
    %v1755 = vld [vmem:[#allocation2 + $0x90] sm:$0xff]
    %v1756 = vld [vmem:[#allocation2 + $0x98] sm:$0xff]
    %v1757 = vld [vmem:[#allocation2 + $0xe4] sm:$0x1]
    %v1758 = vlaneseq
    %v1759 = vshrl.u32 %v1758, 7
    %v1760 = vsub.s32 0, %v1759
    %v1761 = vrot.slane %v1757, %v1760
    %v1763 = vsel %vm119, %v1751, 0
    %v1766 = vsel %vm119, %v1752, 0
    %1768 = vmatprep.subr.mxu0 0.0
    %1769 = vmatpush1.msra.mxu0 %v1753
    %1770 = vmatprep.subr.mxu0 0.0
    %1771 = vmatpush1.msra.mxu0 %v1754
    %1772 = vmatprep.subr.mxu0 0.0
    %1773 = vmatpush1.msra.mxu0 %v1755
    %1774 = vmatprep.subr.mxu0 0.0
    %1775 = vmatpush1.msra.mxu0 %v1756
    %1776 = vmatprep.subr.mxu0 0.0
    %1777 = vmatpush1.msra.mxu0 0.0
    %1778 = vmatprep.subr.mxu0 0.0
    %1779 = vmatpush1.msra.mxu0 0.0
    %1780 = vmatprep.subr.mxu0 0.0
    %1781 = vmatpush1.msra.mxu0 0.0
    %1782 = vmatprep.subr.mxu0 0.0
    %1783 = vmatpush1.msra.mxu0 0.0
    %1784 = vmatprep.subr.mxu0 0.0
    %1785 = vmatpush1.msra.mxu0 0.0
    %1786 = vmatprep.subr.mxu0 0.0
    %1787 = vmatpush1.msra.mxu0 0.0
    %1788 = vmatprep.subr.mxu0 0.0
    %1789 = vmatpush1.msra.mxu0 0.0
    %1790 = vmatprep.subr.mxu0 0.0
    %1791 = vmatpush1.msra.mxu0 0.0
    %1792 = vmatprep.subr.mxu0 0.0
    %1793 = vmatpush1.msra.mxu0 0.0
    %1794 = vmatprep.subr.mxu0 0.0
    %1795 = vmatpush1.msra.mxu0 0.0
    %1796 = vmatprep.subr.mxu0 0.0
    %1797 = vmatpush1.msra.mxu0 0.0
    %1798 = vmatprep.subr.mxu0 0.0
    %1799 = vmatpush1.msra.mxu0 0.0
    %1800 = vmatprep.subr.mxu0 0.0
    %1801 = vmatpush1.msra.mxu0 0.0
    %1802 = vmatprep.subr.mxu0 0.0
    %1803 = vmatpush1.msra.mxu0 0.0
    %1804 = vmatprep.subr.mxu0 0.0
    %1805 = vmatpush1.msra.mxu0 0.0
    %1806 = vmatprep.subr.mxu0 0.0
    %1807 = vmatpush1.msra.mxu0 0.0
    %1808 = vmatprep.subr.mxu0 0.0
    %1809 = vmatpush1.msra.mxu0 0.0
    %1810 = vmatprep.subr.mxu0 0.0
    %1811 = vmatpush1.msra.mxu0 0.0
    %1812 = vmatprep.subr.mxu0 0.0
    %1813 = vmatpush1.msra.mxu0 0.0
    %1814 = vmatprep.subr.mxu0 0.0
    %1815 = vmatpush1.msra.mxu0 0.0
    %1816 = vmatprep.subr.mxu0 0.0
    %1817 = vmatpush1.msra.mxu0 0.0
    %1818 = vmatprep.subr.mxu0 0.0
    %1819 = vmatpush1.msra.mxu0 0.0
    %1820 = vmatprep.subr.mxu0 0.0
    %1821 = vmatpush1.msra.mxu0 0.0
    %1822 = vmatprep.subr.mxu0 0.0
    %1823 = vmatpush1.msra.mxu0 0.0
    %1824 = vmatprep.subr.mxu0 0.0
    %1825 = vmatpush1.msra.mxu0 0.0
    %1826 = vmatprep.subr.mxu0 0.0
    %1827 = vmatpush1.msra.mxu0 0.0
    %1828 = vmatprep.subr.mxu0 0.0
    %1829 = vmatpush1.msra.mxu0 0.0
    %1830 = vmatprep.subr.mxu0 0.0
    %1831 = vmatpush1.msra.mxu0 0.0
    %1832 = vmatprep.mubr.f32.mxu0 0.0
    %1833 = vmatmul.mubr.f32.gmra.mrb[0].mxu0 %v1763
    %v1834 = vpop.f32.mrb[0].mxu0
    %v1835 = vadd.f32 %v1761, %v1834
    %v1836 = vpop.f32.mrb[0].mxu0
    %1837 = vmatprep.mubr.f32.mxu0 0.0
    %1838 = vmatmul.mubr.f32.gmra.mrb[0].mxu0 %v1766
    %v1839 = vpop.f32.mrb[0].mxu0
    %v1840 = vadd.f32 %v1761, %v1839
    %v1841 = vpop.f32.mrb[0].mxu0
    %1842 = vdwg.mxu0
    %v1843 = vmul.f32 %v1835, 0.70710677
    %v1844 = vmul.f32 %v1840, 0.70710677
    %vm1845 = vcmp.ge.f32.partialorder %v1843, 0.0
    %vm1846 = vcmp.ge.f32.partialorder %v1844, 0.0
    %v1847 = vsub.f32 0.0, %v1843
    %v1848 = vsub.f32 0.0, %v1844
    %v1849 = vsel %vm1845, %v1843, %v1847
    %v1850 = vsel %vm1846, %v1844, %v1848
    %v1851 = vmul.f32 %v1849, 0.3275911
    %v1852 = vmul.f32 %v1850, 0.3275911
    %v1853 = vadd.f32 %v1851, 1.0
    %v1854 = vadd.f32 %v1852, 1.0
    %v1855 = vrcp.pop %v1853
    %v1856 = vmul.f32 1.0, %v1855
    %v1857 = vrcp.pop %v1854
    %v1858 = vmul.f32 1.0, %v1857
    %v1859 = vmul.f32 %v1856, 1.0614054
    %v1860 = vmul.f32 %v1858, 1.0614054
    %v1861 = vadd.f32 %v1859, -1.4531521
    %v1862 = vadd.f32 %v1860, -1.4531521
    %v1863 = vmul.f32 %v1856, %v1861
    %v1864 = vmul.f32 %v1858, %v1862
    %v1865 = vadd.f32 %v1863, 1.4214138
    %v1866 = vadd.f32 %v1864, 1.4214138
    %v1867 = vmul.f32 %v1856, %v1865
    %v1868 = vmul.f32 %v1858, %v1866
    %v1869 = vadd.f32 %v1867, -0.28449672
    %v1870 = vadd.f32 %v1868, -0.28449672
    %v1871 = vmul.f32 %v1856, %v1869
    %v1872 = vmul.f32 %v1858, %v1870
    %v1873 = vadd.f32 %v1871, 0.2548296
    %v1874 = vadd.f32 %v1872, 0.2548296
    %v1875 = vmul.f32 %v1856, %v1873
    %v1876 = vmul.f32 %v1858, %v1874
    %v1877 = vsub.f32 0.0, %v1849
    %v1878 = vsub.f32 0.0, %v1850
    %v1879 = vmul.f32 %v1877, %v1849
    %v1880 = vmul.f32 %v1878, %v1850
    %v1881 = vmul.f32 %v1879, 1.442695
    %v1882 = vpow.pop %v1881
    %v1883 = vmul.f32 %v1880, 1.442695
    %v1884 = vpow.pop %v1883
    %v1885 = vmul.f32 %v1875, %v1882
    %v1886 = vmul.f32 %v1876, %v1884
    %v1887 = vsub.f32 1.0, %v1885
    %v1888 = vsub.f32 1.0, %v1886
    %v1889 = vsub.f32 0.0, %v1887
    %v1890 = vsub.f32 0.0, %v1888
    %v1891 = vsel %vm1845, %v1887, %v1889
    %v1892 = vsel %vm1846, %v1888, %v1890
    %v1893 = vmul.f32 %v1835, 0.5
    %v1894 = vmul.f32 %v1840, 0.5
    %v1895 = vadd.f32 %v1891, 1.0
    %v1896 = vadd.f32 %v1892, 1.0
    %v1897 = vmul.f32 %v1893, %v1895
    %v1898 = vmul.f32 %v1894, %v1896
    %v1899 = vld [vmem:[#allocation2 + $0xa0] sm:$0xff]
    %v1900 = vld [vmem:[#allocation2 + $0xa8] sm:$0xff]
    %v1901 = vld [vmem:[#allocation2 + $0xb0] sm:$0xff]
    %v1902 = vld [vmem:[#allocation2 + $0xb8] sm:$0xff]
    %v1903 = vld [vmem:[#allocation2 + $0xc0] sm:$0xff]
    %v1904 = vld [vmem:[#allocation2 + $0xc8] sm:$0xff]
    %v1905 = vld [vmem:[#allocation2 + $0xd0] sm:$0xff]
    %v1906 = vld [vmem:[#allocation2 + $0xd8] sm:$0xff]
    %v1907 = vld [vmem:[#allocation2 + $0xe5] sm:$0x1]
    %v1908 = vlaneseq
    %v1909 = vshrl.u32 %v1908, 7
    %v1910 = vsub.s32 0, %v1909
    %v1911 = vrot.slane %v1907, %v1910
    %vm1912 = vcmask 523264
    %v1914 = vsel %vm1912, %v1897, 0
    %v1917 = vsel %vm1912, %v1898, 0
    %1919 = vmatprep.subr.mxu0 0.0
    %1920 = vmatpush1.msra.mxu0 %v1899
    %1921 = vmatprep.subr.mxu0 0.0
    %1922 = vmatpush1.msra.mxu0 %v1900
    %1923 = vmatprep.subr.mxu0 0.0
    %1924 = vmatpush1.msra.mxu0 %v1901
    %1925 = vmatprep.subr.mxu0 0.0
    %1926 = vmatpush1.msra.mxu0 %v1902
    %1927 = vmatprep.subr.mxu0 0.0
    %1928 = vmatpush1.msra.mxu0 %v1903
    %1929 = vmatprep.subr.mxu0 0.0
    %1930 = vmatpush1.msra.mxu0 %v1904
    %1931 = vmatprep.subr.mxu0 0.0
    %1932 = vmatpush1.msra.mxu0 %v1905
    %1933 = vmatprep.subr.mxu0 0.0
    %1934 = vmatpush1.msra.mxu0 %v1906
    %1935 = vmatprep.subr.mxu0 0.0
    %1936 = vmatpush1.msra.mxu0 0.0
    %1937 = vmatprep.subr.mxu0 0.0
    %1938 = vmatpush1.msra.mxu0 0.0
    %1939 = vmatprep.subr.mxu0 0.0
    %1940 = vmatpush1.msra.mxu0 0.0
    %1941 = vmatprep.subr.mxu0 0.0
    %1942 = vmatpush1.msra.mxu0 0.0
    %1943 = vmatprep.subr.mxu0 0.0
    %1944 = vmatpush1.msra.mxu0 0.0
    %1945 = vmatprep.subr.mxu0 0.0
    %1946 = vmatpush1.msra.mxu0 0.0
    %1947 = vmatprep.subr.mxu0 0.0
    %1948 = vmatpush1.msra.mxu0 0.0
    %1949 = vmatprep.subr.mxu0 0.0
    %1950 = vmatpush1.msra.mxu0 0.0
    %1951 = vmatprep.subr.mxu0 0.0
    %1952 = vmatpush1.msra.mxu0 0.0
    %1953 = vmatprep.subr.mxu0 0.0
    %1954 = vmatpush1.msra.mxu0 0.0
    %1955 = vmatprep.subr.mxu0 0.0
    %1956 = vmatpush1.msra.mxu0 0.0
    %1957 = vmatprep.subr.mxu0 0.0
    %1958 = vmatpush1.msra.mxu0 0.0
    %1959 = vmatprep.subr.mxu0 0.0
    %1960 = vmatpush1.msra.mxu0 0.0
    %1961 = vmatprep.subr.mxu0 0.0
    %1962 = vmatpush1.msra.mxu0 0.0
    %1963 = vmatprep.subr.mxu0 0.0
    %1964 = vmatpush1.msra.mxu0 0.0
    %1965 = vmatprep.subr.mxu0 0.0
    %1966 = vmatpush1.msra.mxu0 0.0
    %1967 = vmatprep.subr.mxu0 0.0
    %1968 = vmatpush1.msra.mxu0 0.0
    %1969 = vmatprep.subr.mxu0 0.0
    %1970 = vmatpush1.msra.mxu0 0.0
    %1971 = vmatprep.subr.mxu0 0.0
    %1972 = vmatpush1.msra.mxu0 0.0
    %1973 = vmatprep.subr.mxu0 0.0
    %1974 = vmatpush1.msra.mxu0 0.0
    %1975 = vmatprep.subr.mxu0 0.0
    %1976 = vmatpush1.msra.mxu0 0.0
    %1977 = vmatprep.subr.mxu0 0.0
    %1978 = vmatpush1.msra.mxu0 0.0
    %1979 = vmatprep.subr.mxu0 0.0
    %1980 = vmatpush1.msra.mxu0 0.0
    %1981 = vmatprep.subr.mxu0 0.0
    %1982 = vmatpush1.msra.mxu0 0.0
    %1983 = vmatprep.mubr.f32.mxu0 0.0
    %1984 = vmatmul.mubr.f32.gmra.mrb[0].mxu0 %v1914
    %v1985 = vpop.f32.mrb[0].mxu0
    %v1986 = vadd.f32 %v1911, %v1985
    %v1987 = vpop.f32.mrb[0].mxu0
    %1988 = vmatprep.mubr.f32.mxu0 0.0
    %1989 = vmatmul.mubr.f32.gmra.mrb[0].mxu0 %v1917
    %v1990 = vpop.f32.mrb[0].mxu0
    %v1991 = vadd.f32 %v1911, %v1990
    %v1992 = vpop.f32.mrb[0].mxu0
    %1993 = vdwg.mxu0
    %v1994 = vadd.f32 %v1986, %v1751
    %v1995 = vadd.f32 %v1991, %v1752
    %v1996 = vsel %vm119, %v1994, 0.0
    %1997 = vadd.xlane.f32.xlu0 %v1996
    %v1998 = vpop.xlane.xlu0 %1997
    %v1999 = vsel %vm119, %v1995, 0.0
    %2000 = vadd.xlane.f32.xlu0 %v1999
    %v2001 = vpop.xlane.xlu0 %2000
    %v2002 = vmul.f32 %v1998, %v126
    %v2003 = vmul.f32 %v2001, %v126
    %v2004 = vmul.f32 %v1994, %v1994
    %v2005 = vmul.f32 %v1995, %v1995
    %v2006 = vsel %vm119, %v2004, 0.0
    %2007 = vadd.xlane.f32.xlu0 %v2006
    %v2008 = vpop.xlane.xlu0 %2007
    %v2009 = vsel %vm119, %v2005, 0.0
    %2010 = vadd.xlane.f32.xlu0 %v2009
    %v2011 = vpop.xlane.xlu0 %2010
    %v2012 = vmul.f32 %v2008, %v126
    %v2013 = vmul.f32 %v2011, %v126
    %v2014 = vmul.f32 %v2002, %v2002
    %v2015 = vmul.f32 %v2003, %v2003
    %v2016 = vsub.f32 %v2012, %v2014
    %v2017 = vsub.f32 %v2013, %v2015
    %v2018 = vmax.f32 %v2016, 0.0
    %v2019 = vmax.f32 %v2017, 0.0
    %v2020 = vsub.f32 %v1994, %v2002
    %v2021 = vsub.f32 %v1995, %v2003
    %v2022 = vadd.f32 %v2018, 1e-12
    %v2023 = vadd.f32 %v2019, 1e-12
    %v2024 = vrsqrt.pop %v2022
    %v2025 = vrsqrt.pop %v2023
    %v2026 = vmul.f32 %v2020, %v2024
    %v2027 = vmul.f32 %v2021, %v2025
    %v2028 = vld [vmem:[#allocation2 + $0xe6] sm:$0x1]
    %v2029 = vlaneseq
    %v2030 = vshrl.u32 %v2029, 7
    %v2031 = vsub.s32 0, %v2030
    %v2032 = vrot.slane %v2028, %v2031
    %v2033 = vmul.f32 %v2026, %v2032
    %v2034 = vmul.f32 %v2027, %v2032
    %v2035 = vld [vmem:[#allocation2 + $0xe7] sm:$0x1]
    %v2036 = vlaneseq
    %v2037 = vshrl.u32 %v2036, 7
    %v2038 = vsub.s32 0, %v2037
    %v2039 = vrot.slane %v2035, %v2038
    %v2040 = vadd.f32 %v2033, %v2039
    %v2041 = vadd.f32 %v2034, %v2039
    %v2042 = vld [vmem:[#allocation2 + $0xe8] sm:$0xff]
    %v2043 = vld [vmem:[#allocation2 + $0xf0] sm:$0xff]
    %v2044 = vld [vmem:[#allocation2 + $0xf8] sm:$0xff]
    %v2045 = vld [vmem:[#allocation2 + $0x100] sm:$0xff]
    %v2046 = vld [vmem:[#allocation2 + $0x188] sm:$0x1]
    %v2047 = vlaneseq
    %v2048 = vshrl.u32 %v2047, 7
    %v2049 = vsub.s32 0, %v2048
    %v2050 = vrot.slane %v2046, %v2049
    %v2052 = vsel %vm119, %v2040, 0
    %v2055 = vsel %vm119, %v2041, 0
    %2057 = vmatprep.subr.mxu0 0.0
    %2058 = vmatpush1.msra.mxu0 %v2042
    %2059 = vmatprep.subr.mxu0 0.0
    %2060 = vmatpush1.msra.mxu0 %v2043
    %2061 = vmatprep.subr.mxu0 0.0
    %2062 = vmatpush1.msra.mxu0 %v2044
    %2063 = vmatprep.subr.mxu0 0.0
    %2064 = vmatpush1.msra.mxu0 %v2045
    %2065 = vmatprep.subr.mxu0 0.0
    %2066 = vmatpush1.msra.mxu0 0.0
    %2067 = vmatprep.subr.mxu0 0.0
    %2068 = vmatpush1.msra.mxu0 0.0
    %2069 = vmatprep.subr.mxu0 0.0
    %2070 = vmatpush1.msra.mxu0 0.0
    %2071 = vmatprep.subr.mxu0 0.0
    %2072 = vmatpush1.msra.mxu0 0.0
    %2073 = vmatprep.subr.mxu0 0.0
    %2074 = vmatpush1.msra.mxu0 0.0
    %2075 = vmatprep.subr.mxu0 0.0
    %2076 = vmatpush1.msra.mxu0 0.0
    %2077 = vmatprep.subr.mxu0 0.0
    %2078 = vmatpush1.msra.mxu0 0.0
    %2079 = vmatprep.subr.mxu0 0.0
    %2080 = vmatpush1.msra.mxu0 0.0
    %2081 = vmatprep.subr.mxu0 0.0
    %2082 = vmatpush1.msra.mxu0 0.0
    %2083 = vmatprep.subr.mxu0 0.0
    %2084 = vmatpush1.msra.mxu0 0.0
    %2085 = vmatprep.subr.mxu0 0.0
    %2086 = vmatpush1.msra.mxu0 0.0
    %2087 = vmatprep.subr.mxu0 0.0
    %2088 = vmatpush1.msra.mxu0 0.0
    %2089 = vmatprep.subr.mxu0 0.0
    %2090 = vmatpush1.msra.mxu0 0.0
    %2091 = vmatprep.subr.mxu0 0.0
    %2092 = vmatpush1.msra.mxu0 0.0
    %2093 = vmatprep.subr.mxu0 0.0
    %2094 = vmatpush1.msra.mxu0 0.0
    %2095 = vmatprep.subr.mxu0 0.0
    %2096 = vmatpush1.msra.mxu0 0.0
    %2097 = vmatprep.subr.mxu0 0.0
    %2098 = vmatpush1.msra.mxu0 0.0
    %2099 = vmatprep.subr.mxu0 0.0
    %2100 = vmatpush1.msra.mxu0 0.0
    %2101 = vmatprep.subr.mxu0 0.0
    %2102 = vmatpush1.msra.mxu0 0.0
    %2103 = vmatprep.subr.mxu0 0.0
    %2104 = vmatpush1.msra.mxu0 0.0
    %2105 = vmatprep.subr.mxu0 0.0
    %2106 = vmatpush1.msra.mxu0 0.0
    %2107 = vmatprep.subr.mxu0 0.0
    %2108 = vmatpush1.msra.mxu0 0.0
    %2109 = vmatprep.subr.mxu0 0.0
    %2110 = vmatpush1.msra.mxu0 0.0
    %2111 = vmatprep.subr.mxu0 0.0
    %2112 = vmatpush1.msra.mxu0 0.0
    %2113 = vmatprep.subr.mxu0 0.0
    %2114 = vmatpush1.msra.mxu0 0.0
    %2115 = vmatprep.subr.mxu0 0.0
    %2116 = vmatpush1.msra.mxu0 0.0
    %2117 = vmatprep.subr.mxu0 0.0
    %2118 = vmatpush1.msra.mxu0 0.0
    %2119 = vmatprep.subr.mxu0 0.0
    %2120 = vmatpush1.msra.mxu0 0.0
    %2121 = vmatprep.mubr.f32.mxu0 0.0
    %2122 = vmatmul.mubr.f32.gmra.mrb[0].mxu0 %v2052
    %v2123 = vpop.f32.mrb[0].mxu0
    %v2124 = vadd.f32 %v2050, %v2123
    %v2125 = vpop.f32.mrb[0].mxu0
    %2126 = vmatprep.mubr.f32.mxu0 0.0
    %2127 = vmatmul.mubr.f32.gmra.mrb[0].mxu0 %v2055
    %v2128 = vpop.f32.mrb[0].mxu0
    %v2129 = vadd.f32 %v2050, %v2128
    %v2130 = vpop.f32.mrb[0].mxu0
    %2131 = vdwg.mxu0
    %2134 = vrot.lane.b32.xlu0 %v2124, 120
    %v2135 = vpop.permute.xlu0 %2134
    %2136 = vrot.lane.b32.xlu0 %v2129, 120
    %v2137 = vpop.permute.xlu0 %2136
    %2138 = vrot.lane.b32.xlu0 %v2124, 112
    %v2139 = vpop.permute.xlu0 %2138
    %2140 = vrot.lane.b32.xlu0 %v2129, 112
    %v2141 = vpop.permute.xlu0 %2140
    %2142 = vrot.lane.b32.xlu0 %v2124, 104
    %v2143 = vpop.permute.xlu0 %2142
    %2144 = vrot.lane.b32.xlu0 %v2129, 104
    %v2145 = vpop.permute.xlu0 %2144
    %2146 = vrot.lane.b32.xlu0 %v2124, 96
    %v2147 = vpop.permute.xlu0 %2146
    %v2148 = vsel %vm33, %v2124, 0
    %v2150 = vsel %vm33, %v2147, 0
    %2152 = vmatprep.subr.mxu0 0.0
    %2153 = vmatpush1.xpose.msra.mxu0 %v2150
    %2154 = vmatprep.subr.mxu0 0.0
    %2155 = vmatpush1.xpose.msra.mxu0 0.0
    %2156 = vmatprep.subr.mxu0 0.0
    %2157 = vmatpush1.xpose.msra.mxu0 0.0
    %2158 = vmatprep.subr.mxu0 0.0
    %2159 = vmatpush1.xpose.msra.mxu0 0.0
    %2160 = vmatprep.subr.mxu0 0.0
    %2161 = vmatpush1.xpose.msra.mxu0 0.0
    %2162 = vmatprep.subr.mxu0 0.0
    %2163 = vmatpush1.xpose.msra.mxu0 0.0
    %2164 = vmatprep.subr.mxu0 0.0
    %2165 = vmatpush1.xpose.msra.mxu0 0.0
    %2166 = vmatprep.subr.mxu0 0.0
    %2167 = vmatpush1.xpose.msra.mxu0 0.0
    %2168 = vmatprep.subr.mxu0 0.0
    %2169 = vmatpush1.xpose.msra.mxu0 0.0
    %2170 = vmatprep.subr.mxu0 0.0
    %2171 = vmatpush1.xpose.msra.mxu0 0.0
    %2172 = vmatprep.subr.mxu0 0.0
    %2173 = vmatpush1.xpose.msra.mxu0 0.0
    %2174 = vmatprep.subr.mxu0 0.0
    %2175 = vmatpush1.xpose.msra.mxu0 0.0
    %2176 = vmatprep.subr.mxu0 0.0
    %2177 = vmatpush1.xpose.msra.mxu0 0.0
    %2178 = vmatprep.subr.mxu0 0.0
    %2179 = vmatpush1.xpose.msra.mxu0 0.0
    %2180 = vmatprep.subr.mxu0 0.0
    %2181 = vmatpush1.xpose.msra.mxu0 0.0
    %2182 = vmatprep.subr.mxu0 0.0
    %2183 = vmatpush1.xpose.msra.mxu0 0.0
    %2184 = vmatprep.subr.mxu0 0.0
    %2185 = vmatpush1.xpose.msra.mxu0 0.0
    %2186 = vmatprep.subr.mxu0 0.0
    %2187 = vmatpush1.xpose.msra.mxu0 0.0
    %2188 = vmatprep.subr.mxu0 0.0
    %2189 = vmatpush1.xpose.msra.mxu0 0.0
    %2190 = vmatprep.subr.mxu0 0.0
    %2191 = vmatpush1.xpose.msra.mxu0 0.0
    %2192 = vmatprep.subr.mxu0 0.0
    %2193 = vmatpush1.xpose.msra.mxu0 0.0
    %2194 = vmatprep.subr.mxu0 0.0
    %2195 = vmatpush1.xpose.msra.mxu0 0.0
    %2196 = vmatprep.subr.mxu0 0.0
    %2197 = vmatpush1.xpose.msra.mxu0 0.0
    %2198 = vmatprep.subr.mxu0 0.0
    %2199 = vmatpush1.xpose.msra.mxu0 0.0
    %2200 = vmatprep.subr.mxu0 0.0
    %2201 = vmatpush1.xpose.msra.mxu0 0.0
    %2202 = vmatprep.subr.mxu0 0.0
    %2203 = vmatpush1.xpose.msra.mxu0 0.0
    %2204 = vmatprep.subr.mxu0 0.0
    %2205 = vmatpush1.xpose.msra.mxu0 0.0
    %2206 = vmatprep.subr.mxu0 0.0
    %2207 = vmatpush1.xpose.msra.mxu0 0.0
    %2208 = vmatprep.subr.mxu0 0.0
    %2209 = vmatpush1.xpose.msra.mxu0 0.0
    %2210 = vmatprep.subr.mxu0 0.0
    %2211 = vmatpush1.xpose.msra.mxu0 0.0
    %2212 = vmatprep.subr.mxu0 0.0
    %2213 = vmatpush1.xpose.msra.mxu0 0.0
    %2214 = vmatprep.subr.mxu0 0.0
    %2215 = vmatpush1.xpose.msra.mxu0 0.0
    %2216 = vmatprep.mubr.f32.mxu0 0.0
    %2217 = vmatmul.mubr.f32.gmra.mrb[0].mxu0 %v2148
    %v2218 = vpop.f32.mrb[0].mxu0
    %v2219 = vadd.f32 0.0, %v2218
    %v2220 = vpop.f32.mrb[0].mxu0
    %2221 = vdwg.mxu0
    %2222 = vrot.lane.b32.xlu0 %v2129, 96
    %v2223 = vpop.permute.xlu0 %2222
    %v2224 = vsel %vm33, %v2129, 0
    %v2226 = vsel %vm33, %v2223, 0
    %2228 = vmatprep.subr.mxu0 0.0
    %2229 = vmatpush1.xpose.msra.mxu0 %v2226
    %2230 = vmatprep.subr.mxu0 0.0
    %2231 = vmatpush1.xpose.msra.mxu0 0.0
    %2232 = vmatprep.subr.mxu0 0.0
    %2233 = vmatpush1.xpose.msra.mxu0 0.0
    %2234 = vmatprep.subr.mxu0 0.0
    %2235 = vmatpush1.xpose.msra.mxu0 0.0
    %2236 = vmatprep.subr.mxu0 0.0
    %2237 = vmatpush1.xpose.msra.mxu0 0.0
    %2238 = vmatprep.subr.mxu0 0.0
    %2239 = vmatpush1.xpose.msra.mxu0 0.0
    %2240 = vmatprep.subr.mxu0 0.0
    %2241 = vmatpush1.xpose.msra.mxu0 0.0
    %2242 = vmatprep.subr.mxu0 0.0
    %2243 = vmatpush1.xpose.msra.mxu0 0.0
    %2244 = vmatprep.subr.mxu0 0.0
    %2245 = vmatpush1.xpose.msra.mxu0 0.0
    %2246 = vmatprep.subr.mxu0 0.0
    %2247 = vmatpush1.xpose.msra.mxu0 0.0
    %2248 = vmatprep.subr.mxu0 0.0
    %2249 = vmatpush1.xpose.msra.mxu0 0.0
    %2250 = vmatprep.subr.mxu0 0.0
    %2251 = vmatpush1.xpose.msra.mxu0 0.0
    %2252 = vmatprep.subr.mxu0 0.0
    %2253 = vmatpush1.xpose.msra.mxu0 0.0
    %2254 = vmatprep.subr.mxu0 0.0
    %2255 = vmatpush1.xpose.msra.mxu0 0.0
    %2256 = vmatprep.subr.mxu0 0.0
    %2257 = vmatpush1.xpose.msra.mxu0 0.0
    %2258 = vmatprep.subr.mxu0 0.0
    %2259 = vmatpush1.xpose.msra.mxu0 0.0
    %2260 = vmatprep.subr.mxu0 0.0
    %2261 = vmatpush1.xpose.msra.mxu0 0.0
    %2262 = vmatprep.subr.mxu0 0.0
    %2263 = vmatpush1.xpose.msra.mxu0 0.0
    %2264 = vmatprep.subr.mxu0 0.0
    %2265 = vmatpush1.xpose.msra.mxu0 0.0
    %2266 = vmatprep.subr.mxu0 0.0
    %2267 = vmatpush1.xpose.msra.mxu0 0.0
    %2268 = vmatprep.subr.mxu0 0.0
    %2269 = vmatpush1.xpose.msra.mxu0 0.0
    %2270 = vmatprep.subr.mxu0 0.0
    %2271 = vmatpush1.xpose.msra.mxu0 0.0
    %2272 = vmatprep.subr.mxu0 0.0
    %2273 = vmatpush1.xpose.msra.mxu0 0.0
    %2274 = vmatprep.subr.mxu0 0.0
    %2275 = vmatpush1.xpose.msra.mxu0 0.0
    %2276 = vmatprep.subr.mxu0 0.0
    %2277 = vmatpush1.xpose.msra.mxu0 0.0
    %2278 = vmatprep.subr.mxu0 0.0
    %2279 = vmatpush1.xpose.msra.mxu0 0.0
    %2280 = vmatprep.subr.mxu0 0.0
    %2281 = vmatpush1.xpose.msra.mxu0 0.0
    %2282 = vmatprep.subr.mxu0 0.0
    %2283 = vmatpush1.xpose.msra.mxu0 0.0
    %2284 = vmatprep.subr.mxu0 0.0
    %2285 = vmatpush1.xpose.msra.mxu0 0.0
    %2286 = vmatprep.subr.mxu0 0.0
    %2287 = vmatpush1.xpose.msra.mxu0 0.0
    %2288 = vmatprep.subr.mxu0 0.0
    %2289 = vmatpush1.xpose.msra.mxu0 0.0
    %2290 = vmatprep.subr.mxu0 0.0
    %2291 = vmatpush1.xpose.msra.mxu0 0.0
    %2292 = vmatprep.mubr.f32.mxu0 0.0
    %2293 = vmatmul.mubr.f32.gmra.mrb[0].mxu0 %v2224
    %v2294 = vpop.f32.mrb[0].mxu0
    %v2295 = vadd.f32 0.0, %v2294
    %v2296 = vpop.f32.mrb[0].mxu0
    %2297 = vdwg.mxu0
    %2298 = vrot.lane.b32.xlu0 %v2135, 96
    %v2299 = vpop.permute.xlu0 %2298
    %v2300 = vsel %vm33, %v2135, 0
    %v2302 = vsel %vm33, %v2299, 0
    %2304 = vmatprep.subr.mxu0 0.0
    %2305 = vmatpush1.xpose.msra.mxu0 %v2302
    %2306 = vmatprep.subr.mxu0 0.0
    %2307 = vmatpush1.xpose.msra.mxu0 0.0
    %2308 = vmatprep.subr.mxu0 0.0
    %2309 = vmatpush1.xpose.msra.mxu0 0.0
    %2310 = vmatprep.subr.mxu0 0.0
    %2311 = vmatpush1.xpose.msra.mxu0 0.0
    %2312 = vmatprep.subr.mxu0 0.0
    %2313 = vmatpush1.xpose.msra.mxu0 0.0
    %2314 = vmatprep.subr.mxu0 0.0
    %2315 = vmatpush1.xpose.msra.mxu0 0.0
    %2316 = vmatprep.subr.mxu0 0.0
    %2317 = vmatpush1.xpose.msra.mxu0 0.0
    %2318 = vmatprep.subr.mxu0 0.0
    %2319 = vmatpush1.xpose.msra.mxu0 0.0
    %2320 = vmatprep.subr.mxu0 0.0
    %2321 = vmatpush1.xpose.msra.mxu0 0.0
    %2322 = vmatprep.subr.mxu0 0.0
    %2323 = vmatpush1.xpose.msra.mxu0 0.0
    %2324 = vmatprep.subr.mxu0 0.0
    %2325 = vmatpush1.xpose.msra.mxu0 0.0
    %2326 = vmatprep.subr.mxu0 0.0
    %2327 = vmatpush1.xpose.msra.mxu0 0.0
    %2328 = vmatprep.subr.mxu0 0.0
    %2329 = vmatpush1.xpose.msra.mxu0 0.0
    %2330 = vmatprep.subr.mxu0 0.0
    %2331 = vmatpush1.xpose.msra.mxu0 0.0
    %2332 = vmatprep.subr.mxu0 0.0
    %2333 = vmatpush1.xpose.msra.mxu0 0.0
    %2334 = vmatprep.subr.mxu0 0.0
    %2335 = vmatpush1.xpose.msra.mxu0 0.0
    %2336 = vmatprep.subr.mxu0 0.0
    %2337 = vmatpush1.xpose.msra.mxu0 0.0
    %2338 = vmatprep.subr.mxu0 0.0
    %2339 = vmatpush1.xpose.msra.mxu0 0.0
    %2340 = vmatprep.subr.mxu0 0.0
    %2341 = vmatpush1.xpose.msra.mxu0 0.0
    %2342 = vmatprep.subr.mxu0 0.0
    %2343 = vmatpush1.xpose.msra.mxu0 0.0
    %2344 = vmatprep.subr.mxu0 0.0
    %2345 = vmatpush1.xpose.msra.mxu0 0.0
    %2346 = vmatprep.subr.mxu0 0.0
    %2347 = vmatpush1.xpose.msra.mxu0 0.0
    %2348 = vmatprep.subr.mxu0 0.0
    %2349 = vmatpush1.xpose.msra.mxu0 0.0
    %2350 = vmatprep.subr.mxu0 0.0
    %2351 = vmatpush1.xpose.msra.mxu0 0.0
    %2352 = vmatprep.subr.mxu0 0.0
    %2353 = vmatpush1.xpose.msra.mxu0 0.0
    %2354 = vmatprep.subr.mxu0 0.0
    %2355 = vmatpush1.xpose.msra.mxu0 0.0
    %2356 = vmatprep.subr.mxu0 0.0
    %2357 = vmatpush1.xpose.msra.mxu0 0.0
    %2358 = vmatprep.subr.mxu0 0.0
    %2359 = vmatpush1.xpose.msra.mxu0 0.0
    %2360 = vmatprep.subr.mxu0 0.0
    %2361 = vmatpush1.xpose.msra.mxu0 0.0
    %2362 = vmatprep.subr.mxu0 0.0
    %2363 = vmatpush1.xpose.msra.mxu0 0.0
    %2364 = vmatprep.subr.mxu0 0.0
    %2365 = vmatpush1.xpose.msra.mxu0 0.0
    %2366 = vmatprep.subr.mxu0 0.0
    %2367 = vmatpush1.xpose.msra.mxu0 0.0
    %2368 = vmatprep.mubr.f32.mxu0 0.0
    %2369 = vmatmul.mubr.f32.gmra.mrb[0].mxu0 %v2300
    %v2370 = vpop.f32.mrb[0].mxu0
    %v2371 = vadd.f32 0.0, %v2370
    %v2372 = vpop.f32.mrb[0].mxu0
    %2373 = vdwg.mxu0
    %2374 = vrot.lane.b32.xlu0 %v2137, 96
    %v2375 = vpop.permute.xlu0 %2374
    %v2376 = vsel %vm33, %v2137, 0
    %v2378 = vsel %vm33, %v2375, 0
    %2380 = vmatprep.subr.mxu0 0.0
    %2381 = vmatpush1.xpose.msra.mxu0 %v2378
    %2382 = vmatprep.subr.mxu0 0.0
    %2383 = vmatpush1.xpose.msra.mxu0 0.0
    %2384 = vmatprep.subr.mxu0 0.0
    %2385 = vmatpush1.xpose.msra.mxu0 0.0
    %2386 = vmatprep.subr.mxu0 0.0
    %2387 = vmatpush1.xpose.msra.mxu0 0.0
    %2388 = vmatprep.subr.mxu0 0.0
    %2389 = vmatpush1.xpose.msra.mxu0 0.0
    %2390 = vmatprep.subr.mxu0 0.0
    %2391 = vmatpush1.xpose.msra.mxu0 0.0
    %2392 = vmatprep.subr.mxu0 0.0
    %2393 = vmatpush1.xpose.msra.mxu0 0.0
    %2394 = vmatprep.subr.mxu0 0.0
    %2395 = vmatpush1.xpose.msra.mxu0 0.0
    %2396 = vmatprep.subr.mxu0 0.0
    %2397 = vmatpush1.xpose.msra.mxu0 0.0
    %2398 = vmatprep.subr.mxu0 0.0
    %2399 = vmatpush1.xpose.msra.mxu0 0.0
    %2400 = vmatprep.subr.mxu0 0.0
    %2401 = vmatpush1.xpose.msra.mxu0 0.0
    %2402 = vmatprep.subr.mxu0 0.0
    %2403 = vmatpush1.xpose.msra.mxu0 0.0
    %2404 = vmatprep.subr.mxu0 0.0
    %2405 = vmatpush1.xpose.msra.mxu0 0.0
    %2406 = vmatprep.subr.mxu0 0.0
    %2407 = vmatpush1.xpose.msra.mxu0 0.0
    %2408 = vmatprep.subr.mxu0 0.0
    %2409 = vmatpush1.xpose.msra.mxu0 0.0
    %2410 = vmatprep.subr.mxu0 0.0
    %2411 = vmatpush1.xpose.msra.mxu0 0.0
    %2412 = vmatprep.subr.mxu0 0.0
    %2413 = vmatpush1.xpose.msra.mxu0 0.0
    %2414 = vmatprep.subr.mxu0 0.0
    %2415 = vmatpush1.xpose.msra.mxu0 0.0
    %2416 = vmatprep.subr.mxu0 0.0
    %2417 = vmatpush1.xpose.msra.mxu0 0.0
    %2418 = vmatprep.subr.mxu0 0.0
    %2419 = vmatpush1.xpose.msra.mxu0 0.0
    %2420 = vmatprep.subr.mxu0 0.0
    %2421 = vmatpush1.xpose.msra.mxu0 0.0
    %2422 = vmatprep.subr.mxu0 0.0
    %2423 = vmatpush1.xpose.msra.mxu0 0.0
    %2424 = vmatprep.subr.mxu0 0.0
    %2425 = vmatpush1.xpose.msra.mxu0 0.0
    %2426 = vmatprep.subr.mxu0 0.0
    %2427 = vmatpush1.xpose.msra.mxu0 0.0
    %2428 = vmatprep.subr.mxu0 0.0
    %2429 = vmatpush1.xpose.msra.mxu0 0.0
    %2430 = vmatprep.subr.mxu0 0.0
    %2431 = vmatpush1.xpose.msra.mxu0 0.0
    %2432 = vmatprep.subr.mxu0 0.0
    %2433 = vmatpush1.xpose.msra.mxu0 0.0
    %2434 = vmatprep.subr.mxu0 0.0
    %2435 = vmatpush1.xpose.msra.mxu0 0.0
    %2436 = vmatprep.subr.mxu0 0.0
    %2437 = vmatpush1.xpose.msra.mxu0 0.0
    %2438 = vmatprep.subr.mxu0 0.0
    %2439 = vmatpush1.xpose.msra.mxu0 0.0
    %2440 = vmatprep.subr.mxu0 0.0
    %2441 = vmatpush1.xpose.msra.mxu0 0.0
    %2442 = vmatprep.subr.mxu0 0.0
    %2443 = vmatpush1.xpose.msra.mxu0 0.0
    %2444 = vmatprep.mubr.f32.mxu0 0.0
    %2445 = vmatmul.mubr.f32.gmra.mrb[0].mxu0 %v2376
    %v2446 = vpop.f32.mrb[0].mxu0
    %v2447 = vadd.f32 0.0, %v2446
    %v2448 = vpop.f32.mrb[0].mxu0
    %2449 = vdwg.mxu0
    %2450 = vrot.lane.b32.xlu0 %v2139, 96
    %v2451 = vpop.permute.xlu0 %2450
    %v2452 = vsel %vm33, %v2139, 0
    %v2454 = vsel %vm33, %v2451, 0
    %2456 = vmatprep.subr.mxu0 0.0
    %2457 = vmatpush1.xpose.msra.mxu0 %v2454
    %2458 = vmatprep.subr.mxu0 0.0
    %2459 = vmatpush1.xpose.msra.mxu0 0.0
    %2460 = vmatprep.subr.mxu0 0.0
    %2461 = vmatpush1.xpose.msra.mxu0 0.0
    %2462 = vmatprep.subr.mxu0 0.0
    %2463 = vmatpush1.xpose.msra.mxu0 0.0
    %2464 = vmatprep.subr.mxu0 0.0
    %2465 = vmatpush1.xpose.msra.mxu0 0.0
    %2466 = vmatprep.subr.mxu0 0.0
    %2467 = vmatpush1.xpose.msra.mxu0 0.0
    %2468 = vmatprep.subr.mxu0 0.0
    %2469 = vmatpush1.xpose.msra.mxu0 0.0
    %2470 = vmatprep.subr.mxu0 0.0
    %2471 = vmatpush1.xpose.msra.mxu0 0.0
    %2472 = vmatprep.subr.mxu0 0.0
    %2473 = vmatpush1.xpose.msra.mxu0 0.0
    %2474 = vmatprep.subr.mxu0 0.0
    %2475 = vmatpush1.xpose.msra.mxu0 0.0
    %2476 = vmatprep.subr.mxu0 0.0
    %2477 = vmatpush1.xpose.msra.mxu0 0.0
    %2478 = vmatprep.subr.mxu0 0.0
    %2479 = vmatpush1.xpose.msra.mxu0 0.0
    %2480 = vmatprep.subr.mxu0 0.0
    %2481 = vmatpush1.xpose.msra.mxu0 0.0
    %2482 = vmatprep.subr.mxu0 0.0
    %2483 = vmatpush1.xpose.msra.mxu0 0.0
    %2484 = vmatprep.subr.mxu0 0.0
    %2485 = vmatpush1.xpose.msra.mxu0 0.0
    %2486 = vmatprep.subr.mxu0 0.0
    %2487 = vmatpush1.xpose.msra.mxu0 0.0
    %2488 = vmatprep.subr.mxu0 0.0
    %2489 = vmatpush1.xpose.msra.mxu0 0.0
    %2490 = vmatprep.subr.mxu0 0.0
    %2491 = vmatpush1.xpose.msra.mxu0 0.0
    %2492 = vmatprep.subr.mxu0 0.0
    %2493 = vmatpush1.xpose.msra.mxu0 0.0
    %2494 = vmatprep.subr.mxu0 0.0
    %2495 = vmatpush1.xpose.msra.mxu0 0.0
    %2496 = vmatprep.subr.mxu0 0.0
    %2497 = vmatpush1.xpose.msra.mxu0 0.0
    %2498 = vmatprep.subr.mxu0 0.0
    %2499 = vmatpush1.xpose.msra.mxu0 0.0
    %2500 = vmatprep.subr.mxu0 0.0
    %2501 = vmatpush1.xpose.msra.mxu0 0.0
    %2502 = vmatprep.subr.mxu0 0.0
    %2503 = vmatpush1.xpose.msra.mxu0 0.0
    %2504 = vmatprep.subr.mxu0 0.0
    %2505 = vmatpush1.xpose.msra.mxu0 0.0
    %2506 = vmatprep.subr.mxu0 0.0
    %2507 = vmatpush1.xpose.msra.mxu0 0.0
    %2508 = vmatprep.subr.mxu0 0.0
    %2509 = vmatpush1.xpose.msra.mxu0 0.0
    %2510 = vmatprep.subr.mxu0 0.0
    %2511 = vmatpush1.xpose.msra.mxu0 0.0
    %2512 = vmatprep.subr.mxu0 0.0
    %2513 = vmatpush1.xpose.msra.mxu0 0.0
    %2514 = vmatprep.subr.mxu0 0.0
    %2515 = vmatpush1.xpose.msra.mxu0 0.0
    %2516 = vmatprep.subr.mxu0 0.0
    %2517 = vmatpush1.xpose.msra.mxu0 0.0
    %2518 = vmatprep.subr.mxu0 0.0
    %2519 = vmatpush1.xpose.msra.mxu0 0.0
    %2520 = vmatprep.mubr.f32.mxu0 0.0
    %2521 = vmatmul.mubr.f32.gmra.mrb[0].mxu0 %v2452
    %v2522 = vpop.f32.mrb[0].mxu0
    %v2523 = vadd.f32 0.0, %v2522
    %v2524 = vpop.f32.mrb[0].mxu0
    %2525 = vdwg.mxu0
    %2526 = vrot.lane.b32.xlu0 %v2141, 96
    %v2527 = vpop.permute.xlu0 %2526
    %v2528 = vsel %vm33, %v2141, 0
    %v2530 = vsel %vm33, %v2527, 0
    %2532 = vmatprep.subr.mxu0 0.0
    %2533 = vmatpush1.xpose.msra.mxu0 %v2530
    %2534 = vmatprep.subr.mxu0 0.0
    %2535 = vmatpush1.xpose.msra.mxu0 0.0
    %2536 = vmatprep.subr.mxu0 0.0
    %2537 = vmatpush1.xpose.msra.mxu0 0.0
    %2538 = vmatprep.subr.mxu0 0.0
    %2539 = vmatpush1.xpose.msra.mxu0 0.0
    %2540 = vmatprep.subr.mxu0 0.0
    %2541 = vmatpush1.xpose.msra.mxu0 0.0
    %2542 = vmatprep.subr.mxu0 0.0
    %2543 = vmatpush1.xpose.msra.mxu0 0.0
    %2544 = vmatprep.subr.mxu0 0.0
    %2545 = vmatpush1.xpose.msra.mxu0 0.0
    %2546 = vmatprep.subr.mxu0 0.0
    %2547 = vmatpush1.xpose.msra.mxu0 0.0
    %2548 = vmatprep.subr.mxu0 0.0
    %2549 = vmatpush1.xpose.msra.mxu0 0.0
    %2550 = vmatprep.subr.mxu0 0.0
    %2551 = vmatpush1.xpose.msra.mxu0 0.0
    %2552 = vmatprep.subr.mxu0 0.0
    %2553 = vmatpush1.xpose.msra.mxu0 0.0
    %2554 = vmatprep.subr.mxu0 0.0
    %2555 = vmatpush1.xpose.msra.mxu0 0.0
    %2556 = vmatprep.subr.mxu0 0.0
    %2557 = vmatpush1.xpose.msra.mxu0 0.0
    %2558 = vmatprep.subr.mxu0 0.0
    %2559 = vmatpush1.xpose.msra.mxu0 0.0
    %2560 = vmatprep.subr.mxu0 0.0
    %2561 = vmatpush1.xpose.msra.mxu0 0.0
    %2562 = vmatprep.subr.mxu0 0.0
    %2563 = vmatpush1.xpose.msra.mxu0 0.0
    %2564 = vmatprep.subr.mxu0 0.0
    %2565 = vmatpush1.xpose.msra.mxu0 0.0
    %2566 = vmatprep.subr.mxu0 0.0
    %2567 = vmatpush1.xpose.msra.mxu0 0.0
    %2568 = vmatprep.subr.mxu0 0.0
    %2569 = vmatpush1.xpose.msra.mxu0 0.0
    %2570 = vmatprep.subr.mxu0 0.0
    %2571 = vmatpush1.xpose.msra.mxu0 0.0
    %2572 = vmatprep.subr.mxu0 0.0
    %2573 = vmatpush1.xpose.msra.mxu0 0.0
    %2574 = vmatprep.subr.mxu0 0.0
    %2575 = vmatpush1.xpose.msra.mxu0 0.0
    %2576 = vmatprep.subr.mxu0 0.0
    %2577 = vmatpush1.xpose.msra.mxu0 0.0
    %2578 = vmatprep.subr.mxu0 0.0
    %2579 = vmatpush1.xpose.msra.mxu0 0.0
    %2580 = vmatprep.subr.mxu0 0.0
    %2581 = vmatpush1.xpose.msra.mxu0 0.0
    %2582 = vmatprep.subr.mxu0 0.0
    %2583 = vmatpush1.xpose.msra.mxu0 0.0
    %2584 = vmatprep.subr.mxu0 0.0
    %2585 = vmatpush1.xpose.msra.mxu0 0.0
    %2586 = vmatprep.subr.mxu0 0.0
    %2587 = vmatpush1.xpose.msra.mxu0 0.0
    %2588 = vmatprep.subr.mxu0 0.0
    %2589 = vmatpush1.xpose.msra.mxu0 0.0
    %2590 = vmatprep.subr.mxu0 0.0
    %2591 = vmatpush1.xpose.msra.mxu0 0.0
    %2592 = vmatprep.subr.mxu0 0.0
    %2593 = vmatpush1.xpose.msra.mxu0 0.0
    %2594 = vmatprep.subr.mxu0 0.0
    %2595 = vmatpush1.xpose.msra.mxu0 0.0
    %2596 = vmatprep.mubr.f32.mxu0 0.0
    %2597 = vmatmul.mubr.f32.gmra.mrb[0].mxu0 %v2528
    %v2598 = vpop.f32.mrb[0].mxu0
    %v2599 = vadd.f32 0.0, %v2598
    %v2600 = vpop.f32.mrb[0].mxu0
    %2601 = vdwg.mxu0
    %2602 = vrot.lane.b32.xlu0 %v2143, 96
    %v2603 = vpop.permute.xlu0 %2602
    %v2604 = vsel %vm33, %v2143, 0
    %v2606 = vsel %vm33, %v2603, 0
    %2608 = vmatprep.subr.mxu0 0.0
    %2609 = vmatpush1.xpose.msra.mxu0 %v2606
    %2610 = vmatprep.subr.mxu0 0.0
    %2611 = vmatpush1.xpose.msra.mxu0 0.0
    %2612 = vmatprep.subr.mxu0 0.0
    %2613 = vmatpush1.xpose.msra.mxu0 0.0
    %2614 = vmatprep.subr.mxu0 0.0
    %2615 = vmatpush1.xpose.msra.mxu0 0.0
    %2616 = vmatprep.subr.mxu0 0.0
    %2617 = vmatpush1.xpose.msra.mxu0 0.0
    %2618 = vmatprep.subr.mxu0 0.0
    %2619 = vmatpush1.xpose.msra.mxu0 0.0
    %2620 = vmatprep.subr.mxu0 0.0
    %2621 = vmatpush1.xpose.msra.mxu0 0.0
    %2622 = vmatprep.subr.mxu0 0.0
    %2623 = vmatpush1.xpose.msra.mxu0 0.0
    %2624 = vmatprep.subr.mxu0 0.0
    %2625 = vmatpush1.xpose.msra.mxu0 0.0
    %2626 = vmatprep.subr.mxu0 0.0
    %2627 = vmatpush1.xpose.msra.mxu0 0.0
    %2628 = vmatprep.subr.mxu0 0.0
    %2629 = vmatpush1.xpose.msra.mxu0 0.0
    %2630 = vmatprep.subr.mxu0 0.0
    %2631 = vmatpush1.xpose.msra.mxu0 0.0
    %2632 = vmatprep.subr.mxu0 0.0
    %2633 = vmatpush1.xpose.msra.mxu0 0.0
    %2634 = vmatprep.subr.mxu0 0.0
    %2635 = vmatpush1.xpose.msra.mxu0 0.0
    %2636 = vmatprep.subr.mxu0 0.0
    %2637 = vmatpush1.xpose.msra.mxu0 0.0
    %2638 = vmatprep.subr.mxu0 0.0
    %2639 = vmatpush1.xpose.msra.mxu0 0.0
    %2640 = vmatprep.subr.mxu0 0.0
    %2641 = vmatpush1.xpose.msra.mxu0 0.0
    %2642 = vmatprep.subr.mxu0 0.0
    %2643 = vmatpush1.xpose.msra.mxu0 0.0
    %2644 = vmatprep.subr.mxu0 0.0
    %2645 = vmatpush1.xpose.msra.mxu0 0.0
    %2646 = vmatprep.subr.mxu0 0.0
    %2647 = vmatpush1.xpose.msra.mxu0 0.0
    %2648 = vmatprep.subr.mxu0 0.0
    %2649 = vmatpush1.xpose.msra.mxu0 0.0
    %2650 = vmatprep.subr.mxu0 0.0
    %2651 = vmatpush1.xpose.msra.mxu0 0.0
    %2652 = vmatprep.subr.mxu0 0.0
    %2653 = vmatpush1.xpose.msra.mxu0 0.0
    %2654 = vmatprep.subr.mxu0 0.0
    %2655 = vmatpush1.xpose.msra.mxu0 0.0
    %2656 = vmatprep.subr.mxu0 0.0
    %2657 = vmatpush1.xpose.msra.mxu0 0.0
    %2658 = vmatprep.subr.mxu0 0.0
    %2659 = vmatpush1.xpose.msra.mxu0 0.0
    %2660 = vmatprep.subr.mxu0 0.0
    %2661 = vmatpush1.xpose.msra.mxu0 0.0
    %2662 = vmatprep.subr.mxu0 0.0
    %2663 = vmatpush1.xpose.msra.mxu0 0.0
    %2664 = vmatprep.subr.mxu0 0.0
    %2665 = vmatpush1.xpose.msra.mxu0 0.0
    %2666 = vmatprep.subr.mxu0 0.0
    %2667 = vmatpush1.xpose.msra.mxu0 0.0
    %2668 = vmatprep.subr.mxu0 0.0
    %2669 = vmatpush1.xpose.msra.mxu0 0.0
    %2670 = vmatprep.subr.mxu0 0.0
    %2671 = vmatpush1.xpose.msra.mxu0 0.0
    %2672 = vmatprep.mubr.f32.mxu0 0.0
    %2673 = vmatmul.mubr.f32.gmra.mrb[0].mxu0 %v2604
    %v2674 = vpop.f32.mrb[0].mxu0
    %v2675 = vadd.f32 0.0, %v2674
    %v2676 = vpop.f32.mrb[0].mxu0
    %2677 = vdwg.mxu0
    %2678 = vrot.lane.b32.xlu0 %v2145, 96
    %v2679 = vpop.permute.xlu0 %2678
    %v2680 = vsel %vm33, %v2145, 0
    %v2682 = vsel %vm33, %v2679, 0
    %2684 = vmatprep.subr.mxu0 0.0
    %2685 = vmatpush1.xpose.msra.mxu0 %v2682
    %2686 = vmatprep.subr.mxu0 0.0
    %2687 = vmatpush1.xpose.msra.mxu0 0.0
    %2688 = vmatprep.subr.mxu0 0.0
    %2689 = vmatpush1.xpose.msra.mxu0 0.0
    %2690 = vmatprep.subr.mxu0 0.0
    %2691 = vmatpush1.xpose.msra.mxu0 0.0
    %2692 = vmatprep.subr.mxu0 0.0
    %2693 = vmatpush1.xpose.msra.mxu0 0.0
    %2694 = vmatprep.subr.mxu0 0.0
    %2695 = vmatpush1.xpose.msra.mxu0 0.0
    %2696 = vmatprep.subr.mxu0 0.0
    %2697 = vmatpush1.xpose.msra.mxu0 0.0
    %2698 = vmatprep.subr.mxu0 0.0
    %2699 = vmatpush1.xpose.msra.mxu0 0.0
    %2700 = vmatprep.subr.mxu0 0.0
    %2701 = vmatpush1.xpose.msra.mxu0 0.0
    %2702 = vmatprep.subr.mxu0 0.0
    %2703 = vmatpush1.xpose.msra.mxu0 0.0
    %2704 = vmatprep.subr.mxu0 0.0
    %2705 = vmatpush1.xpose.msra.mxu0 0.0
    %2706 = vmatprep.subr.mxu0 0.0
    %2707 = vmatpush1.xpose.msra.mxu0 0.0
    %2708 = vmatprep.subr.mxu0 0.0
    %2709 = vmatpush1.xpose.msra.mxu0 0.0
    %2710 = vmatprep.subr.mxu0 0.0
    %2711 = vmatpush1.xpose.msra.mxu0 0.0
    %2712 = vmatprep.subr.mxu0 0.0
    %2713 = vmatpush1.xpose.msra.mxu0 0.0
    %2714 = vmatprep.subr.mxu0 0.0
    %2715 = vmatpush1.xpose.msra.mxu0 0.0
    %2716 = vmatprep.subr.mxu0 0.0
    %2717 = vmatpush1.xpose.msra.mxu0 0.0
    %2718 = vmatprep.subr.mxu0 0.0
    %2719 = vmatpush1.xpose.msra.mxu0 0.0
    %2720 = vmatprep.subr.mxu0 0.0
    %2721 = vmatpush1.xpose.msra.mxu0 0.0
    %2722 = vmatprep.subr.mxu0 0.0
    %2723 = vmatpush1.xpose.msra.mxu0 0.0
    %2724 = vmatprep.subr.mxu0 0.0
    %2725 = vmatpush1.xpose.msra.mxu0 0.0
    %2726 = vmatprep.subr.mxu0 0.0
    %2727 = vmatpush1.xpose.msra.mxu0 0.0
    %2728 = vmatprep.subr.mxu0 0.0
    %2729 = vmatpush1.xpose.msra.mxu0 0.0
    %2730 = vmatprep.subr.mxu0 0.0
    %2731 = vmatpush1.xpose.msra.mxu0 0.0
    %2732 = vmatprep.subr.mxu0 0.0
    %2733 = vmatpush1.xpose.msra.mxu0 0.0
    %2734 = vmatprep.subr.mxu0 0.0
    %2735 = vmatpush1.xpose.msra.mxu0 0.0
    %2736 = vmatprep.subr.mxu0 0.0
    %2737 = vmatpush1.xpose.msra.mxu0 0.0
    %2738 = vmatprep.subr.mxu0 0.0
    %2739 = vmatpush1.xpose.msra.mxu0 0.0
    %2740 = vmatprep.subr.mxu0 0.0
    %2741 = vmatpush1.xpose.msra.mxu0 0.0
    %2742 = vmatprep.subr.mxu0 0.0
    %2743 = vmatpush1.xpose.msra.mxu0 0.0
    %2744 = vmatprep.subr.mxu0 0.0
    %2745 = vmatpush1.xpose.msra.mxu0 0.0
    %2746 = vmatprep.subr.mxu0 0.0
    %2747 = vmatpush1.xpose.msra.mxu0 0.0
    %2748 = vmatprep.mubr.f32.mxu0 0.0
    %2749 = vmatmul.mubr.f32.gmra.mrb[0].mxu0 %v2680
    %v2750 = vpop.f32.mrb[0].mxu0
    %v2751 = vadd.f32 0.0, %v2750
    %v2752 = vpop.f32.mrb[0].mxu0
    %2753 = vdwg.mxu0
    %v2754 = vmul.f32 %v2219, 0.35355338
    %v2755 = vmul.f32 %v2295, 0.35355338
    %v2756 = vmul.f32 %v2371, 0.35355338
    %v2757 = vmul.f32 %v2447, 0.35355338
    %v2758 = vmul.f32 %v2523, 0.35355338
    %v2759 = vmul.f32 %v2599, 0.35355338
    %v2760 = vmul.f32 %v2675, 0.35355338
    %v2761 = vmul.f32 %v2751, 0.35355338
    %v2762 = vsel %vm33, %v2754, -inf
    %2763 = vmax.xlane.f32.xlu0 %v2762
    %v2764 = vpop.xlane.xlu0 %2763
    %v2765 = vsel %vm33, %v2755, -inf
    %2766 = vmax.xlane.f32.xlu0 %v2765
    %v2767 = vpop.xlane.xlu0 %2766
    %v2768 = vsel %vm33, %v2756, -inf
    %2769 = vmax.xlane.f32.xlu0 %v2768
    %v2770 = vpop.xlane.xlu0 %2769
    %v2771 = vsel %vm33, %v2757, -inf
    %2772 = vmax.xlane.f32.xlu0 %v2771
    %v2773 = vpop.xlane.xlu0 %2772
    %v2774 = vsel %vm33, %v2758, -inf
    %2775 = vmax.xlane.f32.xlu0 %v2774
    %v2776 = vpop.xlane.xlu0 %2775
    %v2777 = vsel %vm33, %v2759, -inf
    %2778 = vmax.xlane.f32.xlu0 %v2777
    %v2779 = vpop.xlane.xlu0 %2778
    %v2780 = vsel %vm33, %v2760, -inf
    %2781 = vmax.xlane.f32.xlu0 %v2780
    %v2782 = vpop.xlane.xlu0 %2781
    %v2783 = vsel %vm33, %v2761, -inf
    %2784 = vmax.xlane.f32.xlu0 %v2783
    %v2785 = vpop.xlane.xlu0 %2784
    %v2786 = vsub.f32 %v2754, %v2764
    %v2787 = vsub.f32 %v2755, %v2767
    %v2788 = vsub.f32 %v2756, %v2770
    %v2789 = vsub.f32 %v2757, %v2773
    %v2790 = vsub.f32 %v2758, %v2776
    %v2791 = vsub.f32 %v2759, %v2779
    %v2792 = vsub.f32 %v2760, %v2782
    %v2793 = vsub.f32 %v2761, %v2785
    %v2794 = vmul.f32 %v2786, 1.442695
    %v2795 = vpow.pop %v2794
    %v2796 = vmul.f32 %v2787, 1.442695
    %v2797 = vpow.pop %v2796
    %v2798 = vmul.f32 %v2788, 1.442695
    %v2799 = vpow.pop %v2798
    %v2800 = vmul.f32 %v2789, 1.442695
    %v2801 = vpow.pop %v2800
    %v2802 = vmul.f32 %v2790, 1.442695
    %v2803 = vpow.pop %v2802
    %v2804 = vmul.f32 %v2791, 1.442695
    %v2805 = vpow.pop %v2804
    %v2806 = vmul.f32 %v2792, 1.442695
    %v2807 = vpow.pop %v2806
    %v2808 = vmul.f32 %v2793, 1.442695
    %v2809 = vpow.pop %v2808
    %v2810 = vsel %vm33, %v2795, 0.0
    %2811 = vadd.xlane.f32.xlu0 %v2810
    %v2812 = vpop.xlane.xlu0 %2811
    %v2813 = vsel %vm33, %v2797, 0.0
    %2814 = vadd.xlane.f32.xlu0 %v2813
    %v2815 = vpop.xlane.xlu0 %2814
    %v2816 = vsel %vm33, %v2799, 0.0
    %2817 = vadd.xlane.f32.xlu0 %v2816
    %v2818 = vpop.xlane.xlu0 %2817
    %v2819 = vsel %vm33, %v2801, 0.0
    %2820 = vadd.xlane.f32.xlu0 %v2819
    %v2821 = vpop.xlane.xlu0 %2820
    %v2822 = vsel %vm33, %v2803, 0.0
    %2823 = vadd.xlane.f32.xlu0 %v2822
    %v2824 = vpop.xlane.xlu0 %2823
    %v2825 = vsel %vm33, %v2805, 0.0
    %2826 = vadd.xlane.f32.xlu0 %v2825
    %v2827 = vpop.xlane.xlu0 %2826
    %v2828 = vsel %vm33, %v2807, 0.0
    %2829 = vadd.xlane.f32.xlu0 %v2828
    %v2830 = vpop.xlane.xlu0 %2829
    %v2831 = vsel %vm33, %v2809, 0.0
    %2832 = vadd.xlane.f32.xlu0 %v2831
    %v2833 = vpop.xlane.xlu0 %2832
    %v2834 = vrcp.pop %v2812
    %v2835 = vmul.f32 %v2795, %v2834
    %v2836 = vrcp.pop %v2815
    %v2837 = vmul.f32 %v2797, %v2836
    %v2838 = vrcp.pop %v2818
    %v2839 = vmul.f32 %v2799, %v2838
    %v2840 = vrcp.pop %v2821
    %v2841 = vmul.f32 %v2801, %v2840
    %v2842 = vrcp.pop %v2824
    %v2843 = vmul.f32 %v2803, %v2842
    %v2844 = vrcp.pop %v2827
    %v2845 = vmul.f32 %v2805, %v2844
    %v2846 = vrcp.pop %v2830
    %v2847 = vmul.f32 %v2807, %v2846
    %v2848 = vrcp.pop %v2833
    %v2849 = vmul.f32 %v2809, %v2848
    %2850 = vrot.lane.b32.xlu0 %v2124, 64
    %v2851 = vpop.permute.xlu0 %2850
    %v2854 = vsel %vm33, %v2835, 0
    %2856 = vmatprep.subr.mxu0 0.0
    %2857 = vmatpush1.msra.mxu0 %v2851
    %2858 = vmatprep.subr.mxu0 0.0
    %2859 = vmatpush1.msra.mxu0 0.0
    %2860 = vmatprep.subr.mxu0 0.0
    %2861 = vmatpush1.msra.mxu0 0.0
    %2862 = vmatprep.subr.mxu0 0.0
    %2863 = vmatpush1.msra.mxu0 0.0
    %2864 = vmatprep.subr.mxu0 0.0
    %2865 = vmatpush1.msra.mxu0 0.0
    %2866 = vmatprep.subr.mxu0 0.0
    %2867 = vmatpush1.msra.mxu0 0.0
    %2868 = vmatprep.subr.mxu0 0.0
    %2869 = vmatpush1.msra.mxu0 0.0
    %2870 = vmatprep.subr.mxu0 0.0
    %2871 = vmatpush1.msra.mxu0 0.0
    %2872 = vmatprep.subr.mxu0 0.0
    %2873 = vmatpush1.msra.mxu0 0.0
    %2874 = vmatprep.subr.mxu0 0.0
    %2875 = vmatpush1.msra.mxu0 0.0
    %2876 = vmatprep.subr.mxu0 0.0
    %2877 = vmatpush1.msra.mxu0 0.0
    %2878 = vmatprep.subr.mxu0 0.0
    %2879 = vmatpush1.msra.mxu0 0.0
    %2880 = vmatprep.subr.mxu0 0.0
    %2881 = vmatpush1.msra.mxu0 0.0
    %2882 = vmatprep.subr.mxu0 0.0
    %2883 = vmatpush1.msra.mxu0 0.0
    %2884 = vmatprep.subr.mxu0 0.0
    %2885 = vmatpush1.msra.mxu0 0.0
    %2886 = vmatprep.subr.mxu0 0.0
    %2887 = vmatpush1.msra.mxu0 0.0
    %2888 = vmatprep.subr.mxu0 0.0
    %2889 = vmatpush1.msra.mxu0 0.0
    %2890 = vmatprep.subr.mxu0 0.0
    %2891 = vmatpush1.msra.mxu0 0.0
    %2892 = vmatprep.subr.mxu0 0.0
    %2893 = vmatpush1.msra.mxu0 0.0
    %2894 = vmatprep.subr.mxu0 0.0
    %2895 = vmatpush1.msra.mxu0 0.0
    %2896 = vmatprep.subr.mxu0 0.0
    %2897 = vmatpush1.msra.mxu0 0.0
    %2898 = vmatprep.subr.mxu0 0.0
    %2899 = vmatpush1.msra.mxu0 0.0
    %2900 = vmatprep.subr.mxu0 0.0
    %2901 = vmatpush1.msra.mxu0 0.0
    %2902 = vmatprep.subr.mxu0 0.0
    %2903 = vmatpush1.msra.mxu0 0.0
    %2904 = vmatprep.subr.mxu0 0.0
    %2905 = vmatpush1.msra.mxu0 0.0
    %2906 = vmatprep.subr.mxu0 0.0
    %2907 = vmatpush1.msra.mxu0 0.0
    %2908 = vmatprep.subr.mxu0 0.0
    %2909 = vmatpush1.msra.mxu0 0.0
    %2910 = vmatprep.subr.mxu0 0.0
    %2911 = vmatpush1.msra.mxu0 0.0
    %2912 = vmatprep.subr.mxu0 0.0
    %2913 = vmatpush1.msra.mxu0 0.0
    %2914 = vmatprep.subr.mxu0 0.0
    %2915 = vmatpush1.msra.mxu0 0.0
    %2916 = vmatprep.subr.mxu0 0.0
    %2917 = vmatpush1.msra.mxu0 0.0
    %2918 = vmatprep.subr.mxu0 0.0
    %2919 = vmatpush1.msra.mxu0 0.0
    %2920 = vmatprep.mubr.f32.mxu0 0.0
    %2921 = vmatmul.mubr.f32.gmra.mrb[0].mxu0 %v2854
    %v2922 = vpop.f32.mrb[0].mxu0
    %v2923 = vadd.f32 0.0, %v2922
    %v2924 = vpop.f32.mrb[0].mxu0
    %2925 = vdwg.mxu0
    %2926 = vrot.lane.b32.xlu0 %v2129, 64
    %v2927 = vpop.permute.xlu0 %2926
    %v2930 = vsel %vm33, %v2837, 0
    %2932 = vmatprep.subr.mxu0 0.0
    %2933 = vmatpush1.msra.mxu0 %v2927
    %2934 = vmatprep.subr.mxu0 0.0
    %2935 = vmatpush1.msra.mxu0 0.0
    %2936 = vmatprep.subr.mxu0 0.0
    %2937 = vmatpush1.msra.mxu0 0.0
    %2938 = vmatprep.subr.mxu0 0.0
    %2939 = vmatpush1.msra.mxu0 0.0
    %2940 = vmatprep.subr.mxu0 0.0
    %2941 = vmatpush1.msra.mxu0 0.0
    %2942 = vmatprep.subr.mxu0 0.0
    %2943 = vmatpush1.msra.mxu0 0.0
    %2944 = vmatprep.subr.mxu0 0.0
    %2945 = vmatpush1.msra.mxu0 0.0
    %2946 = vmatprep.subr.mxu0 0.0
    %2947 = vmatpush1.msra.mxu0 0.0
    %2948 = vmatprep.subr.mxu0 0.0
    %2949 = vmatpush1.msra.mxu0 0.0
    %2950 = vmatprep.subr.mxu0 0.0
    %2951 = vmatpush1.msra.mxu0 0.0
    %2952 = vmatprep.subr.mxu0 0.0
    %2953 = vmatpush1.msra.mxu0 0.0
    %2954 = vmatprep.subr.mxu0 0.0
    %2955 = vmatpush1.msra.mxu0 0.0
    %2956 = vmatprep.subr.mxu0 0.0
    %2957 = vmatpush1.msra.mxu0 0.0
    %2958 = vmatprep.subr.mxu0 0.0
    %2959 = vmatpush1.msra.mxu0 0.0
    %2960 = vmatprep.subr.mxu0 0.0
    %2961 = vmatpush1.msra.mxu0 0.0
    %2962 = vmatprep.subr.mxu0 0.0
    %2963 = vmatpush1.msra.mxu0 0.0
    %2964 = vmatprep.subr.mxu0 0.0
    %2965 = vmatpush1.msra.mxu0 0.0
    %2966 = vmatprep.subr.mxu0 0.0
    %2967 = vmatpush1.msra.mxu0 0.0
    %2968 = vmatprep.subr.mxu0 0.0
    %2969 = vmatpush1.msra.mxu0 0.0
    %2970 = vmatprep.subr.mxu0 0.0
    %2971 = vmatpush1.msra.mxu0 0.0
    %2972 = vmatprep.subr.mxu0 0.0
    %2973 = vmatpush1.msra.mxu0 0.0
    %2974 = vmatprep.subr.mxu0 0.0
    %2975 = vmatpush1.msra.mxu0 0.0
    %2976 = vmatprep.subr.mxu0 0.0
    %2977 = vmatpush1.msra.mxu0 0.0
    %2978 = vmatprep.subr.mxu0 0.0
    %2979 = vmatpush1.msra.mxu0 0.0
    %2980 = vmatprep.subr.mxu0 0.0
    %2981 = vmatpush1.msra.mxu0 0.0
    %2982 = vmatprep.subr.mxu0 0.0
    %2983 = vmatpush1.msra.mxu0 0.0
    %2984 = vmatprep.subr.mxu0 0.0
    %2985 = vmatpush1.msra.mxu0 0.0
    %2986 = vmatprep.subr.mxu0 0.0
    %2987 = vmatpush1.msra.mxu0 0.0
    %2988 = vmatprep.subr.mxu0 0.0
    %2989 = vmatpush1.msra.mxu0 0.0
    %2990 = vmatprep.subr.mxu0 0.0
    %2991 = vmatpush1.msra.mxu0 0.0
    %2992 = vmatprep.subr.mxu0 0.0
    %2993 = vmatpush1.msra.mxu0 0.0
    %2994 = vmatprep.subr.mxu0 0.0
    %2995 = vmatpush1.msra.mxu0 0.0
    %2996 = vmatprep.mubr.f32.mxu0 0.0
    %2997 = vmatmul.mubr.f32.gmra.mrb[0].mxu0 %v2930
    %v2998 = vpop.f32.mrb[0].mxu0
    %v2999 = vadd.f32 0.0, %v2998
    %v3000 = vpop.f32.mrb[0].mxu0
    %3001 = vdwg.mxu0
    %3002 = vrot.lane.b32.xlu0 %v2135, 64
    %v3003 = vpop.permute.xlu0 %3002
    %v3006 = vsel %vm33, %v2839, 0
    %3008 = vmatprep.subr.mxu0 0.0
    %3009 = vmatpush1.msra.mxu0 %v3003
    %3010 = vmatprep.subr.mxu0 0.0
    %3011 = vmatpush1.msra.mxu0 0.0
    %3012 = vmatprep.subr.mxu0 0.0
    %3013 = vmatpush1.msra.mxu0 0.0
    %3014 = vmatprep.subr.mxu0 0.0
    %3015 = vmatpush1.msra.mxu0 0.0
    %3016 = vmatprep.subr.mxu0 0.0
    %3017 = vmatpush1.msra.mxu0 0.0
    %3018 = vmatprep.subr.mxu0 0.0
    %3019 = vmatpush1.msra.mxu0 0.0
    %3020 = vmatprep.subr.mxu0 0.0
    %3021 = vmatpush1.msra.mxu0 0.0
    %3022 = vmatprep.subr.mxu0 0.0
    %3023 = vmatpush1.msra.mxu0 0.0
    %3024 = vmatprep.subr.mxu0 0.0
    %3025 = vmatpush1.msra.mxu0 0.0
    %3026 = vmatprep.subr.mxu0 0.0
    %3027 = vmatpush1.msra.mxu0 0.0
    %3028 = vmatprep.subr.mxu0 0.0
    %3029 = vmatpush1.msra.mxu0 0.0
    %3030 = vmatprep.subr.mxu0 0.0
    %3031 = vmatpush1.msra.mxu0 0.0
    %3032 = vmatprep.subr.mxu0 0.0
    %3033 = vmatpush1.msra.mxu0 0.0
    %3034 = vmatprep.subr.mxu0 0.0
    %3035 = vmatpush1.msra.mxu0 0.0
    %3036 = vmatprep.subr.mxu0 0.0
    %3037 = vmatpush1.msra.mxu0 0.0
    %3038 = vmatprep.subr.mxu0 0.0
    %3039 = vmatpush1.msra.mxu0 0.0
    %3040 = vmatprep.subr.mxu0 0.0
    %3041 = vmatpush1.msra.mxu0 0.0
    %3042 = vmatprep.subr.mxu0 0.0
    %3043 = vmatpush1.msra.mxu0 0.0
    %3044 = vmatprep.subr.mxu0 0.0
    %3045 = vmatpush1.msra.mxu0 0.0
    %3046 = vmatprep.subr.mxu0 0.0
    %3047 = vmatpush1.msra.mxu0 0.0
    %3048 = vmatprep.subr.mxu0 0.0
    %3049 = vmatpush1.msra.mxu0 0.0
    %3050 = vmatprep.subr.mxu0 0.0
    %3051 = vmatpush1.msra.mxu0 0.0
    %3052 = vmatprep.subr.mxu0 0.0
    %3053 = vmatpush1.msra.mxu0 0.0
    %3054 = vmatprep.subr.mxu0 0.0
    %3055 = vmatpush1.msra.mxu0 0.0
    %3056 = vmatprep.subr.mxu0 0.0
    %3057 = vmatpush1.msra.mxu0 0.0
    %3058 = vmatprep.subr.mxu0 0.0
    %3059 = vmatpush1.msra.mxu0 0.0
    %3060 = vmatprep.subr.mxu0 0.0
    %3061 = vmatpush1.msra.mxu0 0.0
    %3062 = vmatprep.subr.mxu0 0.0
    %3063 = vmatpush1.msra.mxu0 0.0
    %3064 = vmatprep.subr.mxu0 0.0
    %3065 = vmatpush1.msra.mxu0 0.0
    %3066 = vmatprep.subr.mxu0 0.0
    %3067 = vmatpush1.msra.mxu0 0.0
    %3068 = vmatprep.subr.mxu0 0.0
    %3069 = vmatpush1.msra.mxu0 0.0
    %3070 = vmatprep.subr.mxu0 0.0
    %3071 = vmatpush1.msra.mxu0 0.0
    %3072 = vmatprep.mubr.f32.mxu0 0.0
    %3073 = vmatmul.mubr.f32.gmra.mrb[0].mxu0 %v3006
    %v3074 = vpop.f32.mrb[0].mxu0
    %v3075 = vadd.f32 0.0, %v3074
    %v3076 = vpop.f32.mrb[0].mxu0
    %3077 = vdwg.mxu0
    %3078 = vrot.lane.b32.xlu0 %v2137, 64
    %v3079 = vpop.permute.xlu0 %3078
    %v3082 = vsel %vm33, %v2841, 0
    %3084 = vmatprep.subr.mxu0 0.0
    %3085 = vmatpush1.msra.mxu0 %v3079
    %3086 = vmatprep.subr.mxu0 0.0
    %3087 = vmatpush1.msra.mxu0 0.0
    %3088 = vmatprep.subr.mxu0 0.0
    %3089 = vmatpush1.msra.mxu0 0.0
    %3090 = vmatprep.subr.mxu0 0.0
    %3091 = vmatpush1.msra.mxu0 0.0
    %3092 = vmatprep.subr.mxu0 0.0
    %3093 = vmatpush1.msra.mxu0 0.0
    %3094 = vmatprep.subr.mxu0 0.0
    %3095 = vmatpush1.msra.mxu0 0.0
    %3096 = vmatprep.subr.mxu0 0.0
    %3097 = vmatpush1.msra.mxu0 0.0
    %3098 = vmatprep.subr.mxu0 0.0
    %3099 = vmatpush1.msra.mxu0 0.0
    %3100 = vmatprep.subr.mxu0 0.0
    %3101 = vmatpush1.msra.mxu0 0.0
    %3102 = vmatprep.subr.mxu0 0.0
    %3103 = vmatpush1.msra.mxu0 0.0
    %3104 = vmatprep.subr.mxu0 0.0
    %3105 = vmatpush1.msra.mxu0 0.0
    %3106 = vmatprep.subr.mxu0 0.0
    %3107 = vmatpush1.msra.mxu0 0.0
    %3108 = vmatprep.subr.mxu0 0.0
    %3109 = vmatpush1.msra.mxu0 0.0
    %3110 = vmatprep.subr.mxu0 0.0
    %3111 = vmatpush1.msra.mxu0 0.0
    %3112 = vmatprep.subr.mxu0 0.0
    %3113 = vmatpush1.msra.mxu0 0.0
    %3114 = vmatprep.subr.mxu0 0.0
    %3115 = vmatpush1.msra.mxu0 0.0
    %3116 = vmatprep.subr.mxu0 0.0
    %3117 = vmatpush1.msra.mxu0 0.0
    %3118 = vmatprep.subr.mxu0 0.0
    %3119 = vmatpush1.msra.mxu0 0.0
    %3120 = vmatprep.subr.mxu0 0.0
    %3121 = vmatpush1.msra.mxu0 0.0
    %3122 = vmatprep.subr.mxu0 0.0
    %3123 = vmatpush1.msra.mxu0 0.0
    %3124 = vmatprep.subr.mxu0 0.0
    %3125 = vmatpush1.msra.mxu0 0.0
    %3126 = vmatprep.subr.mxu0 0.0
    %3127 = vmatpush1.msra.mxu0 0.0
    %3128 = vmatprep.subr.mxu0 0.0
    %3129 = vmatpush1.msra.mxu0 0.0
    %3130 = vmatprep.subr.mxu0 0.0
    %3131 = vmatpush1.msra.mxu0 0.0
    %3132 = vmatprep.subr.mxu0 0.0
    %3133 = vmatpush1.msra.mxu0 0.0
    %3134 = vmatprep.subr.mxu0 0.0
    %3135 = vmatpush1.msra.mxu0 0.0
    %3136 = vmatprep.subr.mxu0 0.0
    %3137 = vmatpush1.msra.mxu0 0.0
    %3138 = vmatprep.subr.mxu0 0.0
    %3139 = vmatpush1.msra.mxu0 0.0
    %3140 = vmatprep.subr.mxu0 0.0
    %3141 = vmatpush1.msra.mxu0 0.0
    %3142 = vmatprep.subr.mxu0 0.0
    %3143 = vmatpush1.msra.mxu0 0.0
    %3144 = vmatprep.subr.mxu0 0.0
    %3145 = vmatpush1.msra.mxu0 0.0
    %3146 = vmatprep.subr.mxu0 0.0
    %3147 = vmatpush1.msra.mxu0 0.0
    %3148 = vmatprep.mubr.f32.mxu0 0.0
    %3149 = vmatmul.mubr.f32.gmra.mrb[0].mxu0 %v3082
    %v3150 = vpop.f32.mrb[0].mxu0
    %v3151 = vadd.f32 0.0, %v3150
    %v3152 = vpop.f32.mrb[0].mxu0
    %3153 = vdwg.mxu0
    %3154 = vrot.lane.b32.xlu0 %v2139, 64
    %v3155 = vpop.permute.xlu0 %3154
    %v3158 = vsel %vm33, %v2843, 0
    %3160 = vmatprep.subr.mxu0 0.0
    %3161 = vmatpush1.msra.mxu0 %v3155
    %3162 = vmatprep.subr.mxu0 0.0
    %3163 = vmatpush1.msra.mxu0 0.0
    %3164 = vmatprep.subr.mxu0 0.0
    %3165 = vmatpush1.msra.mxu0 0.0
    %3166 = vmatprep.subr.mxu0 0.0
    %3167 = vmatpush1.msra.mxu0 0.0
    %3168 = vmatprep.subr.mxu0 0.0
    %3169 = vmatpush1.msra.mxu0 0.0
    %3170 = vmatprep.subr.mxu0 0.0
    %3171 = vmatpush1.msra.mxu0 0.0
    %3172 = vmatprep.subr.mxu0 0.0
    %3173 = vmatpush1.msra.mxu0 0.0
    %3174 = vmatprep.subr.mxu0 0.0
    %3175 = vmatpush1.msra.mxu0 0.0
    %3176 = vmatprep.subr.mxu0 0.0
    %3177 = vmatpush1.msra.mxu0 0.0
    %3178 = vmatprep.subr.mxu0 0.0
    %3179 = vmatpush1.msra.mxu0 0.0
    %3180 = vmatprep.subr.mxu0 0.0
    %3181 = vmatpush1.msra.mxu0 0.0
    %3182 = vmatprep.subr.mxu0 0.0
    %3183 = vmatpush1.msra.mxu0 0.0
    %3184 = vmatprep.subr.mxu0 0.0
    %3185 = vmatpush1.msra.mxu0 0.0
    %3186 = vmatprep.subr.mxu0 0.0
    %3187 = vmatpush1.msra.mxu0 0.0
    %3188 = vmatprep.subr.mxu0 0.0
    %3189 = vmatpush1.msra.mxu0 0.0
    %3190 = vmatprep.subr.mxu0 0.0
    %3191 = vmatpush1.msra.mxu0 0.0
    %3192 = vmatprep.subr.mxu0 0.0
    %3193 = vmatpush1.msra.mxu0 0.0
    %3194 = vmatprep.subr.mxu0 0.0
    %3195 = vmatpush1.msra.mxu0 0.0
    %3196 = vmatprep.subr.mxu0 0.0
    %3197 = vmatpush1.msra.mxu0 0.0
    %3198 = vmatprep.subr.mxu0 0.0
    %3199 = vmatpush1.msra.mxu0 0.0
    %3200 = vmatprep.subr.mxu0 0.0
    %3201 = vmatpush1.msra.mxu0 0.0
    %3202 = vmatprep.subr.mxu0 0.0
    %3203 = vmatpush1.msra.mxu0 0.0
    %3204 = vmatprep.subr.mxu0 0.0
    %3205 = vmatpush1.msra.mxu0 0.0
    %3206 = vmatprep.subr.mxu0 0.0
    %3207 = vmatpush1.msra.mxu0 0.0
    %3208 = vmatprep.subr.mxu0 0.0
    %3209 = vmatpush1.msra.mxu0 0.0
    %3210 = vmatprep.subr.mxu0 0.0
    %3211 = vmatpush1.msra.mxu0 0.0
    %3212 = vmatprep.subr.mxu0 0.0
    %3213 = vmatpush1.msra.mxu0 0.0
    %3214 = vmatprep.subr.mxu0 0.0
    %3215 = vmatpush1.msra.mxu0 0.0
    %3216 = vmatprep.subr.mxu0 0.0
    %3217 = vmatpush1.msra.mxu0 0.0
    %3218 = vmatprep.subr.mxu0 0.0
    %3219 = vmatpush1.msra.mxu0 0.0
    %3220 = vmatprep.subr.mxu0 0.0
    %3221 = vmatpush1.msra.mxu0 0.0
    %3222 = vmatprep.subr.mxu0 0.0
    %3223 = vmatpush1.msra.mxu0 0.0
    %3224 = vmatprep.mubr.f32.mxu0 0.0
    %3225 = vmatmul.mubr.f32.gmra.mrb[0].mxu0 %v3158
    %v3226 = vpop.f32.mrb[0].mxu0
    %v3227 = vadd.f32 0.0, %v3226
    %v3228 = vpop.f32.mrb[0].mxu0
    %3229 = vdwg.mxu0
    %3230 = vrot.lane.b32.xlu0 %v2141, 64
    %v3231 = vpop.permute.xlu0 %3230
    %v3234 = vsel %vm33, %v2845, 0
    %3236 = vmatprep.subr.mxu0 0.0
    %3237 = vmatpush1.msra.mxu0 %v3231
    %3238 = vmatprep.subr.mxu0 0.0
    %3239 = vmatpush1.msra.mxu0 0.0
    %3240 = vmatprep.subr.mxu0 0.0
    %3241 = vmatpush1.msra.mxu0 0.0
    %3242 = vmatprep.subr.mxu0 0.0
    %3243 = vmatpush1.msra.mxu0 0.0
    %3244 = vmatprep.subr.mxu0 0.0
    %3245 = vmatpush1.msra.mxu0 0.0
    %3246 = vmatprep.subr.mxu0 0.0
    %3247 = vmatpush1.msra.mxu0 0.0
    %3248 = vmatprep.subr.mxu0 0.0
    %3249 = vmatpush1.msra.mxu0 0.0
    %3250 = vmatprep.subr.mxu0 0.0
    %3251 = vmatpush1.msra.mxu0 0.0
    %3252 = vmatprep.subr.mxu0 0.0
    %3253 = vmatpush1.msra.mxu0 0.0
    %3254 = vmatprep.subr.mxu0 0.0
    %3255 = vmatpush1.msra.mxu0 0.0
    %3256 = vmatprep.subr.mxu0 0.0
    %3257 = vmatpush1.msra.mxu0 0.0
    %3258 = vmatprep.subr.mxu0 0.0
    %3259 = vmatpush1.msra.mxu0 0.0
    %3260 = vmatprep.subr.mxu0 0.0
    %3261 = vmatpush1.msra.mxu0 0.0
    %3262 = vmatprep.subr.mxu0 0.0
    %3263 = vmatpush1.msra.mxu0 0.0
    %3264 = vmatprep.subr.mxu0 0.0
    %3265 = vmatpush1.msra.mxu0 0.0
    %3266 = vmatprep.subr.mxu0 0.0
    %3267 = vmatpush1.msra.mxu0 0.0
    %3268 = vmatprep.subr.mxu0 0.0
    %3269 = vmatpush1.msra.mxu0 0.0
    %3270 = vmatprep.subr.mxu0 0.0
    %3271 = vmatpush1.msra.mxu0 0.0
    %3272 = vmatprep.subr.mxu0 0.0
    %3273 = vmatpush1.msra.mxu0 0.0
    %3274 = vmatprep.subr.mxu0 0.0
    %3275 = vmatpush1.msra.mxu0 0.0
    %3276 = vmatprep.subr.mxu0 0.0
    %3277 = vmatpush1.msra.mxu0 0.0
    %3278 = vmatprep.subr.mxu0 0.0
    %3279 = vmatpush1.msra.mxu0 0.0
    %3280 = vmatprep.subr.mxu0 0.0
    %3281 = vmatpush1.msra.mxu0 0.0
    %3282 = vmatprep.subr.mxu0 0.0
    %3283 = vmatpush1.msra.mxu0 0.0
    %3284 = vmatprep.subr.mxu0 0.0
    %3285 = vmatpush1.msra.mxu0 0.0
    %3286 = vmatprep.subr.mxu0 0.0
    %3287 = vmatpush1.msra.mxu0 0.0
    %3288 = vmatprep.subr.mxu0 0.0
    %3289 = vmatpush1.msra.mxu0 0.0
    %3290 = vmatprep.subr.mxu0 0.0
    %3291 = vmatpush1.msra.mxu0 0.0
    %3292 = vmatprep.subr.mxu0 0.0
    %3293 = vmatpush1.msra.mxu0 0.0
    %3294 = vmatprep.subr.mxu0 0.0
    %3295 = vmatpush1.msra.mxu0 0.0
    %3296 = vmatprep.subr.mxu0 0.0
    %3297 = vmatpush1.msra.mxu0 0.0
    %3298 = vmatprep.subr.mxu0 0.0
    %3299 = vmatpush1.msra.mxu0 0.0
    %3300 = vmatprep.mubr.f32.mxu0 0.0
    %3301 = vmatmul.mubr.f32.gmra.mrb[0].mxu0 %v3234
    %v3302 = vpop.f32.mrb[0].mxu0
    %v3303 = vadd.f32 0.0, %v3302
    %v3304 = vpop.f32.mrb[0].mxu0
    %3305 = vdwg.mxu0
    %3306 = vrot.lane.b32.xlu0 %v2143, 64
    %v3307 = vpop.permute.xlu0 %3306
    %v3310 = vsel %vm33, %v2847, 0
    %3312 = vmatprep.subr.mxu0 0.0
    %3313 = vmatpush1.msra.mxu0 %v3307
    %3314 = vmatprep.subr.mxu0 0.0
    %3315 = vmatpush1.msra.mxu0 0.0
    %3316 = vmatprep.subr.mxu0 0.0
    %3317 = vmatpush1.msra.mxu0 0.0
    %3318 = vmatprep.subr.mxu0 0.0
    %3319 = vmatpush1.msra.mxu0 0.0
    %3320 = vmatprep.subr.mxu0 0.0
    %3321 = vmatpush1.msra.mxu0 0.0
    %3322 = vmatprep.subr.mxu0 0.0
    %3323 = vmatpush1.msra.mxu0 0.0
    %3324 = vmatprep.subr.mxu0 0.0
    %3325 = vmatpush1.msra.mxu0 0.0
    %3326 = vmatprep.subr.mxu0 0.0
    %3327 = vmatpush1.msra.mxu0 0.0
    %3328 = vmatprep.subr.mxu0 0.0
    %3329 = vmatpush1.msra.mxu0 0.0
    %3330 = vmatprep.subr.mxu0 0.0
    %3331 = vmatpush1.msra.mxu0 0.0
    %3332 = vmatprep.subr.mxu0 0.0
    %3333 = vmatpush1.msra.mxu0 0.0
    %3334 = vmatprep.subr.mxu0 0.0
    %3335 = vmatpush1.msra.mxu0 0.0
    %3336 = vmatprep.subr.mxu0 0.0
    %3337 = vmatpush1.msra.mxu0 0.0
    %3338 = vmatprep.subr.mxu0 0.0
    %3339 = vmatpush1.msra.mxu0 0.0
    %3340 = vmatprep.subr.mxu0 0.0
    %3341 = vmatpush1.msra.mxu0 0.0
    %3342 = vmatprep.subr.mxu0 0.0
    %3343 = vmatpush1.msra.mxu0 0.0
    %3344 = vmatprep.subr.mxu0 0.0
    %3345 = vmatpush1.msra.mxu0 0.0
    %3346 = vmatprep.subr.mxu0 0.0
    %3347 = vmatpush1.msra.mxu0 0.0
    %3348 = vmatprep.subr.mxu0 0.0
    %3349 = vmatpush1.msra.mxu0 0.0
    %3350 = vmatprep.subr.mxu0 0.0
    %3351 = vmatpush1.msra.mxu0 0.0
    %3352 = vmatprep.subr.mxu0 0.0
    %3353 = vmatpush1.msra.mxu0 0.0
    %3354 = vmatprep.subr.mxu0 0.0
    %3355 = vmatpush1.msra.mxu0 0.0
    %3356 = vmatprep.subr.mxu0 0.0
    %3357 = vmatpush1.msra.mxu0 0.0
    %3358 = vmatprep.subr.mxu0 0.0
    %3359 = vmatpush1.msra.mxu0 0.0
    %3360 = vmatprep.subr.mxu0 0.0
    %3361 = vmatpush1.msra.mxu0 0.0
    %3362 = vmatprep.subr.mxu0 0.0
    %3363 = vmatpush1.msra.mxu0 0.0
    %3364 = vmatprep.subr.mxu0 0.0
    %3365 = vmatpush1.msra.mxu0 0.0
    %3366 = vmatprep.subr.mxu0 0.0
    %3367 = vmatpush1.msra.mxu0 0.0
    %3368 = vmatprep.subr.mxu0 0.0
    %3369 = vmatpush1.msra.mxu0 0.0
    %3370 = vmatprep.subr.mxu0 0.0
    %3371 = vmatpush1.msra.mxu0 0.0
    %3372 = vmatprep.subr.mxu0 0.0
    %3373 = vmatpush1.msra.mxu0 0.0
    %3374 = vmatprep.subr.mxu0 0.0
    %3375 = vmatpush1.msra.mxu0 0.0
    %3376 = vmatprep.mubr.f32.mxu0 0.0
    %3377 = vmatmul.mubr.f32.gmra.mrb[0].mxu0 %v3310
    %v3378 = vpop.f32.mrb[0].mxu0
    %v3379 = vadd.f32 0.0, %v3378
    %v3380 = vpop.f32.mrb[0].mxu0
    %3381 = vdwg.mxu0
    %3382 = vrot.lane.b32.xlu0 %v2145, 64
    %v3383 = vpop.permute.xlu0 %3382
    %v3386 = vsel %vm33, %v2849, 0
    %3388 = vmatprep.subr.mxu0 0.0
    %3389 = vmatpush1.msra.mxu0 %v3383
    %3390 = vmatprep.subr.mxu0 0.0
    %3391 = vmatpush1.msra.mxu0 0.0
    %3392 = vmatprep.subr.mxu0 0.0
    %3393 = vmatpush1.msra.mxu0 0.0
    %3394 = vmatprep.subr.mxu0 0.0
    %3395 = vmatpush1.msra.mxu0 0.0
    %3396 = vmatprep.subr.mxu0 0.0
    %3397 = vmatpush1.msra.mxu0 0.0
    %3398 = vmatprep.subr.mxu0 0.0
    %3399 = vmatpush1.msra.mxu0 0.0
    %3400 = vmatprep.subr.mxu0 0.0
    %3401 = vmatpush1.msra.mxu0 0.0
    %3402 = vmatprep.subr.mxu0 0.0
    %3403 = vmatpush1.msra.mxu0 0.0
    %3404 = vmatprep.subr.mxu0 0.0
    %3405 = vmatpush1.msra.mxu0 0.0
    %3406 = vmatprep.subr.mxu0 0.0
    %3407 = vmatpush1.msra.mxu0 0.0
    %3408 = vmatprep.subr.mxu0 0.0
    %3409 = vmatpush1.msra.mxu0 0.0
    %3410 = vmatprep.subr.mxu0 0.0
    %3411 = vmatpush1.msra.mxu0 0.0
    %3412 = vmatprep.subr.mxu0 0.0
    %3413 = vmatpush1.msra.mxu0 0.0
    %3414 = vmatprep.subr.mxu0 0.0
    %3415 = vmatpush1.msra.mxu0 0.0
    %3416 = vmatprep.subr.mxu0 0.0
    %3417 = vmatpush1.msra.mxu0 0.0
    %3418 = vmatprep.subr.mxu0 0.0
    %3419 = vmatpush1.msra.mxu0 0.0
    %3420 = vmatprep.subr.mxu0 0.0
    %3421 = vmatpush1.msra.mxu0 0.0
    %3422 = vmatprep.subr.mxu0 0.0
    %3423 = vmatpush1.msra.mxu0 0.0
    %3424 = vmatprep.subr.mxu0 0.0
    %3425 = vmatpush1.msra.mxu0 0.0
    %3426 = vmatprep.subr.mxu0 0.0
    %3427 = vmatpush1.msra.mxu0 0.0
    %3428 = vmatprep.subr.mxu0 0.0
    %3429 = vmatpush1.msra.mxu0 0.0
    %3430 = vmatprep.subr.mxu0 0.0
    %3431 = vmatpush1.msra.mxu0 0.0
    %3432 = vmatprep.subr.mxu0 0.0
    %3433 = vmatpush1.msra.mxu0 0.0
    %3434 = vmatprep.subr.mxu0 0.0
    %3435 = vmatpush1.msra.mxu0 0.0
    %3436 = vmatprep.subr.mxu0 0.0
    %3437 = vmatpush1.msra.mxu0 0.0
    %3438 = vmatprep.subr.mxu0 0.0
    %3439 = vmatpush1.msra.mxu0 0.0
    %3440 = vmatprep.subr.mxu0 0.0
    %3441 = vmatpush1.msra.mxu0 0.0
    %3442 = vmatprep.subr.mxu0 0.0
    %3443 = vmatpush1.msra.mxu0 0.0
    %3444 = vmatprep.subr.mxu0 0.0
    %3445 = vmatpush1.msra.mxu0 0.0
    %3446 = vmatprep.subr.mxu0 0.0
    %3447 = vmatpush1.msra.mxu0 0.0
    %3448 = vmatprep.subr.mxu0 0.0
    %3449 = vmatpush1.msra.mxu0 0.0
    %3450 = vmatprep.subr.mxu0 0.0
    %3451 = vmatpush1.msra.mxu0 0.0
    %3452 = vmatprep.mubr.f32.mxu0 0.0
    %3453 = vmatmul.mubr.f32.gmra.mrb[0].mxu0 %v3386
    %v3454 = vpop.f32.mrb[0].mxu0
    %v3455 = vadd.f32 0.0, %v3454
    %v3456 = vpop.f32.mrb[0].mxu0
    %3457 = vdwg.mxu0
    %3460 = vrot.lane.b32.xlu0 %v3075, 8
    %v3461 = vpop.permute.xlu0 %3460
    %3462 = vrot.lane.b32.xlu0 %v3151, 8
    %v3463 = vpop.permute.xlu0 %3462
    %3468 = vrot.lane.b32.xlu0 %v3227, 16
    %v3469 = vpop.permute.xlu0 %3468
    %3470 = vrot.lane.b32.xlu0 %v3303, 16
    %v3471 = vpop.permute.xlu0 %3470
    %3476 = vrot.lane.b32.xlu0 %v3379, 24
    %v3477 = vpop.permute.xlu0 %3476
    %3478 = vrot.lane.b32.xlu0 %v3455, 24
    %v3479 = vpop.permute.xlu0 %3478
    %v3482 = vsel %vm33, %v2923, %v3461
    %v3483 = vsel %vm33, %v2999, %v3463
    %v3484 = vsel %vm1609, %v3482, %v3469
    %v3485 = vsel %vm1609, %v3483, %v3471
    %v3486 = vsel %vm1612, %v3484, %v3477
    %v3487 = vsel %vm1612, %v3485, %v3479
    %v3488 = vld [vmem:[#allocation2 + $0x108] sm:$0xff]
    %v3489 = vld [vmem:[#allocation2 + $0x110] sm:$0xff]
    %v3490 = vld [vmem:[#allocation2 + $0x118] sm:$0xff]
    %v3491 = vld [vmem:[#allocation2 + $0x120] sm:$0xff]
    %v3492 = vld [vmem:[#allocation2 + $0x189] sm:$0x1]
    %v3493 = vlaneseq
    %v3494 = vshrl.u32 %v3493, 7
    %v3495 = vsub.s32 0, %v3494
    %v3496 = vrot.slane %v3492, %v3495
    %v3498 = vsel %vm119, %v3486, 0
    %v3501 = vsel %vm119, %v3487, 0
    %3503 = vmatprep.subr.mxu0 0.0
    %3504 = vmatpush1.msra.mxu0 %v3488
    %3505 = vmatprep.subr.mxu0 0.0
    %3506 = vmatpush1.msra.mxu0 %v3489
    %3507 = vmatprep.subr.mxu0 0.0
    %3508 = vmatpush1.msra.mxu0 %v3490
    %3509 = vmatprep.subr.mxu0 0.0
    %3510 = vmatpush1.msra.mxu0 %v3491
    %3511 = vmatprep.subr.mxu0 0.0
    %3512 = vmatpush1.msra.mxu0 0.0
    %3513 = vmatprep.subr.mxu0 0.0
    %3514 = vmatpush1.msra.mxu0 0.0
    %3515 = vmatprep.subr.mxu0 0.0
    %3516 = vmatpush1.msra.mxu0 0.0
    %3517 = vmatprep.subr.mxu0 0.0
    %3518 = vmatpush1.msra.mxu0 0.0
    %3519 = vmatprep.subr.mxu0 0.0
    %3520 = vmatpush1.msra.mxu0 0.0
    %3521 = vmatprep.subr.mxu0 0.0
    %3522 = vmatpush1.msra.mxu0 0.0
    %3523 = vmatprep.subr.mxu0 0.0
    %3524 = vmatpush1.msra.mxu0 0.0
    %3525 = vmatprep.subr.mxu0 0.0
    %3526 = vmatpush1.msra.mxu0 0.0
    %3527 = vmatprep.subr.mxu0 0.0
    %3528 = vmatpush1.msra.mxu0 0.0
    %3529 = vmatprep.subr.mxu0 0.0
    %3530 = vmatpush1.msra.mxu0 0.0
    %3531 = vmatprep.subr.mxu0 0.0
    %3532 = vmatpush1.msra.mxu0 0.0
    %3533 = vmatprep.subr.mxu0 0.0
    %3534 = vmatpush1.msra.mxu0 0.0
    %3535 = vmatprep.subr.mxu0 0.0
    %3536 = vmatpush1.msra.mxu0 0.0
    %3537 = vmatprep.subr.mxu0 0.0
    %3538 = vmatpush1.msra.mxu0 0.0
    %3539 = vmatprep.subr.mxu0 0.0
    %3540 = vmatpush1.msra.mxu0 0.0
    %3541 = vmatprep.subr.mxu0 0.0
    %3542 = vmatpush1.msra.mxu0 0.0
    %3543 = vmatprep.subr.mxu0 0.0
    %3544 = vmatpush1.msra.mxu0 0.0
    %3545 = vmatprep.subr.mxu0 0.0
    %3546 = vmatpush1.msra.mxu0 0.0
    %3547 = vmatprep.subr.mxu0 0.0
    %3548 = vmatpush1.msra.mxu0 0.0
    %3549 = vmatprep.subr.mxu0 0.0
    %3550 = vmatpush1.msra.mxu0 0.0
    %3551 = vmatprep.subr.mxu0 0.0
    %3552 = vmatpush1.msra.mxu0 0.0
    %3553 = vmatprep.subr.mxu0 0.0
    %3554 = vmatpush1.msra.mxu0 0.0
    %3555 = vmatprep.subr.mxu0 0.0
    %3556 = vmatpush1.msra.mxu0 0.0
    %3557 = vmatprep.subr.mxu0 0.0
    %3558 = vmatpush1.msra.mxu0 0.0
    %3559 = vmatprep.subr.mxu0 0.0
    %3560 = vmatpush1.msra.mxu0 0.0
    %3561 = vmatprep.subr.mxu0 0.0
    %3562 = vmatpush1.msra.mxu0 0.0
    %3563 = vmatprep.subr.mxu0 0.0
    %3564 = vmatpush1.msra.mxu0 0.0
    %3565 = vmatprep.subr.mxu0 0.0
    %3566 = vmatpush1.msra.mxu0 0.0
    %3567 = vmatprep.mubr.f32.mxu0 0.0
    %3568 = vmatmul.mubr.f32.gmra.mrb[0].mxu0 %v3498
    %v3569 = vpop.f32.mrb[0].mxu0
    %v3570 = vadd.f32 %v3496, %v3569
    %v3571 = vpop.f32.mrb[0].mxu0
    %3572 = vmatprep.mubr.f32.mxu0 0.0
    %3573 = vmatmul.mubr.f32.gmra.mrb[0].mxu0 %v3501
    %v3574 = vpop.f32.mrb[0].mxu0
    %v3575 = vadd.f32 %v3496, %v3574
    %v3576 = vpop.f32.mrb[0].mxu0
    %3577 = vdwg.mxu0
    %v3578 = vadd.f32 %v3570, %v2040
    %v3579 = vadd.f32 %v3575, %v2041
    %v3580 = vsel %vm119, %v3578, 0.0
    %3581 = vadd.xlane.f32.xlu0 %v3580
    %v3582 = vpop.xlane.xlu0 %3581
    %v3583 = vsel %vm119, %v3579, 0.0
    %3584 = vadd.xlane.f32.xlu0 %v3583
    %v3585 = vpop.xlane.xlu0 %3584
    %v3586 = vmul.f32 %v3582, %v126
    %v3587 = vmul.f32 %v3585, %v126
    %v3588 = vmul.f32 %v3578, %v3578
    %v3589 = vmul.f32 %v3579, %v3579
    %v3590 = vsel %vm119, %v3588, 0.0
    %3591 = vadd.xlane.f32.xlu0 %v3590
    %v3592 = vpop.xlane.xlu0 %3591
    %v3593 = vsel %vm119, %v3589, 0.0
    %3594 = vadd.xlane.f32.xlu0 %v3593
    %v3595 = vpop.xlane.xlu0 %3594
    %v3596 = vmul.f32 %v3592, %v126
    %v3597 = vmul.f32 %v3595, %v126
    %v3598 = vmul.f32 %v3586, %v3586
    %v3599 = vmul.f32 %v3587, %v3587
    %v3600 = vsub.f32 %v3596, %v3598
    %v3601 = vsub.f32 %v3597, %v3599
    %v3602 = vmax.f32 %v3600, 0.0
    %v3603 = vmax.f32 %v3601, 0.0
    %v3604 = vsub.f32 %v3578, %v3586
    %v3605 = vsub.f32 %v3579, %v3587
    %v3606 = vadd.f32 %v3602, 1e-12
    %v3607 = vadd.f32 %v3603, 1e-12
    %v3608 = vrsqrt.pop %v3606
    %v3609 = vrsqrt.pop %v3607
    %v3610 = vmul.f32 %v3604, %v3608
    %v3611 = vmul.f32 %v3605, %v3609
    %v3612 = vld [vmem:[#allocation2 + $0x18a] sm:$0x1]
    %v3613 = vlaneseq
    %v3614 = vshrl.u32 %v3613, 7
    %v3615 = vsub.s32 0, %v3614
    %v3616 = vrot.slane %v3612, %v3615
    %v3617 = vmul.f32 %v3610, %v3616
    %v3618 = vmul.f32 %v3611, %v3616
    %v3619 = vld [vmem:[#allocation2 + $0x18b] sm:$0x1]
    %v3620 = vlaneseq
    %v3621 = vshrl.u32 %v3620, 7
    %v3622 = vsub.s32 0, %v3621
    %v3623 = vrot.slane %v3619, %v3622
    %v3624 = vadd.f32 %v3617, %v3623
    %v3625 = vadd.f32 %v3618, %v3623
    %v3626 = vld [vmem:[#allocation2 + $0x128] sm:$0xff]
    %v3627 = vld [vmem:[#allocation2 + $0x130] sm:$0xff]
    %v3628 = vld [vmem:[#allocation2 + $0x138] sm:$0xff]
    %v3629 = vld [vmem:[#allocation2 + $0x140] sm:$0xff]
    %v3630 = vld [vmem:[#allocation2 + $0x18c] sm:$0x1]
    %v3631 = vlaneseq
    %v3632 = vshrl.u32 %v3631, 7
    %v3633 = vsub.s32 0, %v3632
    %v3634 = vrot.slane %v3630, %v3633
    %v3636 = vsel %vm119, %v3624, 0
    %v3639 = vsel %vm119, %v3625, 0
    %3641 = vmatprep.subr.mxu0 0.0
    %3642 = vmatpush1.msra.mxu0 %v3626
    %3643 = vmatprep.subr.mxu0 0.0
    %3644 = vmatpush1.msra.mxu0 %v3627
    %3645 = vmatprep.subr.mxu0 0.0
    %3646 = vmatpush1.msra.mxu0 %v3628
    %3647 = vmatprep.subr.mxu0 0.0
    %3648 = vmatpush1.msra.mxu0 %v3629
    %3649 = vmatprep.subr.mxu0 0.0
    %3650 = vmatpush1.msra.mxu0 0.0
    %3651 = vmatprep.subr.mxu0 0.0
    %3652 = vmatpush1.msra.mxu0 0.0
    %3653 = vmatprep.subr.mxu0 0.0
    %3654 = vmatpush1.msra.mxu0 0.0
    %3655 = vmatprep.subr.mxu0 0.0
    %3656 = vmatpush1.msra.mxu0 0.0
    %3657 = vmatprep.subr.mxu0 0.0
    %3658 = vmatpush1.msra.mxu0 0.0
    %3659 = vmatprep.subr.mxu0 0.0
    %3660 = vmatpush1.msra.mxu0 0.0
    %3661 = vmatprep.subr.mxu0 0.0
    %3662 = vmatpush1.msra.mxu0 0.0
    %3663 = vmatprep.subr.mxu0 0.0
    %3664 = vmatpush1.msra.mxu0 0.0
    %3665 = vmatprep.subr.mxu0 0.0
    %3666 = vmatpush1.msra.mxu0 0.0
    %3667 = vmatprep.subr.mxu0 0.0
    %3668 = vmatpush1.msra.mxu0 0.0
    %3669 = vmatprep.subr.mxu0 0.0
    %3670 = vmatpush1.msra.mxu0 0.0
    %3671 = vmatprep.subr.mxu0 0.0
    %3672 = vmatpush1.msra.mxu0 0.0
    %3673 = vmatprep.subr.mxu0 0.0
    %3674 = vmatpush1.msra.mxu0 0.0
    %3675 = vmatprep.subr.mxu0 0.0
    %3676 = vmatpush1.msra.mxu0 0.0
    %3677 = vmatprep.subr.mxu0 0.0
    %3678 = vmatpush1.msra.mxu0 0.0
    %3679 = vmatprep.subr.mxu0 0.0
    %3680 = vmatpush1.msra.mxu0 0.0
    %3681 = vmatprep.subr.mxu0 0.0
    %3682 = vmatpush1.msra.mxu0 0.0
    %3683 = vmatprep.subr.mxu0 0.0
    %3684 = vmatpush1.msra.mxu0 0.0
    %3685 = vmatprep.subr.mxu0 0.0
    %3686 = vmatpush1.msra.mxu0 0.0
    %3687 = vmatprep.subr.mxu0 0.0
    %3688 = vmatpush1.msra.mxu0 0.0
    %3689 = vmatprep.subr.mxu0 0.0
    %3690 = vmatpush1.msra.mxu0 0.0
    %3691 = vmatprep.subr.mxu0 0.0
    %3692 = vmatpush1.msra.mxu0 0.0
    %3693 = vmatprep.subr.mxu0 0.0
    %3694 = vmatpush1.msra.mxu0 0.0
    %3695 = vmatprep.subr.mxu0 0.0
    %3696 = vmatpush1.msra.mxu0 0.0
    %3697 = vmatprep.subr.mxu0 0.0
    %3698 = vmatpush1.msra.mxu0 0.0
    %3699 = vmatprep.subr.mxu0 0.0
    %3700 = vmatpush1.msra.mxu0 0.0
    %3701 = vmatprep.subr.mxu0 0.0
    %3702 = vmatpush1.msra.mxu0 0.0
    %3703 = vmatprep.subr.mxu0 0.0
    %3704 = vmatpush1.msra.mxu0 0.0
    %3705 = vmatprep.mubr.f32.mxu0 0.0
    %3706 = vmatmul.mubr.f32.gmra.mrb[0].mxu0 %v3636
    %v3707 = vpop.f32.mrb[0].mxu0
    %v3708 = vadd.f32 %v3634, %v3707
    %v3709 = vpop.f32.mrb[0].mxu0
    %3710 = vmatprep.mubr.f32.mxu0 0.0
    %3711 = vmatmul.mubr.f32.gmra.mrb[0].mxu0 %v3639
    %v3712 = vpop.f32.mrb[0].mxu0
    %v3713 = vadd.f32 %v3634, %v3712
    %v3714 = vpop.f32.mrb[0].mxu0
    %3715 = vdwg.mxu0
    %v3716 = vmul.f32 %v3708, 0.70710677
    %v3717 = vmul.f32 %v3713, 0.70710677
    %vm3718 = vcmp.ge.f32.partialorder %v3716, 0.0
    %vm3719 = vcmp.ge.f32.partialorder %v3717, 0.0
    %v3720 = vsub.f32 0.0, %v3716
    %v3721 = vsub.f32 0.0, %v3717
    %v3722 = vsel %vm3718, %v3716, %v3720
    %v3723 = vsel %vm3719, %v3717, %v3721
    %v3724 = vmul.f32 %v3722, 0.3275911
    %v3725 = vmul.f32 %v3723, 0.3275911
    %v3726 = vadd.f32 %v3724, 1.0
    %v3727 = vadd.f32 %v3725, 1.0
    %v3728 = vrcp.pop %v3726
    %v3729 = vmul.f32 1.0, %v3728
    %v3730 = vrcp.pop %v3727
    %v3731 = vmul.f32 1.0, %v3730
    %v3732 = vmul.f32 %v3729, 1.0614054
    %v3733 = vmul.f32 %v3731, 1.0614054
    %v3734 = vadd.f32 %v3732, -1.4531521
    %v3735 = vadd.f32 %v3733, -1.4531521
    %v3736 = vmul.f32 %v3729, %v3734
    %v3737 = vmul.f32 %v3731, %v3735
    %v3738 = vadd.f32 %v3736, 1.4214138
    %v3739 = vadd.f32 %v3737, 1.4214138
    %v3740 = vmul.f32 %v3729, %v3738
    %v3741 = vmul.f32 %v3731, %v3739
    %v3742 = vadd.f32 %v3740, -0.28449672
    %v3743 = vadd.f32 %v3741, -0.28449672
    %v3744 = vmul.f32 %v3729, %v3742
    %v3745 = vmul.f32 %v3731, %v3743
    %v3746 = vadd.f32 %v3744, 0.2548296
    %v3747 = vadd.f32 %v3745, 0.2548296
    %v3748 = vmul.f32 %v3729, %v3746
    %v3749 = vmul.f32 %v3731, %v3747
    %v3750 = vsub.f32 0.0, %v3722
    %v3751 = vsub.f32 0.0, %v3723
    %v3752 = vmul.f32 %v3750, %v3722
    %v3753 = vmul.f32 %v3751, %v3723
    %v3754 = vmul.f32 %v3752, 1.442695
    %v3755 = vpow.pop %v3754
    %v3756 = vmul.f32 %v3753, 1.442695
    %v3757 = vpow.pop %v3756
    %v3758 = vmul.f32 %v3748, %v3755
    %v3759 = vmul.f32 %v3749, %v3757
    %v3760 = vsub.f32 1.0, %v3758
    %v3761 = vsub.f32 1.0, %v3759
    %v3762 = vsub.f32 0.0, %v3760
    %v3763 = vsub.f32 0.0, %v3761
    %v3764 = vsel %vm3718, %v3760, %v3762
    %v3765 = vsel %vm3719, %v3761, %v3763
    %v3766 = vmul.f32 %v3708, 0.5
    %v3767 = vmul.f32 %v3713, 0.5
    %v3768 = vadd.f32 %v3764, 1.0
    %v3769 = vadd.f32 %v3765, 1.0
    %v3770 = vmul.f32 %v3766, %v3768
    %v3771 = vmul.f32 %v3767, %v3769
    %v3772 = vld [vmem:[#allocation2 + $0x148] sm:$0xff]
    %v3773 = vld [vmem:[#allocation2 + $0x150] sm:$0xff]
    %v3774 = vld [vmem:[#allocation2 + $0x158] sm:$0xff]
    %v3775 = vld [vmem:[#allocation2 + $0x160] sm:$0xff]
    %v3776 = vld [vmem:[#allocation2 + $0x168] sm:$0xff]
    %v3777 = vld [vmem:[#allocation2 + $0x170] sm:$0xff]
    %v3778 = vld [vmem:[#allocation2 + $0x178] sm:$0xff]
    %v3779 = vld [vmem:[#allocation2 + $0x180] sm:$0xff]
    %v3780 = vld [vmem:[#allocation2 + $0x18d] sm:$0x1]
    %v3781 = vlaneseq
    %v3782 = vshrl.u32 %v3781, 7
    %v3783 = vsub.s32 0, %v3782
    %v3784 = vrot.slane %v3780, %v3783
    %v3786 = vsel %vm1912, %v3770, 0
    %v3789 = vsel %vm1912, %v3771, 0
    %3791 = vmatprep.subr.mxu0 0.0
    %3792 = vmatpush1.msra.mxu0 %v3772
    %3793 = vmatprep.subr.mxu0 0.0
    %3794 = vmatpush1.msra.mxu0 %v3773
    %3795 = vmatprep.subr.mxu0 0.0
    %3796 = vmatpush1.msra.mxu0 %v3774
    %3797 = vmatprep.subr.mxu0 0.0
    %3798 = vmatpush1.msra.mxu0 %v3775
    %3799 = vmatprep.subr.mxu0 0.0
    %3800 = vmatpush1.msra.mxu0 %v3776
    %3801 = vmatprep.subr.mxu0 0.0
    %3802 = vmatpush1.msra.mxu0 %v3777
    %3803 = vmatprep.subr.mxu0 0.0
    %3804 = vmatpush1.msra.mxu0 %v3778
    %3805 = vmatprep.subr.mxu0 0.0
    %3806 = vmatpush1.msra.mxu0 %v3779
    %3807 = vmatprep.subr.mxu0 0.0
    %3808 = vmatpush1.msra.mxu0 0.0
    %3809 = vmatprep.subr.mxu0 0.0
    %3810 = vmatpush1.msra.mxu0 0.0
    %3811 = vmatprep.subr.mxu0 0.0
    %3812 = vmatpush1.msra.mxu0 0.0
    %3813 = vmatprep.subr.mxu0 0.0
    %3814 = vmatpush1.msra.mxu0 0.0
    %3815 = vmatprep.subr.mxu0 0.0
    %3816 = vmatpush1.msra.mxu0 0.0
    %3817 = vmatprep.subr.mxu0 0.0
    %3818 = vmatpush1.msra.mxu0 0.0
    %3819 = vmatprep.subr.mxu0 0.0
    %3820 = vmatpush1.msra.mxu0 0.0
    %3821 = vmatprep.subr.mxu0 0.0
    %3822 = vmatpush1.msra.mxu0 0.0
    %3823 = vmatprep.subr.mxu0 0.0
    %3824 = vmatpush1.msra.mxu0 0.0
    %3825 = vmatprep.subr.mxu0 0.0
    %3826 = vmatpush1.msra.mxu0 0.0
    %3827 = vmatprep.subr.mxu0 0.0
    %3828 = vmatpush1.msra.mxu0 0.0
    %3829 = vmatprep.subr.mxu0 0.0
    %3830 = vmatpush1.msra.mxu0 0.0
    %3831 = vmatprep.subr.mxu0 0.0
    %3832 = vmatpush1.msra.mxu0 0.0
    %3833 = vmatprep.subr.mxu0 0.0
    %3834 = vmatpush1.msra.mxu0 0.0
    %3835 = vmatprep.subr.mxu0 0.0
    %3836 = vmatpush1.msra.mxu0 0.0
    %3837 = vmatprep.subr.mxu0 0.0
    %3838 = vmatpush1.msra.mxu0 0.0
    %3839 = vmatprep.subr.mxu0 0.0
    %3840 = vmatpush1.msra.mxu0 0.0
    %3841 = vmatprep.subr.mxu0 0.0
    %3842 = vmatpush1.msra.mxu0 0.0
    %3843 = vmatprep.subr.mxu0 0.0
    %3844 = vmatpush1.msra.mxu0 0.0
    %3845 = vmatprep.subr.mxu0 0.0
    %3846 = vmatpush1.msra.mxu0 0.0
    %3847 = vmatprep.subr.mxu0 0.0
    %3848 = vmatpush1.msra.mxu0 0.0
    %3849 = vmatprep.subr.mxu0 0.0
    %3850 = vmatpush1.msra.mxu0 0.0
    %3851 = vmatprep.subr.mxu0 0.0
    %3852 = vmatpush1.msra.mxu0 0.0
    %3853 = vmatprep.subr.mxu0 0.0
    %3854 = vmatpush1.msra.mxu0 0.0
    %3855 = vmatprep.mubr.f32.mxu0 0.0
    %3856 = vmatmul.mubr.f32.gmra.mrb[0].mxu0 %v3786
    %v3857 = vpop.f32.mrb[0].mxu0
    %v3858 = vadd.f32 %v3784, %v3857
    %v3859 = vpop.f32.mrb[0].mxu0
    %3860 = vmatprep.mubr.f32.mxu0 0.0
    %3861 = vmatmul.mubr.f32.gmra.mrb[0].mxu0 %v3789
    %v3862 = vpop.f32.mrb[0].mxu0
    %v3863 = vadd.f32 %v3784, %v3862
    %v3864 = vpop.f32.mrb[0].mxu0
    %3865 = vdwg.mxu0
    %v3866 = vadd.f32 %v3858, %v3624
    %v3867 = vadd.f32 %v3863, %v3625
    %v3868 = vsel %vm119, %v3866, 0.0
    %3869 = vadd.xlane.f32.xlu0 %v3868
    %v3870 = vpop.xlane.xlu0 %3869
    %v3871 = vsel %vm119, %v3867, 0.0
    %3872 = vadd.xlane.f32.xlu0 %v3871
    %v3873 = vpop.xlane.xlu0 %3872
    %v3874 = vmul.f32 %v3870, %v126
    %v3875 = vmul.f32 %v3873, %v126
    %v3876 = vmul.f32 %v3866, %v3866
    %v3877 = vmul.f32 %v3867, %v3867
    %v3878 = vsel %vm119, %v3876, 0.0
    %3879 = vadd.xlane.f32.xlu0 %v3878
    %v3880 = vpop.xlane.xlu0 %3879
    %v3881 = vsel %vm119, %v3877, 0.0
    %3882 = vadd.xlane.f32.xlu0 %v3881
    %v3883 = vpop.xlane.xlu0 %3882
    %v3884 = vmul.f32 %v3880, %v126
    %v3885 = vmul.f32 %v3883, %v126
    %v3886 = vmul.f32 %v3874, %v3874
    %v3887 = vmul.f32 %v3875, %v3875
    %v3888 = vsub.f32 %v3884, %v3886
    %v3889 = vsub.f32 %v3885, %v3887
    %v3890 = vmax.f32 %v3888, 0.0
    %v3891 = vmax.f32 %v3889, 0.0
    %v3892 = vsub.f32 %v3866, %v3874
    %v3893 = vsub.f32 %v3867, %v3875
    %v3894 = vadd.f32 %v3890, 1e-12
    %v3895 = vadd.f32 %v3891, 1e-12
    %v3896 = vrsqrt.pop %v3894
    %v3897 = vrsqrt.pop %v3895
    %v3898 = vmul.f32 %v3892, %v3896
    %v3899 = vmul.f32 %v3893, %v3897
    %v3900 = vld [vmem:[#allocation2 + $0x18e] sm:$0x1]
    %v3901 = vlaneseq
    %v3902 = vshrl.u32 %v3901, 7
    %v3903 = vsub.s32 0, %v3902
    %v3904 = vrot.slane %v3900, %v3903
    %v3905 = vmul.f32 %v3898, %v3904
    %v3906 = vmul.f32 %v3899, %v3904
    %v3907 = vld [vmem:[#allocation2 + $0x18f] sm:$0x1]
    %v3908 = vlaneseq
    %v3909 = vshrl.u32 %v3908, 7
    %v3910 = vsub.s32 0, %v3909
    %v3911 = vrot.slane %v3907, %v3910
    %v3912 = vadd.f32 %v3905, %v3911
    %v3913 = vadd.f32 %v3906, %v3911
    %v3914 = vld [vmem:[#allocation2 + $0x20] sm:$0xff]
    %v3915 = vld [vmem:[#allocation2 + $0x28] sm:$0xff]
    %v3916 = vld [vmem:[#allocation2 + $0x30] sm:$0xff]
    %v3917 = vld [vmem:[#allocation2 + $0x38] sm:$0xff]
    %v3918 = vld [vmem:[#allocation2 + $0xb] sm:$0x1]
    %v3919 = vlaneseq
    %v3920 = vshrl.u32 %v3919, 7
    %v3921 = vsub.s32 0, %v3920
    %v3922 = vrot.slane %v3918, %v3921
    %v3924 = vsel %vm119, %v3912, 0
    %v3927 = vsel %vm119, %v3913, 0
    %3929 = vmatprep.subr.mxu0 0.0
    %3930 = vmatpush1.msra.mxu0 %v3914
    %3931 = vmatprep.subr.mxu0 0.0
    %3932 = vmatpush1.msra.mxu0 %v3915
    %3933 = vmatprep.subr.mxu0 0.0
    %3934 = vmatpush1.msra.mxu0 %v3916
    %3935 = vmatprep.subr.mxu0 0.0
    %3936 = vmatpush1.msra.mxu0 %v3917
    %3937 = vmatprep.subr.mxu0 0.0
    %3938 = vmatpush1.msra.mxu0 0.0
    %3939 = vmatprep.subr.mxu0 0.0
    %3940 = vmatpush1.msra.mxu0 0.0
    %3941 = vmatprep.subr.mxu0 0.0
    %3942 = vmatpush1.msra.mxu0 0.0
    %3943 = vmatprep.subr.mxu0 0.0
    %3944 = vmatpush1.msra.mxu0 0.0
    %3945 = vmatprep.subr.mxu0 0.0
    %3946 = vmatpush1.msra.mxu0 0.0
    %3947 = vmatprep.subr.mxu0 0.0
    %3948 = vmatpush1.msra.mxu0 0.0
    %3949 = vmatprep.subr.mxu0 0.0
    %3950 = vmatpush1.msra.mxu0 0.0
    %3951 = vmatprep.subr.mxu0 0.0
    %3952 = vmatpush1.msra.mxu0 0.0
    %3953 = vmatprep.subr.mxu0 0.0
    %3954 = vmatpush1.msra.mxu0 0.0
    %3955 = vmatprep.subr.mxu0 0.0
    %3956 = vmatpush1.msra.mxu0 0.0
    %3957 = vmatprep.subr.mxu0 0.0
    %3958 = vmatpush1.msra.mxu0 0.0
    %3959 = vmatprep.subr.mxu0 0.0
    %3960 = vmatpush1.msra.mxu0 0.0
    %3961 = vmatprep.subr.mxu0 0.0
    %3962 = vmatpush1.msra.mxu0 0.0
    %3963 = vmatprep.subr.mxu0 0.0
    %3964 = vmatpush1.msra.mxu0 0.0
    %3965 = vmatprep.subr.mxu0 0.0
    %3966 = vmatpush1.msra.mxu0 0.0
    %3967 = vmatprep.subr.mxu0 0.0
    %3968 = vmatpush1.msra.mxu0 0.0
    %3969 = vmatprep.subr.mxu0 0.0
    %3970 = vmatpush1.msra.mxu0 0.0
    %3971 = vmatprep.subr.mxu0 0.0
    %3972 = vmatpush1.msra.mxu0 0.0
    %3973 = vmatprep.subr.mxu0 0.0
    %3974 = vmatpush1.msra.mxu0 0.0
    %3975 = vmatprep.subr.mxu0 0.0
    %3976 = vmatpush1.msra.mxu0 0.0
    %3977 = vmatprep.subr.mxu0 0.0
    %3978 = vmatpush1.msra.mxu0 0.0
    %3979 = vmatprep.subr.mxu0 0.0
    %3980 = vmatpush1.msra.mxu0 0.0
    %3981 = vmatprep.subr.mxu0 0.0
    %3982 = vmatpush1.msra.mxu0 0.0
    %3983 = vmatprep.subr.mxu0 0.0
    %3984 = vmatpush1.msra.mxu0 0.0
    %3985 = vmatprep.subr.mxu0 0.0
    %3986 = vmatpush1.msra.mxu0 0.0
    %3987 = vmatprep.subr.mxu0 0.0
    %3988 = vmatpush1.msra.mxu0 0.0
    %3989 = vmatprep.subr.mxu0 0.0
    %3990 = vmatpush1.msra.mxu0 0.0
    %3991 = vmatprep.subr.mxu0 0.0
    %3992 = vmatpush1.msra.mxu0 0.0
    %3993 = vmatprep.mubr.f32.mxu0 0.0
    %3994 = vmatmul.mubr.f32.gmra.mrb[0].mxu0 %v3924
    %v3995 = vpop.f32.mrb[0].mxu0
    %v3996 = vadd.f32 %v3922, %v3995
    %v3997 = vpop.f32.mrb[0].mxu0
    %3998 = vmatprep.mubr.f32.mxu0 0.0
    %3999 = vmatmul.mubr.f32.gmra.mrb[0].mxu0 %v3927
    %v4000 = vpop.f32.mrb[0].mxu0
    %v4001 = vadd.f32 %v3922, %v4000
    %v4002 = vpop.f32.mrb[0].mxu0
    %4003 = vdwg.mxu0
    %vm4004 = vcmask 23552
    %4005 = vst.msk [vmem:[%s2] sm:$0xff] %vm4004, %v3996
    %4006 = vst.msk [vmem:[%s2 + $0x8] sm:$0xff] %vm4004, %v4001
    // Predicated region
    $region14: #{bert_model_custom2.1} parent=1 // pred_check
      _
    $region15: #{bert_model_custom2.1} parent=1 // pred_check_branch
      %4008 = sbr.rel (0) target = $region17
    $region16: #{bert_model_custom2.1} parent=1 // pred_region
      _
    $region17: #{bert_model_custom2.1} parent=1 // pred_fallthru
      _
    // Predicated region
    $region18: #{bert_model_custom2.1} parent=1 // pred_check
      _
    $region19: #{bert_model_custom2.1} parent=1 // pred_check_branch
      %4010 = sbr.rel (0) target = $region21
    $region20: #{bert_model_custom2.1} parent=1 // pred_region
      _
    $region21: #{bert_model_custom2.1} parent=1 // pred_fallthru
      _
    %4011 = vsyncpa [#allocation3], 1

</llo_original>
